<compile_context>
chip_gen: v7x
topology: tpu7x:2x2x1
jax: 0.10.0
libtpu: 0.0.40
codegen_flags: <defaults>
</compile_context>

<pallas_src>
import functools

import numpy as np

import jax
import jax.numpy as jnp
from jax.experimental import pallas as pl
from jax.experimental.pallas import tpu as pltpu


def window_attention_kernel(x_ref, illu_ref, mask_ref, bias_ref,
                            wqkv_ref, bqkv_ref, wproj_ref, bproj_ref,
                            o_ref, ctx_scratch,
                            *, heads, dim_heads, scale):
    bb, L, C = x_ref.shape
    HD = heads * dim_heads

    # ---- fused QKV projection: (bb*L, C) @ (C, 3*HD) + b, f32 accumulation ----
    x2 = x_ref[...].reshape(bb * L, C)
    qkv = jnp.dot(x2, wqkv_ref[...], preferred_element_type=jnp.float32)
    qkv = qkv + bqkv_ref[...]                    # bias added once (no per-step rebroadcast)

    q = qkv[:, 0 * HD:1 * HD] * scale            # q * dim_heads**-0.5
    k = qkv[:, 1 * HD:2 * HD]
    # v is modulated elementwise by illu_fea ('b l (h d)' layout matches v's layout)
    v = qkv[:, 2 * HD:3 * HD] * illu_ref[...].reshape(bb * L, HD).astype(jnp.float32)

    mask = mask_ref[...].astype(jnp.float32)     # (bb, L, L) per-window shift mask

    # ---- per-head attention; head slices are static 128-lane-aligned lane slices ----
    for h in range(heads):
        lo, hi = h * dim_heads, (h + 1) * dim_heads
        qh = q[:, lo:hi].reshape(bb, L, dim_heads)
        kh = k[:, lo:hi].reshape(bb, L, dim_heads)
        vh = v[:, lo:hi].reshape(bb, L, dim_heads)

        s = jnp.einsum('bld,bmd->blm', qh, kh,
                       preferred_element_type=jnp.float32)        # (bb, L, L)
        s = s + bias_ref[h][None, :, :] + mask                    # rel-pos bias + mask

        s = s - jnp.max(s, axis=-1, keepdims=True)                # stable softmax in f32
        p = jnp.exp(s)
        p = p / jnp.sum(p, axis=-1, keepdims=True)
        # attn_drop: p = 0.0 (eval mode) -> identity

        ctx_h = jnp.einsum('blm,bmd->bld', p, vh,
                           preferred_element_type=jnp.float32)    # (bb, L, D)
        ctx_scratch[:, lo:hi] = ctx_h.reshape(bb * L, dim_heads)

    # ---- output projection: (bb*L, HD) @ (HD, C) + b ----
    y = jnp.dot(ctx_scratch[...].astype(wproj_ref.dtype), wproj_ref[...],
                preferred_element_type=jnp.float32)
    y = y + bproj_ref[...]
    # proj_drop: p = 0.0 (eval mode) -> identity
    o_ref[...] = y.reshape(bb, L, C).astype(o_ref.dtype)


def _relative_position_index(window_size):
    """Numpy replica of the PyTorch buffer construction (trace-time constant)."""
    wh, ww = window_size
    coords = np.stack(np.meshgrid(np.arange(wh), np.arange(ww), indexing='ij'))
    flat = coords.reshape(2, -1)
    rel = flat[:, :, None] - flat[:, None, :]
    rel = rel.transpose(1, 2, 0).astype(np.int64)
    rel[:, :, 0] += wh - 1
    rel[:, :, 1] += ww - 1
    rel[:, :, 0] *= 2 * ww - 1
    return rel.sum(-1)                                            # (L, L)


@functools.partial(jax.jit,
                   static_argnames=("heads", "dim_heads", "window_size", "bb"))
def window_attention_pallas(x, illu_fea, attn_mask, wqkv, bqkv, wproj, bproj,
                            bias_table, *, heads, dim_heads, window_size, bb=2):
    B, L, C = x.shape
    HD = heads * dim_heads
    assert L == window_size[0] * window_size[1]
    assert B % bb == 0
    scale = float(dim_heads) ** -0.5

    # Relative-position-bias gather is data-independent: precompute (heads, L, L) in
    # the wrapper (no clean in-kernel Pallas equivalent for this table gather).
    rel_idx = _relative_position_index(window_size).reshape(-1)
    bias = bias_table[rel_idx].reshape(L, L, heads).transpose(2, 0, 1)

    # Expand attn_mask (nW, L, L) -> per-window (B, L, L); window i uses mask i % nW,
    # exactly matching attn.view(b//nw, nw, ...) + mask in the PyTorch module.
    nW = attn_mask.shape[0]
    mask_full = jnp.tile(attn_mask, (B // nW, 1, 1))

    bqkv2 = bqkv.reshape(1, 3 * HD)
    bproj2 = bproj.reshape(1, C)

    flops = (2 * B * L * C * 3 * HD          # qkv projection
             + 4 * B * heads * L * L * dim_heads  # q@k^T and attn@v
             + 2 * B * L * HD * C)           # output projection
    bytes_accessed = (x.size + illu_fea.size + mask_full.size + bias.size
                      + wqkv.size + bqkv2.size + wproj.size + bproj2.size
                      + B * L * C) * x.dtype.itemsize
    cost = pl.CostEstimate(flops=flops,
                           transcendentals=B * heads * L * L,     # exp in softmax
                           bytes_accessed=bytes_accessed)

    kernel = functools.partial(window_attention_kernel,
                               heads=heads, dim_heads=dim_heads, scale=scale)

    return pl.pallas_call(
        kernel,
        out_shape=jax.ShapeDtypeStruct((B, L, C), x.dtype),
        grid_spec=pltpu.PrefetchScalarGridSpec(
            num_scalar_prefetch=0,
            grid=(B // bb,),
            in_specs=[
                pl.BlockSpec((bb, L, C), lambda i: (i, 0, 0)),     # x windows tile
                pl.BlockSpec((bb, L, HD), lambda i: (i, 0, 0)),    # illu_fea tile
                pl.BlockSpec((bb, L, L), lambda i: (i, 0, 0)),     # per-window mask tile
                pl.BlockSpec((heads, L, L), lambda i: (0, 0, 0)),  # rel-pos bias (resident)
                pl.BlockSpec((C, 3 * HD), lambda i: (0, 0)),       # W_qkv (resident)
                pl.BlockSpec((1, 3 * HD), lambda i: (0, 0)),       # b_qkv
                pl.BlockSpec((HD, C), lambda i: (0, 0)),           # W_proj (resident)
                pl.BlockSpec((1, C), lambda i: (0, 0)),            # b_proj
            ],
            out_specs=pl.BlockSpec((bb, L, C), lambda i: (i, 0, 0)),
            scratch_shapes=[pltpu.VMEM((bb * L, HD), jnp.float32)],
        ),
        compiler_params=pltpu.CompilerParams(
            dimension_semantics=("parallel",),        # windows are independent (megacore)
            vmem_limit_bytes=64 * 1024 * 1024),
        cost_estimate=cost,
    )(x, illu_fea, mask_full, bias, wqkv, bqkv2, wproj, bproj2)
    # TODO(synk): for production C/H that no longer fit VMEM, single-buffer the
    # grid-invariant weights / add a K-reduction grid axis instead of shrinking bb.


def window_attention_reference(x, illu_fea, attn_mask, wqkv, bqkv, wproj, bproj,
                               bias_table, heads, dim_heads, window_size):
    B, L, C = x.shape
    HD = heads * dim_heads
    scale = dim_heads ** -0.5
    hp = jax.lax.Precision.HIGHEST
    rel_idx = _relative_position_index(window_size).reshape(-1)
    bias = bias_table[rel_idx].reshape(L, L, heads).transpose(2, 0, 1)

    qkv = jnp.dot(x, wqkv, precision=hp) + bqkv
    qkv = qkv.reshape(B, L, 3, heads, dim_heads).transpose(2, 0, 3, 1, 4)
    q, k, v = qkv[0] * scale, qkv[1], qkv[2]
    attn = jnp.einsum('bhld,bhmd->bhlm', q, k, precision=hp)
    illu = illu_fea.reshape(B, L, heads, dim_heads).transpose(0, 2, 1, 3)
    v = v * illu
    attn = attn + bias[None]
    nW = attn_mask.shape[0]
    attn = attn.reshape(B // nW, nW, heads, L, L) + attn_mask[None, :, None]
    attn = attn.reshape(B, heads, L, L)
    attn = jax.nn.softmax(attn, axis=-1)
    out = jnp.einsum('bhlm,bhmd->bhld', attn, v, precision=hp)
    out = out.transpose(0, 2, 1, 3).reshape(B, L, HD)
    return jnp.dot(out, wproj, precision=hp) + bproj


if __name__ == "__main__":
    # Module config: dim=128, dim_heads=32, heads=4, window_size=(8,8),
    # qkv_bias=True, attn_drop=0.0, proj_drop=0.0 (dim == heads*dim_heads, lane-dense)
    heads, dim_heads = 4, 32
    window_size = (8, 8)
    dim = heads * dim_heads                    # 128
    L = window_size[0] * window_size[1]        # 64
    nW = 2                                     # distinct shift masks
    B = 4                                      # total windows (B % nW == 0)

    key = jax.random.PRNGKey(0)
    kx, ki, km, kt, kw1, kb1, kw2, kb2 = jax.random.split(key, 8)

    x = jax.random.normal(kx, (B, L, dim), dtype=jnp.float32)
    illu_fea = jax.random.normal(ki, (B, L, heads * dim_heads), dtype=jnp.float32)
    mask_bits = jax.random.bernoulli(km, 0.25, (nW, L, L))
    attn_mask = jnp.where(mask_bits, -100.0, 0.0).astype(jnp.float32)

    table_size = (2 * window_size[0] - 1) * (2 * window_size[1] - 1)
    bias_table = 0.02 * jax.random.normal(kt, (table_size, heads), dtype=jnp.float32)

    # Linear weights stored (in, out) == PyTorch weight.T
    wqkv = 0.05 * jax.random.normal(kw1, (dim, 3 * heads * dim_heads), dtype=jnp.float32)
    bqkv = 0.01 * jax.random.normal(kb1, (3 * heads * dim_heads,), dtype=jnp.float32)
    wproj = 0.05 * jax.random.normal(kw2, (heads * dim_heads, dim), dtype=jnp.float32)
    bproj = 0.01 * jax.random.normal(kb2, (dim,), dtype=jnp.float32)

    out = window_attention_pallas(x, illu_fea, attn_mask, wqkv, bqkv, wproj, bproj,
                                  bias_table, heads=heads, dim_heads=dim_heads,
                                  window_size=window_size, bb=2)
    out = jax.block_until_ready(out)

    ref = window_attention_reference(x, illu_fea, attn_mask, wqkv, bqkv, wproj, bproj,
                                     bias_table, heads, dim_heads, window_size)
    assert out.shape == (B, L, dim)
    assert jnp.allclose(out, ref, atol=2e-3, rtol=2e-3), "mismatch vs reference"

    print("KERNEL_OK")
</pallas_src>

<mosaic_0001>
module attributes {stable_mosaic.version = 11 : i64} {
  func.func @window_attention_kernel(%arg0: i32, %arg1: memref<2x64x128xf32, #tpu.memory_space<vmem>>, %arg2: memref<2x64x128xf32, #tpu.memory_space<vmem>>, %arg3: memref<2x64x64xf32, #tpu.memory_space<vmem>>, %arg4: memref<4x64x64xf32, #tpu.memory_space<vmem>>, %arg5: memref<128x384xf32, #tpu.memory_space<vmem>>, %arg6: memref<1x384xf32, #tpu.memory_space<vmem>>, %arg7: memref<128x128xf32, #tpu.memory_space<vmem>>, %arg8: memref<1x128xf32, #tpu.memory_space<vmem>>, %arg9: memref<2x64x128xf32, #tpu.memory_space<vmem>>, %arg10: memref<128x128xf32, #tpu.memory_space<vmem>>) attributes {dimension_semantics = [#tpu.dimension_semantics<parallel>], iteration_bounds = array<i64: 2>, scalar_prefetch = 0 : i64, scratch_operands = 1 : i64, tpu.core_type = #tpu.core_type<tc>, window_params = [{transform_indices = @transform_0, window_bounds = array<i64: 2, 64, 128>}, {transform_indices = @transform_1, window_bounds = array<i64: 2, 64, 128>}, {transform_indices = @transform_2, window_bounds = array<i64: 2, 64, 64>}, {pipeline_mode = #tpu.pipeline_mode<synchronous>, transform_indices = @transform_3, window_bounds = array<i64: 4, 64, 64>}, {pipeline_mode = #tpu.pipeline_mode<synchronous>, transform_indices = @transform_4, window_bounds = array<i64: 128, 384>}, {pipeline_mode = #tpu.pipeline_mode<synchronous>, transform_indices = @transform_5, window_bounds = array<i64: 1, 384>}, {pipeline_mode = #tpu.pipeline_mode<synchronous>, transform_indices = @transform_6, window_bounds = array<i64: 128, 128>}, {pipeline_mode = #tpu.pipeline_mode<synchronous>, transform_indices = @transform_7, window_bounds = array<i64: 1, 128>}, {transform_indices = @transform_8, window_bounds = array<i64: 2, 64, 128>}]} {
    %c0 = arith.constant 0 : index
    %c0_0 = arith.constant 0 : index
    %c0_1 = arith.constant 0 : index
    %0 = vector.load %arg1[%c0, %c0_0, %c0_1] : memref<2x64x128xf32, #tpu.memory_space<vmem>>, vector<2x64x128xf32>
    %1 = vector.shape_cast %0 : vector<2x64x128xf32> to vector<128x128xf32>
    %c0_2 = arith.constant 0 : index
    %c0_3 = arith.constant 0 : index
    %2 = vector.load %arg5[%c0_2, %c0_3] : memref<128x384xf32, #tpu.memory_space<vmem>>, vector<128x384xf32>
    %cst = arith.constant dense<0.000000e+00> : vector<128x384xf32>
    %3 = tpu.matmul %1, %2, %cst {dimension_numbers = #tpu.dot_dimension_numbers<[1], [0], [0], [1], [0, 0, 1, 1], [], []>} : vector<128x128xf32>, vector<128x384xf32>, vector<128x384xf32> -> vector<128x384xf32>
    %c0_4 = arith.constant 0 : index
    %c0_5 = arith.constant 0 : index
    %4 = vector.load %arg6[%c0_4, %c0_5] : memref<1x384xf32, #tpu.memory_space<vmem>>, vector<1x384xf32>
    %5 = vector.broadcast %4 : vector<1x384xf32> to vector<128x384xf32>
    %6 = arith.addf %3, %5 : vector<128x384xf32>
    %7 = vector.extract_strided_slice %6 {offsets = [0, 0], sizes = [128, 128], strides = [1, 1]} : vector<128x384xf32> to vector<128x128xf32>
    %cst_6 = arith.constant 0.176776692 : f32
    %8 = vector.broadcast %cst_6 : f32 to vector<128x128xf32>
    %9 = arith.mulf %7, %8 : vector<128x128xf32>
    %10 = vector.extract_strided_slice %6 {offsets = [0, 128], sizes = [128, 128], strides = [1, 1]} : vector<128x384xf32> to vector<128x128xf32>
    %11 = vector.extract_strided_slice %6 {offsets = [0, 256], sizes = [128, 128], strides = [1, 1]} : vector<128x384xf32> to vector<128x128xf32>
    %c0_7 = arith.constant 0 : index
    %c0_8 = arith.constant 0 : index
    %c0_9 = arith.constant 0 : index
    %12 = vector.load %arg2[%c0_7, %c0_8, %c0_9] : memref<2x64x128xf32, #tpu.memory_space<vmem>>, vector<2x64x128xf32>
    %13 = vector.shape_cast %12 : vector<2x64x128xf32> to vector<128x128xf32>
    %14 = arith.mulf %11, %13 : vector<128x128xf32>
    %c0_10 = arith.constant 0 : index
    %c0_11 = arith.constant 0 : index
    %c0_12 = arith.constant 0 : index
    %15 = vector.load %arg3[%c0_10, %c0_11, %c0_12] : memref<2x64x64xf32, #tpu.memory_space<vmem>>, vector<2x64x64xf32>
    %16 = vector.extract_strided_slice %9 {offsets = [0, 0], sizes = [128, 32], strides = [1, 1]} : vector<128x128xf32> to vector<128x32xf32>
    %17 = vector.shape_cast %16 : vector<128x32xf32> to vector<2x64x32xf32>
    %18 = vector.extract_strided_slice %10 {offsets = [0, 0], sizes = [128, 32], strides = [1, 1]} : vector<128x128xf32> to vector<128x32xf32>
    %19 = vector.shape_cast %18 : vector<128x32xf32> to vector<2x64x32xf32>
    %20 = vector.extract_strided_slice %14 {offsets = [0, 0], sizes = [128, 32], strides = [1, 1]} : vector<128x128xf32> to vector<128x32xf32>
    %21 = vector.shape_cast %20 : vector<128x32xf32> to vector<2x64x32xf32>
    "tpu.trace_start"() <{level = 10 : i32, message = "bld,bmd->blm"}> : () -> ()
    %cst_13 = arith.constant dense<0.000000e+00> : vector<2x64x64xf32>
    %22 = tpu.matmul %17, %19, %cst_13 {dimension_numbers = #tpu.dot_dimension_numbers<[2], [2], [1], [1], [0, 0, 0, 1, 1, 1], [0], [0]>} : vector<2x64x32xf32>, vector<2x64x32xf32>, vector<2x64x64xf32> -> vector<2x64x64xf32>
    "tpu.trace_stop"() : () -> ()
    %c0_14 = arith.constant 0 : index
    %c0_15 = arith.constant 0 : index
    %c0_16 = arith.constant 0 : index
    %23 = vector.load %arg4[%c0_14, %c0_15, %c0_16] : memref<4x64x64xf32, #tpu.memory_space<vmem>>, vector<1x64x64xf32>
    %24 = vector.shape_cast %23 : vector<1x64x64xf32> to vector<64x64xf32>
    %25 = vector.shape_cast %24 : vector<64x64xf32> to vector<1x64x64xf32>
    %26 = vector.broadcast %25 : vector<1x64x64xf32> to vector<2x64x64xf32>
    %27 = arith.addf %22, %26 : vector<2x64x64xf32>
    %28 = arith.addf %27, %15 : vector<2x64x64xf32>
    %cst_17 = arith.constant dense<0xFF800000> : vector<2x64xf32>
    %29 = vector.multi_reduction <maximumf>, %28, %cst_17 [2] : vector<2x64x64xf32> to vector<2x64xf32>
    %30 = vector.shape_cast %29 : vector<2x64xf32> to vector<2x64x1xf32>
    %31 = vector.broadcast %30 : vector<2x64x1xf32> to vector<2x64x64xf32>
    %32 = arith.subf %28, %31 : vector<2x64x64xf32>
    %33 = math.exp %32 : vector<2x64x64xf32>
    %cst_18 = arith.constant dense<0.000000e+00> : vector<2x64xf32>
    %34 = vector.multi_reduction <add>, %33, %cst_18 [2] : vector<2x64x64xf32> to vector<2x64xf32>
    %35 = vector.shape_cast %34 : vector<2x64xf32> to vector<2x64x1xf32>
    %36 = vector.broadcast %35 : vector<2x64x1xf32> to vector<2x64x64xf32>
    %37 = arith.divf %33, %36 : vector<2x64x64xf32>
    "tpu.trace_start"() <{level = 10 : i32, message = "blm,bmd->bld"}> : () -> ()
    %cst_19 = arith.constant dense<0.000000e+00> : vector<2x64x32xf32>
    %38 = tpu.matmul %37, %21, %cst_19 {dimension_numbers = #tpu.dot_dimension_numbers<[2], [1], [1], [2], [0, 0, 0, 1, 1, 2], [0], [0]>} : vector<2x64x64xf32>, vector<2x64x32xf32>, vector<2x64x32xf32> -> vector<2x64x32xf32>
    "tpu.trace_stop"() : () -> ()
    %39 = vector.shape_cast %38 : vector<2x64x32xf32> to vector<128x32xf32>
    %c0_20 = arith.constant 0 : index
    %c0_21 = arith.constant 0 : index
    %40 = vector.load %arg10[%c0_20, %c0_21] : memref<128x128xf32, #tpu.memory_space<vmem>>, vector<128x32xf32>
    tpu.vector_store %arg10[%c0_20, %c0_21], %39 {strides = array<i32>} : memref<128x128xf32, #tpu.memory_space<vmem>>, vector<128x32xf32>,
    %41 = vector.extract_strided_slice %9 {offsets = [0, 32], sizes = [128, 32], strides = [1, 1]} : vector<128x128xf32> to vector<128x32xf32>
    %42 = vector.shape_cast %41 : vector<128x32xf32> to vector<2x64x32xf32>
    %43 = vector.extract_strided_slice %10 {offsets = [0, 32], sizes = [128, 32], strides = [1, 1]} : vector<128x128xf32> to vector<128x32xf32>
    %44 = vector.shape_cast %43 : vector<128x32xf32> to vector<2x64x32xf32>
    %45 = vector.extract_strided_slice %14 {offsets = [0, 32], sizes = [128, 32], strides = [1, 1]} : vector<128x128xf32> to vector<128x32xf32>
    %46 = vector.shape_cast %45 : vector<128x32xf32> to vector<2x64x32xf32>
    "tpu.trace_start"() <{level = 10 : i32, message = "bld,bmd->blm"}> : () -> ()
    %cst_22 = arith.constant dense<0.000000e+00> : vector<2x64x64xf32>
    %47 = tpu.matmul %42, %44, %cst_22 {dimension_numbers = #tpu.dot_dimension_numbers<[2], [2], [1], [1], [0, 0, 0, 1, 1, 1], [0], [0]>} : vector<2x64x32xf32>, vector<2x64x32xf32>, vector<2x64x64xf32> -> vector<2x64x64xf32>
    "tpu.trace_stop"() : () -> ()
    %c1 = arith.constant 1 : index
    %c0_23 = arith.constant 0 : index
    %c0_24 = arith.constant 0 : index
    %48 = vector.load %arg4[%c1, %c0_23, %c0_24] : memref<4x64x64xf32, #tpu.memory_space<vmem>>, vector<1x64x64xf32>
    %49 = vector.shape_cast %48 : vector<1x64x64xf32> to vector<64x64xf32>
    %50 = vector.shape_cast %49 : vector<64x64xf32> to vector<1x64x64xf32>
    %51 = vector.broadcast %50 : vector<1x64x64xf32> to vector<2x64x64xf32>
    %52 = arith.addf %47, %51 : vector<2x64x64xf32>
    %53 = arith.addf %52, %15 : vector<2x64x64xf32>
    %cst_25 = arith.constant dense<0xFF800000> : vector<2x64xf32>
    %54 = vector.multi_reduction <maximumf>, %53, %cst_25 [2] : vector<2x64x64xf32> to vector<2x64xf32>
    %55 = vector.shape_cast %54 : vector<2x64xf32> to vector<2x64x1xf32>
    %56 = vector.broadcast %55 : vector<2x64x1xf32> to vector<2x64x64xf32>
    %57 = arith.subf %53, %56 : vector<2x64x64xf32>
    %58 = math.exp %57 : vector<2x64x64xf32>
    %cst_26 = arith.constant dense<0.000000e+00> : vector<2x64xf32>
    %59 = vector.multi_reduction <add>, %58, %cst_26 [2] : vector<2x64x64xf32> to vector<2x64xf32>
    %60 = vector.shape_cast %59 : vector<2x64xf32> to vector<2x64x1xf32>
    %61 = vector.broadcast %60 : vector<2x64x1xf32> to vector<2x64x64xf32>
    %62 = arith.divf %58, %61 : vector<2x64x64xf32>
    "tpu.trace_start"() <{level = 10 : i32, message = "blm,bmd->bld"}> : () -> ()
    %cst_27 = arith.constant dense<0.000000e+00> : vector<2x64x32xf32>
    %63 = tpu.matmul %62, %46, %cst_27 {dimension_numbers = #tpu.dot_dimension_numbers<[2], [1], [1], [2], [0, 0, 0, 1, 1, 2], [0], [0]>} : vector<2x64x64xf32>, vector<2x64x32xf32>, vector<2x64x32xf32> -> vector<2x64x32xf32>
    "tpu.trace_stop"() : () -> ()
    %64 = vector.shape_cast %63 : vector<2x64x32xf32> to vector<128x32xf32>
    %c0_28 = arith.constant 0 : index
    %c32 = arith.constant 32 : index
    %65 = vector.load %arg10[%c0_28, %c32] : memref<128x128xf32, #tpu.memory_space<vmem>>, vector<128x32xf32>
    tpu.vector_store %arg10[%c0_28, %c32], %64 {strides = array<i32>} : memref<128x128xf32, #tpu.memory_space<vmem>>, vector<128x32xf32>,
    %66 = vector.extract_strided_slice %9 {offsets = [0, 64], sizes = [128, 32], strides = [1, 1]} : vector<128x128xf32> to vector<128x32xf32>
    %67 = vector.shape_cast %66 : vector<128x32xf32> to vector<2x64x32xf32>
    %68 = vector.extract_strided_slice %10 {offsets = [0, 64], sizes = [128, 32], strides = [1, 1]} : vector<128x128xf32> to vector<128x32xf32>
    %69 = vector.shape_cast %68 : vector<128x32xf32> to vector<2x64x32xf32>
    %70 = vector.extract_strided_slice %14 {offsets = [0, 64], sizes = [128, 32], strides = [1, 1]} : vector<128x128xf32> to vector<128x32xf32>
    %71 = vector.shape_cast %70 : vector<128x32xf32> to vector<2x64x32xf32>
    "tpu.trace_start"() <{level = 10 : i32, message = "bld,bmd->blm"}> : () -> ()
    %cst_29 = arith.constant dense<0.000000e+00> : vector<2x64x64xf32>
    %72 = tpu.matmul %67, %69, %cst_29 {dimension_numbers = #tpu.dot_dimension_numbers<[2], [2], [1], [1], [0, 0, 0, 1, 1, 1], [0], [0]>} : vector<2x64x32xf32>, vector<2x64x32xf32>, vector<2x64x64xf32> -> vector<2x64x64xf32>
    "tpu.trace_stop"() : () -> ()
    %c2 = arith.constant 2 : index
    %c0_30 = arith.constant 0 : index
    %c0_31 = arith.constant 0 : index
    %73 = vector.load %arg4[%c2, %c0_30, %c0_31] : memref<4x64x64xf32, #tpu.memory_space<vmem>>, vector<1x64x64xf32>
    %74 = vector.shape_cast %73 : vector<1x64x64xf32> to vector<64x64xf32>
    %75 = vector.shape_cast %74 : vector<64x64xf32> to vector<1x64x64xf32>
    %76 = vector.broadcast %75 : vector<1x64x64xf32> to vector<2x64x64xf32>
    %77 = arith.addf %72, %76 : vector<2x64x64xf32>
    %78 = arith.addf %77, %15 : vector<2x64x64xf32>
    %cst_32 = arith.constant dense<0xFF800000> : vector<2x64xf32>
    %79 = vector.multi_reduction <maximumf>, %78, %cst_32 [2] : vector<2x64x64xf32> to vector<2x64xf32>
    %80 = vector.shape_cast %79 : vector<2x64xf32> to vector<2x64x1xf32>
    %81 = vector.broadcast %80 : vector<2x64x1xf32> to vector<2x64x64xf32>
    %82 = arith.subf %78, %81 : vector<2x64x64xf32>
    %83 = math.exp %82 : vector<2x64x64xf32>
    %cst_33 = arith.constant dense<0.000000e+00> : vector<2x64xf32>
    %84 = vector.multi_reduction <add>, %83, %cst_33 [2] : vector<2x64x64xf32> to vector<2x64xf32>
    %85 = vector.shape_cast %84 : vector<2x64xf32> to vector<2x64x1xf32>
    %86 = vector.broadcast %85 : vector<2x64x1xf32> to vector<2x64x64xf32>
    %87 = arith.divf %83, %86 : vector<2x64x64xf32>
    "tpu.trace_start"() <{level = 10 : i32, message = "blm,bmd->bld"}> : () -> ()
    %cst_34 = arith.constant dense<0.000000e+00> : vector<2x64x32xf32>
    %88 = tpu.matmul %87, %71, %cst_34 {dimension_numbers = #tpu.dot_dimension_numbers<[2], [1], [1], [2], [0, 0, 0, 1, 1, 2], [0], [0]>} : vector<2x64x64xf32>, vector<2x64x32xf32>, vector<2x64x32xf32> -> vector<2x64x32xf32>
    "tpu.trace_stop"() : () -> ()
    %89 = vector.shape_cast %88 : vector<2x64x32xf32> to vector<128x32xf32>
    %c0_35 = arith.constant 0 : index
    %c64 = arith.constant 64 : index
    %90 = vector.load %arg10[%c0_35, %c64] : memref<128x128xf32, #tpu.memory_space<vmem>>, vector<128x32xf32>
    tpu.vector_store %arg10[%c0_35, %c64], %89 {strides = array<i32>} : memref<128x128xf32, #tpu.memory_space<vmem>>, vector<128x32xf32>,
    %91 = vector.extract_strided_slice %9 {offsets = [0, 96], sizes = [128, 32], strides = [1, 1]} : vector<128x128xf32> to vector<128x32xf32>
    %92 = vector.shape_cast %91 : vector<128x32xf32> to vector<2x64x32xf32>
    %93 = vector.extract_strided_slice %10 {offsets = [0, 96], sizes = [128, 32], strides = [1, 1]} : vector<128x128xf32> to vector<128x32xf32>
    %94 = vector.shape_cast %93 : vector<128x32xf32> to vector<2x64x32xf32>
    %95 = vector.extract_strided_slice %14 {offsets = [0, 96], sizes = [128, 32], strides = [1, 1]} : vector<128x128xf32> to vector<128x32xf32>
    %96 = vector.shape_cast %95 : vector<128x32xf32> to vector<2x64x32xf32>
    "tpu.trace_start"() <{level = 10 : i32, message = "bld,bmd->blm"}> : () -> ()
    %cst_36 = arith.constant dense<0.000000e+00> : vector<2x64x64xf32>
    %97 = tpu.matmul %92, %94, %cst_36 {dimension_numbers = #tpu.dot_dimension_numbers<[2], [2], [1], [1], [0, 0, 0, 1, 1, 1], [0], [0]>} : vector<2x64x32xf32>, vector<2x64x32xf32>, vector<2x64x64xf32> -> vector<2x64x64xf32>
    "tpu.trace_stop"() : () -> ()
    %c3 = arith.constant 3 : index
    %c0_37 = arith.constant 0 : index
    %c0_38 = arith.constant 0 : index
    %98 = vector.load %arg4[%c3, %c0_37, %c0_38] : memref<4x64x64xf32, #tpu.memory_space<vmem>>, vector<1x64x64xf32>
    %99 = vector.shape_cast %98 : vector<1x64x64xf32> to vector<64x64xf32>
    %100 = vector.shape_cast %99 : vector<64x64xf32> to vector<1x64x64xf32>
    %101 = vector.broadcast %100 : vector<1x64x64xf32> to vector<2x64x64xf32>
    %102 = arith.addf %97, %101 : vector<2x64x64xf32>
    %103 = arith.addf %102, %15 : vector<2x64x64xf32>
    %cst_39 = arith.constant dense<0xFF800000> : vector<2x64xf32>
    %104 = vector.multi_reduction <maximumf>, %103, %cst_39 [2] : vector<2x64x64xf32> to vector<2x64xf32>
    %105 = vector.shape_cast %104 : vector<2x64xf32> to vector<2x64x1xf32>
    %106 = vector.broadcast %105 : vector<2x64x1xf32> to vector<2x64x64xf32>
    %107 = arith.subf %103, %106 : vector<2x64x64xf32>
    %108 = math.exp %107 : vector<2x64x64xf32>
    %cst_40 = arith.constant dense<0.000000e+00> : vector<2x64xf32>
    %109 = vector.multi_reduction <add>, %108, %cst_40 [2] : vector<2x64x64xf32> to vector<2x64xf32>
    %110 = vector.shape_cast %109 : vector<2x64xf32> to vector<2x64x1xf32>
    %111 = vector.broadcast %110 : vector<2x64x1xf32> to vector<2x64x64xf32>
    %112 = arith.divf %108, %111 : vector<2x64x64xf32>
    "tpu.trace_start"() <{level = 10 : i32, message = "blm,bmd->bld"}> : () -> ()
    %cst_41 = arith.constant dense<0.000000e+00> : vector<2x64x32xf32>
    %113 = tpu.matmul %112, %96, %cst_41 {dimension_numbers = #tpu.dot_dimension_numbers<[2], [1], [1], [2], [0, 0, 0, 1, 1, 2], [0], [0]>} : vector<2x64x64xf32>, vector<2x64x32xf32>, vector<2x64x32xf32> -> vector<2x64x32xf32>
    "tpu.trace_stop"() : () -> ()
    %114 = vector.shape_cast %113 : vector<2x64x32xf32> to vector<128x32xf32>
    %c0_42 = arith.constant 0 : index
    %c96 = arith.constant 96 : index
    %115 = vector.load %arg10[%c0_42, %c96] : memref<128x128xf32, #tpu.memory_space<vmem>>, vector<128x32xf32>
    tpu.vector_store %arg10[%c0_42, %c96], %114 {strides = array<i32>} : memref<128x128xf32, #tpu.memory_space<vmem>>, vector<128x32xf32>,
    %c0_43 = arith.constant 0 : index
    %c0_44 = arith.constant 0 : index
    %116 = vector.load %arg10[%c0_43, %c0_44] : memref<128x128xf32, #tpu.memory_space<vmem>>, vector<128x128xf32>
    %c0_45 = arith.constant 0 : index
    %c0_46 = arith.constant 0 : index
    %117 = vector.load %arg7[%c0_45, %c0_46] : memref<128x128xf32, #tpu.memory_space<vmem>>, vector<128x128xf32>
    %cst_47 = arith.constant dense<0.000000e+00> : vector<128x128xf32>
    %118 = tpu.matmul %116, %117, %cst_47 {dimension_numbers = #tpu.dot_dimension_numbers<[1], [0], [0], [1], [0, 0, 1, 1], [], []>} : vector<128x128xf32>, vector<128x128xf32>, vector<128x128xf32> -> vector<128x128xf32>
    %c0_48 = arith.constant 0 : index
    %c0_49 = arith.constant 0 : index
    %119 = vector.load %arg8[%c0_48, %c0_49] : memref<1x128xf32, #tpu.memory_space<vmem>>, vector<1x128xf32>
    %120 = vector.broadcast %119 : vector<1x128xf32> to vector<128x128xf32>
    %121 = arith.addf %118, %120 : vector<128x128xf32>
    %122 = vector.shape_cast %121 : vector<128x128xf32> to vector<2x64x128xf32>
    %c0_50 = arith.constant 0 : index
    %c0_51 = arith.constant 0 : index
    %c0_52 = arith.constant 0 : index
    %123 = vector.load %arg9[%c0_50, %c0_51, %c0_52] : memref<2x64x128xf32, #tpu.memory_space<vmem>>, vector<2x64x128xf32>
    tpu.vector_store %arg9[%c0_50, %c0_51, %c0_52], %122 {strides = array<i32>} : memref<2x64x128xf32, #tpu.memory_space<vmem>>, vector<2x64x128xf32>,
    return
  }
  func.func @transform_0(%arg0: i32) -> (i32, i32, i32) {
    %c0_i32 = arith.constant 0 : i32
    %c0_i32_0 = arith.constant 0 : i32
    %c0_i32_1 = arith.constant 0 : i32
    return %arg0, %c0_i32, %c0_i32_0 : i32, i32, i32
  }
  func.func @transform_1(%arg0: i32) -> (i32, i32, i32) {
    %c0_i32 = arith.constant 0 : i32
    %c0_i32_0 = arith.constant 0 : i32
    %c0_i32_1 = arith.constant 0 : i32
    return %arg0, %c0_i32, %c0_i32_0 : i32, i32, i32
  }
  func.func @transform_2(%arg0: i32) -> (i32, i32, i32) {
    %c0_i32 = arith.constant 0 : i32
    %c0_i32_0 = arith.constant 0 : i32
    %c0_i32_1 = arith.constant 0 : i32
    return %arg0, %c0_i32, %c0_i32_0 : i32, i32, i32
  }
  func.func @transform_3(%arg0: i32) -> (i32, i32, i32) {
    %c0_i32 = arith.constant 0 : i32
    %c0_i32_0 = arith.constant 0 : i32
    %c0_i32_1 = arith.constant 0 : i32
    %c0_i32_2 = arith.constant 0 : i32
    return %c0_i32, %c0_i32_0, %c0_i32_1 : i32, i32, i32
  }
  func.func @transform_4(%arg0: i32) -> (i32, i32) {
    %c0_i32 = arith.constant 0 : i32
    %c0_i32_0 = arith.constant 0 : i32
    %c0_i32_1 = arith.constant 0 : i32
    return %c0_i32, %c0_i32_0 : i32, i32
  }
  func.func @transform_5(%arg0: i32) -> (i32, i32) {
    %c0_i32 = arith.constant 0 : i32
    %c0_i32_0 = arith.constant 0 : i32
    %c0_i32_1 = arith.constant 0 : i32
    return %c0_i32, %c0_i32_0 : i32, i32
  }
  func.func @transform_6(%arg0: i32) -> (i32, i32) {
    %c0_i32 = arith.constant 0 : i32
    %c0_i32_0 = arith.constant 0 : i32
    %c0_i32_1 = arith.constant 0 : i32
    return %c0_i32, %c0_i32_0 : i32, i32
  }
  func.func @transform_7(%arg0: i32) -> (i32, i32) {
    %c0_i32 = arith.constant 0 : i32
    %c0_i32_0 = arith.constant 0 : i32
    %c0_i32_1 = arith.constant 0 : i32
    return %c0_i32, %c0_i32_0 : i32, i32
  }
  func.func @transform_8(%arg0: i32) -> (i32, i32, i32) {
    %c0_i32 = arith.constant 0 : i32
    %c0_i32_0 = arith.constant 0 : i32
    %c0_i32_1 = arith.constant 0 : i32
    return %arg0, %c0_i32, %c0_i32_0 : i32, i32, i32
  }
}

</mosaic_0001>

<llo_original>
// kernel: window_attention_pallas.1
$region0: #{window_attention_pallas.1}
  #allocation0 [shape = 'u32[]', space=smem, size = 0x4, offset = 0x4, fixed_abs, tag = 'smem constant byte address 0x4 - core index']
  #allocation1 [shape = 'u32[144,128]{1,0:T(1,128)}', space=vmem, size = 0x12000, scoped, tag = 'internal scratch']
  #allocation2 [shape = 'f32[128,128]{1,0:T(8,128)}', space=vmem, size = 0x10000, scoped, tag = 'scratch operand']
  %s0 = inlined_call_operand.hbm [shape: f32[4,64,128], index: 0, kind: input, shape index: {}]
  %s1 = inlined_call_operand.hbm [shape: f32[4,64,128], index: 1, kind: input, shape index: {}]
  %s2 = inlined_call_operand.hbm [shape: f32[4,64,64], index: 2, kind: input, shape index: {}]
  %s3 = inlined_call_operand.hbm [shape: f32[4,64,64], index: 3, kind: input, shape index: {}]
  %s4 = inlined_call_operand.hbm [shape: f32[128,384], index: 4, kind: input, shape index: {}]
  %s5 = inlined_call_operand.hbm [shape: f32[1,384], index: 5, kind: input, shape index: {}]
  %s6 = inlined_call_operand.hbm [shape: f32[128,128], index: 6, kind: input, shape index: {}]
  %s7 = inlined_call_operand.hbm [shape: f32[1,128], index: 7, kind: input, shape index: {}]
  %s8 = inlined_call_operand.hbm [shape: f32[4,64,128], index: 8, kind: output, shape index: {}]
  %s9 = sld [smem:[#allocation0]]
  $region97: #{window_attention_pallas.1} parent=0
    _
  %s11 = ssub.s32 1, %s9
  %s12 = scalar_select 0, %s11, %s9
  $region1: #{window_attention_pallas.1} parent=0
    #allocation3 [shape = 'u8[131072]{0}', space=vmem, size = 0x20000, scoped, tag = 'input window, operand 0']
    #allocation4 [shape = 's32[2]{0}', space=sflag, size = 0x8, scoped, tag = 'scoped memory for window_attention_pallas.1']
    #allocation5 [shape = 's32[2]{0}', space=sflag, size = 0x8, scoped, tag = 'scoped memory for window_attention_pallas.1']
    #allocation6 [shape = 'u8[131072]{0}', space=vmem, size = 0x20000, scoped, tag = 'input window, operand 1']
    #allocation7 [shape = 's32[2]{0}', space=sflag, size = 0x8, scoped, tag = 'scoped memory for window_attention_pallas.1']
    #allocation8 [shape = 'u8[131072]{0}', space=vmem, size = 0x20000, scoped, tag = 'input window, operand 2']
    #allocation9 [shape = 'u8[131072]{0}', space=vmem, size = 0x20000, scoped, tag = 'input window, operand 3, single buffered']
    #allocation10 [shape = 's32[1]{0}', space=sflag, size = 0x4, scoped, tag = 'scoped memory for window_attention_pallas.1']
    #allocation11 [shape = 'u8[196608]{0}', space=vmem, size = 0x30000, scoped, tag = 'input window, operand 4, single buffered']
    #allocation12 [shape = 'u8[1536]{0}', space=vmem, size = 0x800, scoped, tag = 'input window, operand 5, single buffered']
    #allocation13 [shape = 's32[1]{0}', space=sflag, size = 0x4, scoped, tag = 'scoped memory for window_attention_pallas.1']
    #allocation14 [shape = 'u8[65536]{0}', space=vmem, size = 0x10000, scoped, tag = 'input window, operand 6, single buffered']
    #allocation15 [shape = 'u8[512]{0}', space=vmem, size = 0x400, scoped, tag = 'input window, operand 7, single buffered']
    #allocation16 [shape = 's32[1]{0}', space=sflag, size = 0x4, scoped, tag = 'scoped memory for window_attention_pallas.1']
    #allocation17 [shape = 'u8[131072]{0}', space=vmem, size = 0x20000, scoped, tag = 'output window, operand 0']
    %13 = vsyncpa [#allocation4], 0
    %s14 = scalar_lea.sflag [#allocation4], 1
    %15 = vsyncpa %s14, 0
    %16 = vsyncpa [#allocation7], 0
    %s17 = scalar_lea.sflag [#allocation7], 1
    %18 = vsyncpa %s17, 0
    %19 = vsyncpa [#allocation10], 0
    %20 = vsyncpa [#allocation13], 0
    %21 = vsyncpa [#allocation16], 0
    %22 = vsyncpa [#allocation5], 0
    %s23 = scalar_lea.sflag [#allocation5], 1
    %24 = vsyncpa %s23, 0
    loop: start=0, step=1, limit=4
    $region2: #{window_attention_pallas.1} parent=1 // loop_pre_header
      _
    $region3: #{window_attention_pallas.1} parent=1 // loop_header
      %s26 = sphi 0, %s30
      %p27 = scmp.ge.s32.totalorder %s26, 4
      %s36 = sphi 0, %s38
      %s39 = sphi 0, %s36
      %s40 = sphi 0, %s39
      %s56 = sphi 0, %s40
      %s62 = sphi 0, %s64
      %s65 = sphi 0, %s62
      %s66 = sphi 0, %s65
      %s82 = sphi 0, %s66
      %s88 = sphi 0, %s90
      %s91 = sphi 0, %s88
      %s92 = sphi 0, %s91
      %s108 = sphi 0, %s92
      %s112 = sphi 0, %s112
      %s114 = sphi 0, %s112
      %s115 = sphi 0, %s114
      %s129 = sphi 0, %s115
      %s133 = sphi 0, %s133
      %s135 = sphi 0, %s133
      %s136 = sphi 0, %s135
      %s150 = sphi 0, %s136
      %s154 = sphi 0, %s154
      %s156 = sphi 0, %s154
      %s157 = sphi 0, %s156
      %s171 = sphi 0, %s157
      %s175 = sphi 0, %s175
      %s177 = sphi 0, %s175
      %s178 = sphi 0, %s177
      %s192 = sphi 0, %s178
      %s196 = sphi 0, %s196
      %s198 = sphi 0, %s196
      %s199 = sphi 0, %s198
      %s213 = sphi 0, %s199
      %s219 = sphi 0, %s221
      %s222 = sphi 0, %s219
      %s223 = sphi 0, %s222
      %s239 = sphi 0, %s223
    $region4: #{window_attention_pallas.1} parent=1 // loop_header_branch
      %29 = sbr.rel (%p27) target = $region8
    $region5: #{window_attention_pallas.1} parent=1 // loop_body
      %s31 = ssub.s32 %s26, 1
      %s32 = ssub.s32 %s26, 2
      %s33 = sadd.s32 %s26, 1
      %s34 = ssub.s32 %s26, %s33
      %p35 = scmp.eq.s32.totalorder %s34, 0
      %s37 = sadd.s32 %s36, 1
      %s38 = scalar_select %p35, %s36, %s37
      %p41 = pneg %p35
      %p42 = scmp.eq.s32.totalorder %s26, 1
      %p43 = por %p41, %p42
      %p44 = scmp.ne.s32.totalorder %s36, %s39
      %p45 = scmp.eq.s32.totalorder %s26, 0
      %p46 = por %p44, %p45
      %p47 = scmp.ne.s32.totalorder %s36, %s39
      %p48 = scmp.eq.s32.totalorder %s31, 1
      %p49 = por %p47, %p48
      %p50 = scmp.ne.s32.totalorder %s39, %s40
      %p51 = scmp.eq.s32.totalorder %s31, 0
      %p52 = por %p50, %p51
      %p53 = scmp.ne.s32.totalorder %s39, %s40
      %p54 = scmp.eq.s32.totalorder %s32, 1
      %p55 = por %p53, %p54
      %p57 = scmp.ne.s32.totalorder %s40, %s56
      %p58 = scmp.eq.s32.totalorder %s32, 0
      %p59 = por %p57, %p58
      %s60 = ssub.s32 %s26, %s33
      %p61 = scmp.eq.s32.totalorder %s60, 0
      %s63 = sadd.s32 %s62, 1
      %s64 = scalar_select %p61, %s62, %s63
      %p67 = pneg %p61
      %p68 = scmp.eq.s32.totalorder %s26, 1
      %p69 = por %p67, %p68
      %p70 = scmp.ne.s32.totalorder %s62, %s65
      %p71 = scmp.eq.s32.totalorder %s26, 0
      %p72 = por %p70, %p71
      %p73 = scmp.ne.s32.totalorder %s62, %s65
      %p74 = scmp.eq.s32.totalorder %s31, 1
      %p75 = por %p73, %p74
      %p76 = scmp.ne.s32.totalorder %s65, %s66
      %p77 = scmp.eq.s32.totalorder %s31, 0
      %p78 = por %p76, %p77
      %p79 = scmp.ne.s32.totalorder %s65, %s66
      %p80 = scmp.eq.s32.totalorder %s32, 1
      %p81 = por %p79, %p80
      %p83 = scmp.ne.s32.totalorder %s66, %s82
      %p84 = scmp.eq.s32.totalorder %s32, 0
      %p85 = por %p83, %p84
      %s86 = ssub.s32 %s26, %s33
      %p87 = scmp.eq.s32.totalorder %s86, 0
      %s89 = sadd.s32 %s88, 1
      %s90 = scalar_select %p87, %s88, %s89
      %p93 = pneg %p87
      %p94 = scmp.eq.s32.totalorder %s26, 1
      %p95 = por %p93, %p94
      %p96 = scmp.ne.s32.totalorder %s88, %s91
      %p97 = scmp.eq.s32.totalorder %s26, 0
      %p98 = por %p96, %p97
      %p99 = scmp.ne.s32.totalorder %s88, %s91
      %p100 = scmp.eq.s32.totalorder %s31, 1
      %p101 = por %p99, %p100
      %p102 = scmp.ne.s32.totalorder %s91, %s92
      %p103 = scmp.eq.s32.totalorder %s31, 0
      %p104 = por %p102, %p103
      %p105 = scmp.ne.s32.totalorder %s91, %s92
      %p106 = scmp.eq.s32.totalorder %s32, 1
      %p107 = por %p105, %p106
      %p109 = scmp.ne.s32.totalorder %s92, %s108
      %p110 = scmp.eq.s32.totalorder %s32, 0
      %p111 = por %p109, %p110
      %s113 = sadd.s32 %s112, 1
      %p116 = scmp.eq.s32.totalorder %s26, 1
      %p117 = scmp.ne.s32.totalorder %s112, %s114
      %p118 = scmp.eq.s32.totalorder %s26, 0
      %p119 = por %p117, %p118
      %p120 = scmp.ne.s32.totalorder %s112, %s114
      %p121 = scmp.eq.s32.totalorder %s31, 1
      %p122 = por %p120, %p121
      %p123 = scmp.ne.s32.totalorder %s114, %s115
      %p124 = scmp.eq.s32.totalorder %s31, 0
      %p125 = por %p123, %p124
      %p126 = scmp.ne.s32.totalorder %s114, %s115
      %p127 = scmp.eq.s32.totalorder %s32, 1
      %p128 = por %p126, %p127
      %p130 = scmp.ne.s32.totalorder %s115, %s129
      %p131 = scmp.eq.s32.totalorder %s32, 0
      %p132 = por %p130, %p131
      %s134 = sadd.s32 %s133, 1
      %p137 = scmp.eq.s32.totalorder %s26, 1
      %p138 = scmp.ne.s32.totalorder %s133, %s135
      %p139 = scmp.eq.s32.totalorder %s26, 0
      %p140 = por %p138, %p139
      %p141 = scmp.ne.s32.totalorder %s133, %s135
      %p142 = scmp.eq.s32.totalorder %s31, 1
      %p143 = por %p141, %p142
      %p144 = scmp.ne.s32.totalorder %s135, %s136
      %p145 = scmp.eq.s32.totalorder %s31, 0
      %p146 = por %p144, %p145
      %p147 = scmp.ne.s32.totalorder %s135, %s136
      %p148 = scmp.eq.s32.totalorder %s32, 1
      %p149 = por %p147, %p148
      %p151 = scmp.ne.s32.totalorder %s136, %s150
      %p152 = scmp.eq.s32.totalorder %s32, 0
      %p153 = por %p151, %p152
      %s155 = sadd.s32 %s154, 1
      %p158 = scmp.eq.s32.totalorder %s26, 1
      %p159 = scmp.ne.s32.totalorder %s154, %s156
      %p160 = scmp.eq.s32.totalorder %s26, 0
      %p161 = por %p159, %p160
      %p162 = scmp.ne.s32.totalorder %s154, %s156
      %p163 = scmp.eq.s32.totalorder %s31, 1
      %p164 = por %p162, %p163
      %p165 = scmp.ne.s32.totalorder %s156, %s157
      %p166 = scmp.eq.s32.totalorder %s31, 0
      %p167 = por %p165, %p166
      %p168 = scmp.ne.s32.totalorder %s156, %s157
      %p169 = scmp.eq.s32.totalorder %s32, 1
      %p170 = por %p168, %p169
      %p172 = scmp.ne.s32.totalorder %s157, %s171
      %p173 = scmp.eq.s32.totalorder %s32, 0
      %p174 = por %p172, %p173
      %s176 = sadd.s32 %s175, 1
      %p179 = scmp.eq.s32.totalorder %s26, 1
      %p180 = scmp.ne.s32.totalorder %s175, %s177
      %p181 = scmp.eq.s32.totalorder %s26, 0
      %p182 = por %p180, %p181
      %p183 = scmp.ne.s32.totalorder %s175, %s177
      %p184 = scmp.eq.s32.totalorder %s31, 1
      %p185 = por %p183, %p184
      %p186 = scmp.ne.s32.totalorder %s177, %s178
      %p187 = scmp.eq.s32.totalorder %s31, 0
      %p188 = por %p186, %p187
      %p189 = scmp.ne.s32.totalorder %s177, %s178
      %p190 = scmp.eq.s32.totalorder %s32, 1
      %p191 = por %p189, %p190
      %p193 = scmp.ne.s32.totalorder %s178, %s192
      %p194 = scmp.eq.s32.totalorder %s32, 0
      %p195 = por %p193, %p194
      %s197 = sadd.s32 %s196, 1
      %p200 = scmp.eq.s32.totalorder %s26, 1
      %p201 = scmp.ne.s32.totalorder %s196, %s198
      %p202 = scmp.eq.s32.totalorder %s26, 0
      %p203 = por %p201, %p202
      %p204 = scmp.ne.s32.totalorder %s196, %s198
      %p205 = scmp.eq.s32.totalorder %s31, 1
      %p206 = por %p204, %p205
      %p207 = scmp.ne.s32.totalorder %s198, %s199
      %p208 = scmp.eq.s32.totalorder %s31, 0
      %p209 = por %p207, %p208
      %p210 = scmp.ne.s32.totalorder %s198, %s199
      %p211 = scmp.eq.s32.totalorder %s32, 1
      %p212 = por %p210, %p211
      %p214 = scmp.ne.s32.totalorder %s199, %s213
      %p215 = scmp.eq.s32.totalorder %s32, 0
      %p216 = por %p214, %p215
      %s217 = ssub.s32 %s26, %s33
      %p218 = scmp.eq.s32.totalorder %s217, 0
      %s220 = sadd.s32 %s219, 1
      %s221 = scalar_select %p218, %s219, %s220
      %p224 = pneg %p218
      %p225 = scmp.eq.s32.totalorder %s26, 1
      %p226 = por %p224, %p225
      %p227 = scmp.ne.s32.totalorder %s219, %s222
      %p228 = scmp.eq.s32.totalorder %s26, 0
      %p229 = por %p227, %p228
      %p230 = scmp.ne.s32.totalorder %s219, %s222
      %p231 = scmp.eq.s32.totalorder %s31, 1
      %p232 = por %p230, %p231
      %p233 = scmp.ne.s32.totalorder %s222, %s223
      %p234 = scmp.eq.s32.totalorder %s31, 0
      %p235 = por %p233, %p234
      %p236 = scmp.ne.s32.totalorder %s222, %s223
      %p237 = scmp.eq.s32.totalorder %s32, 1
      %p238 = por %p236, %p237
      %p240 = scmp.ne.s32.totalorder %s223, %s239
      %p241 = scmp.eq.s32.totalorder %s32, 0
      %p242 = por %p240, %p241
      %p243 = scmp.le.s32.totalorder 1, %s26
      %p244 = scmp.lt.s32.totalorder %s26, 3
      %p245 = pnand %p243, %p244
      %p246 = pneg %p245
      // Predicated region
      $region9: #{window_attention_pallas.1} parent=5 // pred_check
        _
      $region10: #{window_attention_pallas.1} parent=5 // pred_check_branch
        %248 = sbr.rel (%p245) target = $region12
      $region11: #{window_attention_pallas.1} parent=5 // pred_region
        %s249 = ssub.s32 %s26, 1
        // Predicated region
        $region13: #{window_attention_pallas.1} parent=11 // pred_check
          %p250 = pneg %p125
        $region14: #{window_attention_pallas.1} parent=11 // pred_check_branch
          %252 = sbr.rel (%p250) target = $region16
        $region15: #{window_attention_pallas.1} parent=11 // pred_region
          %s254 = ssub.s32 4096, 4096
          %255 = vsyncadd [#allocation10], %s254
          %s256 = sshll.u32 [#allocation9], 4
          %s257 = int_to_ptr.vmem [resolvable:$true] %s256
          %262 = dma.hbm_to_vmem [thread:$0]  %s3, 4096, %s257, [#allocation10], 128, 128, 8
        $region16: #{window_attention_pallas.1} parent=11 // pred_fallthru
          _
        // Predicated region
        $region17: #{window_attention_pallas.1} parent=11 // pred_check
          %p263 = pneg %p146
        $region18: #{window_attention_pallas.1} parent=11 // pred_check_branch
          %265 = sbr.rel (%p263) target = $region20
        $region19: #{window_attention_pallas.1} parent=11 // pred_region
          %s267 = ssub.s32 6144, 6144
          %268 = vsyncadd [#allocation10], %s267
          %s269 = sshll.u32 [#allocation11], 4
          %s270 = int_to_ptr.vmem [resolvable:$true] %s269
          %275 = dma.hbm_to_vmem [thread:$0]  %s4, 6144, %s270, [#allocation10], 384, 384, 24
        $region20: #{window_attention_pallas.1} parent=11 // pred_fallthru
          _
        // Predicated region
        $region21: #{window_attention_pallas.1} parent=11 // pred_check
          %p276 = pneg %p167
        $region22: #{window_attention_pallas.1} parent=11 // pred_check_branch
          %278 = sbr.rel (%p276) target = $region24
        $region23: #{window_attention_pallas.1} parent=11 // pred_region
          %s280 = ssub.s32 48, 48
          %281 = vsyncadd [#allocation13], %s280
          %s283 = sshll.u32 [#allocation12], 4
          %s284 = int_to_ptr.vmem [resolvable:$true] %s283
          %286 = dma.hbm_to_vmem [thread:$0]  %s5, 48, %s284, [#allocation13]
        $region24: #{window_attention_pallas.1} parent=11 // pred_fallthru
          _
        // Predicated region
        $region25: #{window_attention_pallas.1} parent=11 // pred_check
          %p287 = pneg %p188
        $region26: #{window_attention_pallas.1} parent=11 // pred_check_branch
          %289 = sbr.rel (%p287) target = $region28
        $region27: #{window_attention_pallas.1} parent=11 // pred_region
          %s291 = ssub.s32 2048, 2048
          %292 = vsyncadd [#allocation13], %s291
          %s293 = sshll.u32 [#allocation14], 4
          %s294 = int_to_ptr.vmem [resolvable:$true] %s293
          %299 = dma.hbm_to_vmem [thread:$0]  %s6, 2048, %s294, [#allocation13], 128, 128, 8
        $region28: #{window_attention_pallas.1} parent=11 // pred_fallthru
          _
        // Predicated region
        $region29: #{window_attention_pallas.1} parent=11 // pred_check
          %p300 = pneg %p209
        $region30: #{window_attention_pallas.1} parent=11 // pred_check_branch
          %302 = sbr.rel (%p300) target = $region32
        $region31: #{window_attention_pallas.1} parent=11 // pred_region
          %s304 = ssub.s32 16, 16
          %305 = vsyncadd [#allocation16], %s304
          %s307 = sshll.u32 [#allocation15], 4
          %s308 = int_to_ptr.vmem [resolvable:$true] %s307
          %310 = dma.hbm_to_vmem [thread:$0]  %s7, 16, %s308, [#allocation16]
        $region32: #{window_attention_pallas.1} parent=11 // pred_fallthru
          _
      $region12: #{window_attention_pallas.1} parent=5 // pred_fallthru
        _
      %p311 = scmp.lt.s32.totalorder %s26, 2
      // Predicated region
      $region33: #{window_attention_pallas.1} parent=5 // pred_check
        %p312 = pneg %p311
      $region34: #{window_attention_pallas.1} parent=5 // pred_check_branch
        %314 = sbr.rel (%p312) target = $region36
      $region35: #{window_attention_pallas.1} parent=5 // pred_region
        // Predicated region
        $region37: #{window_attention_pallas.1} parent=35 // pred_check
          %p315 = pneg %p46
        $region38: #{window_attention_pallas.1} parent=35 // pred_check_branch
          %317 = sbr.rel (%p315) target = $region40
        $region39: #{window_attention_pallas.1} parent=35 // pred_region
          %s318 = sand.u32 %s36, 1
          %s319 = scalar_lea.sflag [#allocation4], %s318
          %s320 = sand.u32 %s36, 1
          %s321 = smul.addr %s320, 128
          %s322 = scalar_lea.vmem [#allocation3], %s321
          %s323 = smul.u32 2, %s26
          %s325 = ssub.s32 2048, 2048
          %326 = vsyncadd %s319, %s325
          %s327 = smul.addr %s323, 8
          %s328 = smul.addr %s327, 128
          %s329 = scalar_lea.hbm %s0, %s328
          %s330 = sshll.u32 %s322, 4
          %s331 = int_to_ptr.vmem [resolvable:$true] %s330
          %336 = dma.hbm_to_vmem [thread:$0]  %s329, 2048, %s331, %s319, 128, 128, 8
        $region40: #{window_attention_pallas.1} parent=35 // pred_fallthru
          _
        // Predicated region
        $region41: #{window_attention_pallas.1} parent=35 // pred_check
          %p337 = pneg %p72
        $region42: #{window_attention_pallas.1} parent=35 // pred_check_branch
          %339 = sbr.rel (%p337) target = $region44
        $region43: #{window_attention_pallas.1} parent=35 // pred_region
          %s340 = sand.u32 %s26, 1
          %s341 = scalar_lea.sflag [#allocation7], %s340
          %s342 = sand.u32 %s62, 1
          %s343 = smul.addr %s342, 128
          %s344 = scalar_lea.vmem [#allocation6], %s343
          %s345 = smul.u32 2, %s26
          %s347 = ssub.s32 2048, 2048
          %348 = vsyncadd %s341, %s347
          %s349 = smul.addr %s345, 8
          %s350 = smul.addr %s349, 128
          %s351 = scalar_lea.hbm %s1, %s350
          %s352 = sshll.u32 %s344, 4
          %s353 = int_to_ptr.vmem [resolvable:$true] %s352
          %358 = dma.hbm_to_vmem [thread:$0]  %s351, 2048, %s353, %s341, 128, 128, 8
        $region44: #{window_attention_pallas.1} parent=35 // pred_fallthru
          _
        // Predicated region
        $region45: #{window_attention_pallas.1} parent=35 // pred_check
          %p359 = pneg %p98
        $region46: #{window_attention_pallas.1} parent=35 // pred_check_branch
          %361 = sbr.rel (%p359) target = $region48
        $region47: #{window_attention_pallas.1} parent=35 // pred_region
          %s362 = sand.u32 %s26, 1
          %s363 = scalar_lea.sflag [#allocation7], %s362
          %s364 = sand.u32 %s88, 1
          %s365 = smul.addr %s364, 128
          %s366 = scalar_lea.vmem [#allocation8], %s365
          %s367 = smul.u32 2, %s26
          %s369 = ssub.s32 2048, 2048
          %370 = vsyncadd %s363, %s369
          %s371 = smul.addr %s367, 8
          %s372 = smul.addr %s371, 128
          %s373 = scalar_lea.hbm %s2, %s372
          %s374 = sshll.u32 %s366, 4
          %s375 = int_to_ptr.vmem [resolvable:$true] %s374
          %380 = dma.hbm_to_vmem [thread:$0]  %s373, 2048, %s375, %s363, 128, 128, 8
        $region48: #{window_attention_pallas.1} parent=35 // pred_fallthru
          _
      $region36: #{window_attention_pallas.1} parent=5 // pred_fallthru
        _
      %p381 = scmp.le.s32.totalorder 1, %s26
      %p382 = scmp.lt.s32.totalorder %s26, 3
      %p383 = pnand %p381, %p382
      %p384 = pneg %p383
      // Predicated region
      $region49: #{window_attention_pallas.1} parent=5 // pred_check
        _
      $region50: #{window_attention_pallas.1} parent=5 // pred_check_branch
        %386 = sbr.rel (%p383) target = $region52
      $region51: #{window_attention_pallas.1} parent=5 // pred_region
        %s387 = ssub.s32 %s26, 1
        %s388 = sand.u32 %s39, 1
        %s389 = scalar_lea.sflag [#allocation4], %s388
        %s390 = sand.u32 %s39, 1
        %s391 = smul.addr %s390, 128
        %s392 = scalar_lea.vmem [#allocation3], %s391
        // Predicated region
        $region53: #{window_attention_pallas.1} parent=51 // pred_check
          %p393 = pneg %p52
        $region54: #{window_attention_pallas.1} parent=51 // pred_check_branch
          %395 = sbr.rel (%p393) target = $region56
        $region55: #{window_attention_pallas.1} parent=51 // pred_region
          %396 = dma.done %s389, 2048
        $region56: #{window_attention_pallas.1} parent=51 // pred_fallthru
          _
        %s397 = sand.u32 %s31, 1
        %s398 = scalar_lea.sflag [#allocation7], %s397
        %s399 = sand.u32 %s65, 1
        %s400 = smul.addr %s399, 128
        %s401 = scalar_lea.vmem [#allocation6], %s400
        // Predicated region
        $region57: #{window_attention_pallas.1} parent=51 // pred_check
          %p402 = pneg %p78
        $region58: #{window_attention_pallas.1} parent=51 // pred_check_branch
          %404 = sbr.rel (%p402) target = $region60
        $region59: #{window_attention_pallas.1} parent=51 // pred_region
          %405 = dma.done %s398, 2048
        $region60: #{window_attention_pallas.1} parent=51 // pred_fallthru
          _
        %s406 = sand.u32 %s31, 1
        %s407 = scalar_lea.sflag [#allocation7], %s406
        %s408 = sand.u32 %s91, 1
        %s409 = smul.addr %s408, 128
        %s410 = scalar_lea.vmem [#allocation8], %s409
        // Predicated region
        $region61: #{window_attention_pallas.1} parent=51 // pred_check
          %p411 = pneg %p104
        $region62: #{window_attention_pallas.1} parent=51 // pred_check_branch
          %413 = sbr.rel (%p411) target = $region64
        $region63: #{window_attention_pallas.1} parent=51 // pred_region
          %414 = dma.done %s407, 2048
        $region64: #{window_attention_pallas.1} parent=51 // pred_fallthru
          _
        // Predicated region
        $region65: #{window_attention_pallas.1} parent=51 // pred_check
          %p415 = pneg %p125
        $region66: #{window_attention_pallas.1} parent=51 // pred_check_branch
          %417 = sbr.rel (%p415) target = $region68
        $region67: #{window_attention_pallas.1} parent=51 // pred_region
          %418 = dma.done [#allocation10], 4096
        $region68: #{window_attention_pallas.1} parent=51 // pred_fallthru
          _
        // Predicated region
        $region69: #{window_attention_pallas.1} parent=51 // pred_check
          %p419 = pneg %p146
        $region70: #{window_attention_pallas.1} parent=51 // pred_check_branch
          %421 = sbr.rel (%p419) target = $region72
        $region71: #{window_attention_pallas.1} parent=51 // pred_region
          %422 = dma.done [#allocation10], 6144
        $region72: #{window_attention_pallas.1} parent=51 // pred_fallthru
          _
        // Predicated region
        $region73: #{window_attention_pallas.1} parent=51 // pred_check
          %p423 = pneg %p167
        $region74: #{window_attention_pallas.1} parent=51 // pred_check_branch
          %425 = sbr.rel (%p423) target = $region76
        $region75: #{window_attention_pallas.1} parent=51 // pred_region
          %426 = dma.done [#allocation13], 48
        $region76: #{window_attention_pallas.1} parent=51 // pred_fallthru
          _
        // Predicated region
        $region77: #{window_attention_pallas.1} parent=51 // pred_check
          %p427 = pneg %p188
        $region78: #{window_attention_pallas.1} parent=51 // pred_check_branch
          %429 = sbr.rel (%p427) target = $region80
        $region79: #{window_attention_pallas.1} parent=51 // pred_region
          %430 = dma.done [#allocation13], 2048
        $region80: #{window_attention_pallas.1} parent=51 // pred_fallthru
          _
        // Predicated region
        $region81: #{window_attention_pallas.1} parent=51 // pred_check
          %p431 = pneg %p209
        $region82: #{window_attention_pallas.1} parent=51 // pred_check_branch
          %433 = sbr.rel (%p431) target = $region84
        $region83: #{window_attention_pallas.1} parent=51 // pred_region
          %434 = dma.done [#allocation16], 16
        $region84: #{window_attention_pallas.1} parent=51 // pred_fallthru
          _
        %s435 = sand.u32 %s39, 1
        %s436 = scalar_lea.sflag [#allocation4], %s435
        %s437 = sand.u32 %s39, 1
        %s438 = smul.addr %s437, 128
        %s439 = scalar_lea.vmem [#allocation3], %s438
        %p440 = pneg %p52
        %p441 = pneg %p49
        %s442 = sand.u32 %s31, 1
        %s443 = scalar_lea.sflag [#allocation7], %s442
        %s444 = sand.u32 %s65, 1
        %s445 = smul.addr %s444, 128
        %s446 = scalar_lea.vmem [#allocation6], %s445
        %p447 = pneg %p78
        %p448 = pneg %p75
        %s449 = sand.u32 %s31, 1
        %s450 = scalar_lea.sflag [#allocation7], %s449
        %s451 = sand.u32 %s91, 1
        %s452 = smul.addr %s451, 128
        %s453 = scalar_lea.vmem [#allocation8], %s452
        %p454 = pneg %p104
        %p455 = pneg %p101
        %p456 = pneg %p125
        %p457 = pneg %p122
        %p458 = pneg %p146
        %p459 = pneg %p143
        %p460 = pneg %p167
        %p461 = pneg %p164
        %p462 = pneg %p188
        %p463 = pneg %p185
        %p464 = pneg %p209
        %p465 = pneg %p206
        %p466 = pneg %p235
        %p467 = pneg %p232
        %s468 = sand.u32 %s222, 1
        %s469 = scalar_lea.sflag [#allocation5], %s468
        %s470 = sand.u32 %s222, 1
        %s471 = smul.addr %s470, 128
        %s472 = scalar_lea.vmem [#allocation17], %s471
        %s473 = smul.u32 2, %s31
        %s474 = smul.u32 2, %s31
        %s475 = smul.u32 2, %s31
        %s476 = smul.u32 2, %s31
        %v477 = vld [vmem:[%s392] sm:$0xff]
        %v478 = vld [vmem:[%s392 + $0x8] sm:$0xff]
        %v479 = vld [vmem:[%s392 + $0x10] sm:$0xff]
        %v480 = vld [vmem:[%s392 + $0x18] sm:$0xff]
        %v481 = vld [vmem:[%s392 + $0x20] sm:$0xff]
        %v482 = vld [vmem:[%s392 + $0x28] sm:$0xff]
        %v483 = vld [vmem:[%s392 + $0x30] sm:$0xff]
        %v484 = vld [vmem:[%s392 + $0x38] sm:$0xff]
        %v485 = vld [vmem:[%s392 + $0x40] sm:$0xff]
        %v486 = vld [vmem:[%s392 + $0x48] sm:$0xff]
        %v487 = vld [vmem:[%s392 + $0x50] sm:$0xff]
        %v488 = vld [vmem:[%s392 + $0x58] sm:$0xff]
        %v489 = vld [vmem:[%s392 + $0x60] sm:$0xff]
        %v490 = vld [vmem:[%s392 + $0x68] sm:$0xff]
        %v491 = vld [vmem:[%s392 + $0x70] sm:$0xff]
        %v492 = vld [vmem:[%s392 + $0x78] sm:$0xff]
        %v493 = vld [vmem:[#allocation11] sm:$0xff]
        %v494 = vld [vmem:[#allocation11 + $0x8] sm:$0xff]
        %v495 = vld [vmem:[#allocation11 + $0x10] sm:$0xff]
        %v496 = vld [vmem:[#allocation11 + $0x18] sm:$0xff]
        %v497 = vld [vmem:[#allocation11 + $0x20] sm:$0xff]
        %v498 = vld [vmem:[#allocation11 + $0x28] sm:$0xff]
        %v499 = vld [vmem:[#allocation11 + $0x30] sm:$0xff]
        %v500 = vld [vmem:[#allocation11 + $0x38] sm:$0xff]
        %v501 = vld [vmem:[#allocation11 + $0x40] sm:$0xff]
        %v502 = vld [vmem:[#allocation11 + $0x48] sm:$0xff]
        %v503 = vld [vmem:[#allocation11 + $0x50] sm:$0xff]
        %v504 = vld [vmem:[#allocation11 + $0x58] sm:$0xff]
        %v505 = vld [vmem:[#allocation11 + $0x60] sm:$0xff]
        %v506 = vld [vmem:[#allocation11 + $0x68] sm:$0xff]
        %v507 = vld [vmem:[#allocation11 + $0x70] sm:$0xff]
        %v508 = vld [vmem:[#allocation11 + $0x78] sm:$0xff]
        %v509 = vld [vmem:[#allocation11 + $0x80] sm:$0xff]
        %v510 = vld [vmem:[#allocation11 + $0x88] sm:$0xff]
        %v511 = vld [vmem:[#allocation11 + $0x90] sm:$0xff]
        %v512 = vld [vmem:[#allocation11 + $0x98] sm:$0xff]
        %v513 = vld [vmem:[#allocation11 + $0xa0] sm:$0xff]
        %v514 = vld [vmem:[#allocation11 + $0xa8] sm:$0xff]
        %v515 = vld [vmem:[#allocation11 + $0xb0] sm:$0xff]
        %v516 = vld [vmem:[#allocation11 + $0xb8] sm:$0xff]
        %v517 = vld [vmem:[#allocation11 + $0xc0] sm:$0xff]
        %v518 = vld [vmem:[#allocation11 + $0xc8] sm:$0xff]
        %v519 = vld [vmem:[#allocation11 + $0xd0] sm:$0xff]
        %v520 = vld [vmem:[#allocation11 + $0xd8] sm:$0xff]
        %v521 = vld [vmem:[#allocation11 + $0xe0] sm:$0xff]
        %v522 = vld [vmem:[#allocation11 + $0xe8] sm:$0xff]
        %v523 = vld [vmem:[#allocation11 + $0xf0] sm:$0xff]
        %v524 = vld [vmem:[#allocation11 + $0xf8] sm:$0xff]
        %v525 = vld [vmem:[#allocation11 + $0x100] sm:$0xff]
        %v526 = vld [vmem:[#allocation11 + $0x108] sm:$0xff]
        %v527 = vld [vmem:[#allocation11 + $0x110] sm:$0xff]
        %v528 = vld [vmem:[#allocation11 + $0x118] sm:$0xff]
        %v529 = vld [vmem:[#allocation11 + $0x120] sm:$0xff]
        %v530 = vld [vmem:[#allocation11 + $0x128] sm:$0xff]
        %v531 = vld [vmem:[#allocation11 + $0x130] sm:$0xff]
        %v532 = vld [vmem:[#allocation11 + $0x138] sm:$0xff]
        %v533 = vld [vmem:[#allocation11 + $0x140] sm:$0xff]
        %v534 = vld [vmem:[#allocation11 + $0x148] sm:$0xff]
        %v535 = vld [vmem:[#allocation11 + $0x150] sm:$0xff]
        %v536 = vld [vmem:[#allocation11 + $0x158] sm:$0xff]
        %v537 = vld [vmem:[#allocation11 + $0x160] sm:$0xff]
        %v538 = vld [vmem:[#allocation11 + $0x168] sm:$0xff]
        %v539 = vld [vmem:[#allocation11 + $0x170] sm:$0xff]
        %v540 = vld [vmem:[#allocation11 + $0x178] sm:$0xff]
        %v541 = vld [vmem:[#allocation12] sm:$0x7]
        %v543 = vlaneseq
        %v544 = vshrl.u32 %v543, 7
        %v545 = vsub.s32 0, %v544
        %v546 = vrot.slane %v541, %v545
        %v547 = vlaneseq
        %v548 = vshrl.u32 %v547, 7
        %v549 = vsub.s32 1, %v548
        %v550 = vrot.slane %v541, %v549
        %v551 = vlaneseq
        %v552 = vshrl.u32 %v551, 7
        %v553 = vsub.s32 2, %v552
        %v554 = vrot.slane %v541, %v553
        %558 = vmatprep.subr.mxu0 %v494
        %559 = vmatpush1.msra.mxu0 %v493
        %560 = vmatprep.subr.mxu0 %v497
        %561 = vmatpush1.msra.mxu0 %v496
        %562 = vmatprep.subr.mxu0 %v500
        %563 = vmatpush1.msra.mxu0 %v499
        %564 = vmatprep.subr.mxu0 %v503
        %565 = vmatpush1.msra.mxu0 %v502
        %566 = vmatprep.subr.mxu0 %v506
        %567 = vmatpush1.msra.mxu0 %v505
        %568 = vmatprep.subr.mxu0 %v509
        %569 = vmatpush1.msra.mxu0 %v508
        %570 = vmatprep.subr.mxu0 %v512
        %571 = vmatpush1.msra.mxu0 %v511
        %572 = vmatprep.subr.mxu0 %v515
        %573 = vmatpush1.msra.mxu0 %v514
        %574 = vmatprep.subr.mxu0 %v518
        %575 = vmatpush1.msra.mxu0 %v517
        %576 = vmatprep.subr.mxu0 %v521
        %577 = vmatpush1.msra.mxu0 %v520
        %578 = vmatprep.subr.mxu0 %v524
        %579 = vmatpush1.msra.mxu0 %v523
        %580 = vmatprep.subr.mxu0 %v527
        %581 = vmatpush1.msra.mxu0 %v526
        %582 = vmatprep.subr.mxu0 %v530
        %583 = vmatpush1.msra.mxu0 %v529
        %584 = vmatprep.subr.mxu0 %v533
        %585 = vmatpush1.msra.mxu0 %v532
        %586 = vmatprep.subr.mxu0 %v536
        %587 = vmatpush1.msra.mxu0 %v535
        %588 = vmatprep.subr.mxu0 %v539
        %589 = vmatpush1.msra.mxu0 %v538
        %590 = vmatprep.subr.mxu0 0.0
        %591 = vmatpush1.msra.mxu0 0.0
        %592 = vmatprep.subr.mxu0 0.0
        %593 = vmatpush1.msra.mxu0 0.0
        %594 = vmatprep.subr.mxu0 0.0
        %595 = vmatpush1.msra.mxu0 0.0
        %596 = vmatprep.subr.mxu0 0.0
        %597 = vmatpush1.msra.mxu0 0.0
        %598 = vmatprep.subr.mxu0 0.0
        %599 = vmatpush1.msra.mxu0 0.0
        %600 = vmatprep.subr.mxu0 0.0
        %601 = vmatpush1.msra.mxu0 0.0
        %602 = vmatprep.subr.mxu0 0.0
        %603 = vmatpush1.msra.mxu0 0.0
        %604 = vmatprep.subr.mxu0 0.0
        %605 = vmatpush1.msra.mxu0 0.0
        %606 = vmatprep.subr.mxu0 0.0
        %607 = vmatpush1.msra.mxu0 0.0
        %608 = vmatprep.subr.mxu0 0.0
        %609 = vmatpush1.msra.mxu0 0.0
        %610 = vmatprep.subr.mxu0 0.0
        %611 = vmatpush1.msra.mxu0 0.0
        %612 = vmatprep.subr.mxu0 0.0
        %613 = vmatpush1.msra.mxu0 0.0
        %614 = vmatprep.subr.mxu0 0.0
        %615 = vmatpush1.msra.mxu0 0.0
        %616 = vmatprep.subr.mxu0 0.0
        %617 = vmatpush1.msra.mxu0 0.0
        %618 = vmatprep.subr.mxu0 0.0
        %619 = vmatpush1.msra.mxu0 0.0
        %620 = vmatprep.subr.mxu0 0.0
        %621 = vmatpush1.msra.mxu0 0.0
        %622 = vmatprep.mubr.f32.mxu0 0.0
        %623 = vmatmul.mubr.f32.gmra.mrb[0].mxu0 %v477
        %v624 = vpop.f32.mrb[0].mxu0
        %v625 = vadd.f32 %v546, %v624
        %v626 = vpop.f32.mrb[0].mxu0
        %v627 = vadd.f32 %v550, %v626
        %628 = vmatprep.mubr.f32.mxu0 0.0
        %629 = vmatmul.mubr.f32.gmra.mrb[0].mxu0 %v478
        %v630 = vpop.f32.mrb[0].mxu0
        %v631 = vadd.f32 %v546, %v630
        %v632 = vpop.f32.mrb[0].mxu0
        %v633 = vadd.f32 %v550, %v632
        %634 = vmatprep.mubr.f32.mxu0 0.0
        %635 = vmatmul.mubr.f32.gmra.mrb[0].mxu0 %v479
        %v636 = vpop.f32.mrb[0].mxu0
        %v637 = vadd.f32 %v546, %v636
        %v638 = vpop.f32.mrb[0].mxu0
        %v639 = vadd.f32 %v550, %v638
        %640 = vmatprep.mubr.f32.mxu0 0.0
        %641 = vmatmul.mubr.f32.gmra.mrb[0].mxu0 %v480
        %v642 = vpop.f32.mrb[0].mxu0
        %v643 = vadd.f32 %v546, %v642
        %v644 = vpop.f32.mrb[0].mxu0
        %v645 = vadd.f32 %v550, %v644
        %646 = vmatprep.mubr.f32.mxu0 0.0
        %647 = vmatmul.mubr.f32.gmra.mrb[0].mxu0 %v481
        %v648 = vpop.f32.mrb[0].mxu0
        %v649 = vadd.f32 %v546, %v648
        %v650 = vpop.f32.mrb[0].mxu0
        %v651 = vadd.f32 %v550, %v650
        %652 = vmatprep.mubr.f32.mxu0 0.0
        %653 = vmatmul.mubr.f32.gmra.mrb[0].mxu0 %v482
        %v654 = vpop.f32.mrb[0].mxu0
        %v655 = vadd.f32 %v546, %v654
        %v656 = vpop.f32.mrb[0].mxu0
        %v657 = vadd.f32 %v550, %v656
        %658 = vmatprep.mubr.f32.mxu0 0.0
        %659 = vmatmul.mubr.f32.gmra.mrb[0].mxu0 %v483
        %v660 = vpop.f32.mrb[0].mxu0
        %v661 = vadd.f32 %v546, %v660
        %v662 = vpop.f32.mrb[0].mxu0
        %v663 = vadd.f32 %v550, %v662
        %664 = vmatprep.mubr.f32.mxu0 0.0
        %665 = vmatmul.mubr.f32.gmra.mrb[0].mxu0 %v484
        %v666 = vpop.f32.mrb[0].mxu0
        %v667 = vadd.f32 %v546, %v666
        %v668 = vpop.f32.mrb[0].mxu0
        %v669 = vadd.f32 %v550, %v668
        %670 = vmatprep.mubr.f32.mxu0 0.0
        %671 = vmatmul.mubr.f32.gmra.mrb[0].mxu0 %v485
        %v672 = vpop.f32.mrb[0].mxu0
        %v673 = vadd.f32 %v546, %v672
        %v674 = vpop.f32.mrb[0].mxu0
        %v675 = vadd.f32 %v550, %v674
        %676 = vmatprep.mubr.f32.mxu0 0.0
        %677 = vmatmul.mubr.f32.gmra.mrb[0].mxu0 %v486
        %v678 = vpop.f32.mrb[0].mxu0
        %v679 = vadd.f32 %v546, %v678
        %v680 = vpop.f32.mrb[0].mxu0
        %v681 = vadd.f32 %v550, %v680
        %682 = vmatprep.mubr.f32.mxu0 0.0
        %683 = vmatmul.mubr.f32.gmra.mrb[0].mxu0 %v487
        %v684 = vpop.f32.mrb[0].mxu0
        %v685 = vadd.f32 %v546, %v684
        %v686 = vpop.f32.mrb[0].mxu0
        %v687 = vadd.f32 %v550, %v686
        %688 = vmatprep.mubr.f32.mxu0 0.0
        %689 = vmatmul.mubr.f32.gmra.mrb[0].mxu0 %v488
        %v690 = vpop.f32.mrb[0].mxu0
        %v691 = vadd.f32 %v546, %v690
        %v692 = vpop.f32.mrb[0].mxu0
        %v693 = vadd.f32 %v550, %v692
        %694 = vmatprep.mubr.f32.mxu0 0.0
        %695 = vmatmul.mubr.f32.gmra.mrb[0].mxu0 %v489
        %v696 = vpop.f32.mrb[0].mxu0
        %v697 = vadd.f32 %v546, %v696
        %v698 = vpop.f32.mrb[0].mxu0
        %v699 = vadd.f32 %v550, %v698
        %700 = vmatprep.mubr.f32.mxu0 0.0
        %701 = vmatmul.mubr.f32.gmra.mrb[0].mxu0 %v490
        %v702 = vpop.f32.mrb[0].mxu0
        %v703 = vadd.f32 %v546, %v702
        %v704 = vpop.f32.mrb[0].mxu0
        %v705 = vadd.f32 %v550, %v704
        %706 = vmatprep.mubr.f32.mxu0 0.0
        %707 = vmatmul.mubr.f32.gmra.mrb[0].mxu0 %v491
        %v708 = vpop.f32.mrb[0].mxu0
        %v709 = vadd.f32 %v546, %v708
        %v710 = vpop.f32.mrb[0].mxu0
        %v711 = vadd.f32 %v550, %v710
        %712 = vmatprep.mubr.f32.mxu0 0.0
        %713 = vmatmul.mubr.f32.gmra.mrb[0].mxu0 %v492
        %v714 = vpop.f32.mrb[0].mxu0
        %v715 = vadd.f32 %v546, %v714
        %v716 = vpop.f32.mrb[0].mxu0
        %v717 = vadd.f32 %v550, %v716
        %718 = vdwg.mxu0
        %719 = vmatprep.subr.mxu0 0.0
        %720 = vmatpush1.msra.mxu0 %v495
        %721 = vmatprep.subr.mxu0 0.0
        %722 = vmatpush1.msra.mxu0 %v498
        %723 = vmatprep.subr.mxu0 0.0
        %724 = vmatpush1.msra.mxu0 %v501
        %725 = vmatprep.subr.mxu0 0.0
        %726 = vmatpush1.msra.mxu0 %v504
        %727 = vmatprep.subr.mxu0 0.0
        %728 = vmatpush1.msra.mxu0 %v507
        %729 = vmatprep.subr.mxu0 0.0
        %730 = vmatpush1.msra.mxu0 %v510
        %731 = vmatprep.subr.mxu0 0.0
        %732 = vmatpush1.msra.mxu0 %v513
        %733 = vmatprep.subr.mxu0 0.0
        %734 = vmatpush1.msra.mxu0 %v516
        %735 = vmatprep.subr.mxu0 0.0
        %736 = vmatpush1.msra.mxu0 %v519
        %737 = vmatprep.subr.mxu0 0.0
        %738 = vmatpush1.msra.mxu0 %v522
        %739 = vmatprep.subr.mxu0 0.0
        %740 = vmatpush1.msra.mxu0 %v525
        %741 = vmatprep.subr.mxu0 0.0
        %742 = vmatpush1.msra.mxu0 %v528
        %743 = vmatprep.subr.mxu0 0.0
        %744 = vmatpush1.msra.mxu0 %v531
        %745 = vmatprep.subr.mxu0 0.0
        %746 = vmatpush1.msra.mxu0 %v534
        %747 = vmatprep.subr.mxu0 0.0
        %748 = vmatpush1.msra.mxu0 %v537
        %749 = vmatprep.subr.mxu0 0.0
        %750 = vmatpush1.msra.mxu0 %v540
        %751 = vmatprep.subr.mxu0 0.0
        %752 = vmatpush1.msra.mxu0 0.0
        %753 = vmatprep.subr.mxu0 0.0
        %754 = vmatpush1.msra.mxu0 0.0
        %755 = vmatprep.subr.mxu0 0.0
        %756 = vmatpush1.msra.mxu0 0.0
        %757 = vmatprep.subr.mxu0 0.0
        %758 = vmatpush1.msra.mxu0 0.0
        %759 = vmatprep.subr.mxu0 0.0
        %760 = vmatpush1.msra.mxu0 0.0
        %761 = vmatprep.subr.mxu0 0.0
        %762 = vmatpush1.msra.mxu0 0.0
        %763 = vmatprep.subr.mxu0 0.0
        %764 = vmatpush1.msra.mxu0 0.0
        %765 = vmatprep.subr.mxu0 0.0
        %766 = vmatpush1.msra.mxu0 0.0
        %767 = vmatprep.subr.mxu0 0.0
        %768 = vmatpush1.msra.mxu0 0.0
        %769 = vmatprep.subr.mxu0 0.0
        %770 = vmatpush1.msra.mxu0 0.0
        %771 = vmatprep.subr.mxu0 0.0
        %772 = vmatpush1.msra.mxu0 0.0
        %773 = vmatprep.subr.mxu0 0.0
        %774 = vmatpush1.msra.mxu0 0.0
        %775 = vmatprep.subr.mxu0 0.0
        %776 = vmatpush1.msra.mxu0 0.0
        %777 = vmatprep.subr.mxu0 0.0
        %778 = vmatpush1.msra.mxu0 0.0
        %779 = vmatprep.subr.mxu0 0.0
        %780 = vmatpush1.msra.mxu0 0.0
        %781 = vmatprep.subr.mxu0 0.0
        %782 = vmatpush1.msra.mxu0 0.0
        %783 = vmatprep.mubr.f32.mxu0 0.0
        %784 = vmatmul.mubr.f32.gmra.mrb[0].mxu0 %v477
        %v785 = vpop.f32.mrb[0].mxu0
        %v786 = vadd.f32 %v554, %v785
        %v787 = vpop.f32.mrb[0].mxu0
        %788 = vmatprep.mubr.f32.mxu0 0.0
        %789 = vmatmul.mubr.f32.gmra.mrb[0].mxu0 %v478
        %v790 = vpop.f32.mrb[0].mxu0
        %v791 = vadd.f32 %v554, %v790
        %v792 = vpop.f32.mrb[0].mxu0
        %793 = vmatprep.mubr.f32.mxu0 0.0
        %794 = vmatmul.mubr.f32.gmra.mrb[0].mxu0 %v479
        %v795 = vpop.f32.mrb[0].mxu0
        %v796 = vadd.f32 %v554, %v795
        %v797 = vpop.f32.mrb[0].mxu0
        %798 = vmatprep.mubr.f32.mxu0 0.0
        %799 = vmatmul.mubr.f32.gmra.mrb[0].mxu0 %v480
        %v800 = vpop.f32.mrb[0].mxu0
        %v801 = vadd.f32 %v554, %v800
        %v802 = vpop.f32.mrb[0].mxu0
        %803 = vmatprep.mubr.f32.mxu0 0.0
        %804 = vmatmul.mubr.f32.gmra.mrb[0].mxu0 %v481
        %v805 = vpop.f32.mrb[0].mxu0
        %v806 = vadd.f32 %v554, %v805
        %v807 = vpop.f32.mrb[0].mxu0
        %808 = vmatprep.mubr.f32.mxu0 0.0
        %809 = vmatmul.mubr.f32.gmra.mrb[0].mxu0 %v482
        %v810 = vpop.f32.mrb[0].mxu0
        %v811 = vadd.f32 %v554, %v810
        %v812 = vpop.f32.mrb[0].mxu0
        %813 = vmatprep.mubr.f32.mxu0 0.0
        %814 = vmatmul.mubr.f32.gmra.mrb[0].mxu0 %v483
        %v815 = vpop.f32.mrb[0].mxu0
        %v816 = vadd.f32 %v554, %v815
        %v817 = vpop.f32.mrb[0].mxu0
        %818 = vmatprep.mubr.f32.mxu0 0.0
        %819 = vmatmul.mubr.f32.gmra.mrb[0].mxu0 %v484
        %v820 = vpop.f32.mrb[0].mxu0
        %v821 = vadd.f32 %v554, %v820
        %v822 = vpop.f32.mrb[0].mxu0
        %823 = vmatprep.mubr.f32.mxu0 0.0
        %824 = vmatmul.mubr.f32.gmra.mrb[0].mxu0 %v485
        %v825 = vpop.f32.mrb[0].mxu0
        %v826 = vadd.f32 %v554, %v825
        %v827 = vpop.f32.mrb[0].mxu0
        %828 = vmatprep.mubr.f32.mxu0 0.0
        %829 = vmatmul.mubr.f32.gmra.mrb[0].mxu0 %v486
        %v830 = vpop.f32.mrb[0].mxu0
        %v831 = vadd.f32 %v554, %v830
        %v832 = vpop.f32.mrb[0].mxu0
        %833 = vmatprep.mubr.f32.mxu0 0.0
        %834 = vmatmul.mubr.f32.gmra.mrb[0].mxu0 %v487
        %v835 = vpop.f32.mrb[0].mxu0
        %v836 = vadd.f32 %v554, %v835
        %v837 = vpop.f32.mrb[0].mxu0
        %838 = vmatprep.mubr.f32.mxu0 0.0
        %839 = vmatmul.mubr.f32.gmra.mrb[0].mxu0 %v488
        %v840 = vpop.f32.mrb[0].mxu0
        %v841 = vadd.f32 %v554, %v840
        %v842 = vpop.f32.mrb[0].mxu0
        %843 = vmatprep.mubr.f32.mxu0 0.0
        %844 = vmatmul.mubr.f32.gmra.mrb[0].mxu0 %v489
        %v845 = vpop.f32.mrb[0].mxu0
        %v846 = vadd.f32 %v554, %v845
        %v847 = vpop.f32.mrb[0].mxu0
        %848 = vmatprep.mubr.f32.mxu0 0.0
        %849 = vmatmul.mubr.f32.gmra.mrb[0].mxu0 %v490
        %v850 = vpop.f32.mrb[0].mxu0
        %v851 = vadd.f32 %v554, %v850
        %v852 = vpop.f32.mrb[0].mxu0
        %853 = vmatprep.mubr.f32.mxu0 0.0
        %854 = vmatmul.mubr.f32.gmra.mrb[0].mxu0 %v491
        %v855 = vpop.f32.mrb[0].mxu0
        %v856 = vadd.f32 %v554, %v855
        %v857 = vpop.f32.mrb[0].mxu0
        %858 = vmatprep.mubr.f32.mxu0 0.0
        %859 = vmatmul.mubr.f32.gmra.mrb[0].mxu0 %v492
        %v860 = vpop.f32.mrb[0].mxu0
        %v861 = vadd.f32 %v554, %v860
        %v862 = vpop.f32.mrb[0].mxu0
        %863 = vdwg.mxu0
        %v864 = vmul.f32 %v625, 0.17677669
        %v865 = vmul.f32 %v631, 0.17677669
        %v866 = vmul.f32 %v637, 0.17677669
        %v867 = vmul.f32 %v643, 0.17677669
        %v868 = vmul.f32 %v649, 0.17677669
        %v869 = vmul.f32 %v655, 0.17677669
        %v870 = vmul.f32 %v661, 0.17677669
        %v871 = vmul.f32 %v667, 0.17677669
        %v872 = vmul.f32 %v673, 0.17677669
        %v873 = vmul.f32 %v679, 0.17677669
        %v874 = vmul.f32 %v685, 0.17677669
        %v875 = vmul.f32 %v691, 0.17677669
        %v876 = vmul.f32 %v697, 0.17677669
        %v877 = vmul.f32 %v703, 0.17677669
        %v878 = vmul.f32 %v709, 0.17677669
        %v879 = vmul.f32 %v715, 0.17677669
        %v880 = vld [vmem:[%s401] sm:$0xff]
        %v881 = vld [vmem:[%s401 + $0x8] sm:$0xff]
        %v882 = vld [vmem:[%s401 + $0x10] sm:$0xff]
        %v883 = vld [vmem:[%s401 + $0x18] sm:$0xff]
        %v884 = vld [vmem:[%s401 + $0x20] sm:$0xff]
        %v885 = vld [vmem:[%s401 + $0x28] sm:$0xff]
        %v886 = vld [vmem:[%s401 + $0x30] sm:$0xff]
        %v887 = vld [vmem:[%s401 + $0x38] sm:$0xff]
        %v888 = vld [vmem:[%s401 + $0x40] sm:$0xff]
        %v889 = vld [vmem:[%s401 + $0x48] sm:$0xff]
        %v890 = vld [vmem:[%s401 + $0x50] sm:$0xff]
        %v891 = vld [vmem:[%s401 + $0x58] sm:$0xff]
        %v892 = vld [vmem:[%s401 + $0x60] sm:$0xff]
        %v893 = vld [vmem:[%s401 + $0x68] sm:$0xff]
        %v894 = vld [vmem:[%s401 + $0x70] sm:$0xff]
        %v895 = vld [vmem:[%s401 + $0x78] sm:$0xff]
        %v896 = vmul.f32 %v786, %v880
        %v897 = vmul.f32 %v791, %v881
        %v898 = vmul.f32 %v796, %v882
        %v899 = vmul.f32 %v801, %v883
        %v900 = vmul.f32 %v806, %v884
        %v901 = vmul.f32 %v811, %v885
        %v902 = vmul.f32 %v816, %v886
        %v903 = vmul.f32 %v821, %v887
        %v904 = vmul.f32 %v826, %v888
        %v905 = vmul.f32 %v831, %v889
        %v906 = vmul.f32 %v836, %v890
        %v907 = vmul.f32 %v841, %v891
        %v908 = vmul.f32 %v846, %v892
        %v909 = vmul.f32 %v851, %v893
        %v910 = vmul.f32 %v856, %v894
        %v911 = vmul.f32 %v861, %v895
        %v912 = vld [vmem:[%s410] sm:$0xff]
        %v913 = vld [vmem:[%s410 + $0x8] sm:$0xff]
        %v914 = vld [vmem:[%s410 + $0x10] sm:$0xff]
        %v915 = vld [vmem:[%s410 + $0x18] sm:$0xff]
        %v916 = vld [vmem:[%s410 + $0x20] sm:$0xff]
        %v917 = vld [vmem:[%s410 + $0x28] sm:$0xff]
        %v918 = vld [vmem:[%s410 + $0x30] sm:$0xff]
        %v919 = vld [vmem:[%s410 + $0x38] sm:$0xff]
        %v920 = vld [vmem:[%s410 + $0x40] sm:$0xff]
        %v921 = vld [vmem:[%s410 + $0x48] sm:$0xff]
        %v922 = vld [vmem:[%s410 + $0x50] sm:$0xff]
        %v923 = vld [vmem:[%s410 + $0x58] sm:$0xff]
        %v924 = vld [vmem:[%s410 + $0x60] sm:$0xff]
        %v925 = vld [vmem:[%s410 + $0x68] sm:$0xff]
        %v926 = vld [vmem:[%s410 + $0x70] sm:$0xff]
        %v927 = vld [vmem:[%s410 + $0x78] sm:$0xff]
        %v928 = vld [vmem:[#allocation9] sm:$0xff]
        %v929 = vld [vmem:[#allocation9 + $0x8] sm:$0xff]
        %v930 = vld [vmem:[#allocation9 + $0x10] sm:$0xff]
        %v931 = vld [vmem:[#allocation9 + $0x18] sm:$0xff]
        %v932 = vld [vmem:[#allocation9 + $0x20] sm:$0xff]
        %v933 = vld [vmem:[#allocation9 + $0x28] sm:$0xff]
        %v934 = vld [vmem:[#allocation9 + $0x30] sm:$0xff]
        %v935 = vld [vmem:[#allocation9 + $0x38] sm:$0xff]
        %vm936 = vcmask 261120
        %v938 = vsel %vm936, %v864, 0
        %v941 = vsel %vm936, %v865, 0
        %v944 = vsel %vm936, %v866, 0
        %v947 = vsel %vm936, %v867, 0
        %v950 = vsel %vm936, %v868, 0
        %v953 = vsel %vm936, %v869, 0
        %v956 = vsel %vm936, %v870, 0
        %v959 = vsel %vm936, %v871, 0
        %v962 = vsel %vm936, %v627, 0
        %v965 = vsel %vm936, %v633, 0
        %v968 = vsel %vm936, %v639, 0
        %v971 = vsel %vm936, %v645, 0
        %v974 = vsel %vm936, %v651, 0
        %v977 = vsel %vm936, %v657, 0
        %v980 = vsel %vm936, %v663, 0
        %v983 = vsel %vm936, %v669, 0
        %985 = vmatprep.subr.mxu0 0.0
        %986 = vmatpush1.xpose.msra.mxu0 %v962
        %987 = vmatprep.subr.mxu0 0.0
        %988 = vmatpush1.xpose.msra.mxu0 %v965
        %989 = vmatprep.subr.mxu0 0.0
        %990 = vmatpush1.xpose.msra.mxu0 %v968
        %991 = vmatprep.subr.mxu0 0.0
        %992 = vmatpush1.xpose.msra.mxu0 %v971
        %993 = vmatprep.subr.mxu0 0.0
        %994 = vmatpush1.xpose.msra.mxu0 %v974
        %995 = vmatprep.subr.mxu0 0.0
        %996 = vmatpush1.xpose.msra.mxu0 %v977
        %997 = vmatprep.subr.mxu0 0.0
        %998 = vmatpush1.xpose.msra.mxu0 %v980
        %999 = vmatprep.subr.mxu0 0.0
        %1000 = vmatpush1.xpose.msra.mxu0 %v983
        %1001 = vmatprep.subr.mxu0 0.0
        %1002 = vmatpush1.xpose.msra.mxu0 0.0
        %1003 = vmatprep.subr.mxu0 0.0
        %1004 = vmatpush1.xpose.msra.mxu0 0.0
        %1005 = vmatprep.subr.mxu0 0.0
        %1006 = vmatpush1.xpose.msra.mxu0 0.0
        %1007 = vmatprep.subr.mxu0 0.0
        %1008 = vmatpush1.xpose.msra.mxu0 0.0
        %1009 = vmatprep.subr.mxu0 0.0
        %1010 = vmatpush1.xpose.msra.mxu0 0.0
        %1011 = vmatprep.subr.mxu0 0.0
        %1012 = vmatpush1.xpose.msra.mxu0 0.0
        %1013 = vmatprep.subr.mxu0 0.0
        %1014 = vmatpush1.xpose.msra.mxu0 0.0
        %1015 = vmatprep.subr.mxu0 0.0
        %1016 = vmatpush1.xpose.msra.mxu0 0.0
        %1017 = vmatprep.subr.mxu0 0.0
        %1018 = vmatpush1.xpose.msra.mxu0 0.0
        %1019 = vmatprep.subr.mxu0 0.0
        %1020 = vmatpush1.xpose.msra.mxu0 0.0
        %1021 = vmatprep.subr.mxu0 0.0
        %1022 = vmatpush1.xpose.msra.mxu0 0.0
        %1023 = vmatprep.subr.mxu0 0.0
        %1024 = vmatpush1.xpose.msra.mxu0 0.0
        %1025 = vmatprep.subr.mxu0 0.0
        %1026 = vmatpush1.xpose.msra.mxu0 0.0
        %1027 = vmatprep.subr.mxu0 0.0
        %1028 = vmatpush1.xpose.msra.mxu0 0.0
        %1029 = vmatprep.subr.mxu0 0.0
        %1030 = vmatpush1.xpose.msra.mxu0 0.0
        %1031 = vmatprep.subr.mxu0 0.0
        %1032 = vmatpush1.xpose.msra.mxu0 0.0
        %1033 = vmatprep.subr.mxu0 0.0
        %1034 = vmatpush1.xpose.msra.mxu0 0.0
        %1035 = vmatprep.subr.mxu0 0.0
        %1036 = vmatpush1.xpose.msra.mxu0 0.0
        %1037 = vmatprep.subr.mxu0 0.0
        %1038 = vmatpush1.xpose.msra.mxu0 0.0
        %1039 = vmatprep.subr.mxu0 0.0
        %1040 = vmatpush1.xpose.msra.mxu0 0.0
        %1041 = vmatprep.subr.mxu0 0.0
        %1042 = vmatpush1.xpose.msra.mxu0 0.0
        %1043 = vmatprep.subr.mxu0 0.0
        %1044 = vmatpush1.xpose.msra.mxu0 0.0
        %1045 = vmatprep.subr.mxu0 0.0
        %1046 = vmatpush1.xpose.msra.mxu0 0.0
        %1047 = vmatprep.subr.mxu0 0.0
        %1048 = vmatpush1.xpose.msra.mxu0 0.0
        %1049 = vmatprep.mubr.f32.mxu0 0.0
        %1050 = vmatmul.mubr.f32.gmra.mrb[0].mxu0 %v938
        %v1051 = vpop.f32.mrb[0].mxu0
        %v1052 = vadd.f32 %v928, %v1051
        %v1053 = vpop.f32.mrb[0].mxu0
        %1054 = vmatprep.mubr.f32.mxu0 0.0
        %1055 = vmatmul.mubr.f32.gmra.mrb[0].mxu0 %v941
        %v1056 = vpop.f32.mrb[0].mxu0
        %v1057 = vadd.f32 %v929, %v1056
        %v1058 = vpop.f32.mrb[0].mxu0
        %1059 = vmatprep.mubr.f32.mxu0 0.0
        %1060 = vmatmul.mubr.f32.gmra.mrb[0].mxu0 %v944
        %v1061 = vpop.f32.mrb[0].mxu0
        %v1062 = vadd.f32 %v930, %v1061
        %v1063 = vpop.f32.mrb[0].mxu0
        %1064 = vmatprep.mubr.f32.mxu0 0.0
        %1065 = vmatmul.mubr.f32.gmra.mrb[0].mxu0 %v947
        %v1066 = vpop.f32.mrb[0].mxu0
        %v1067 = vadd.f32 %v931, %v1066
        %v1068 = vpop.f32.mrb[0].mxu0
        %1069 = vmatprep.mubr.f32.mxu0 0.0
        %1070 = vmatmul.mubr.f32.gmra.mrb[0].mxu0 %v950
        %v1071 = vpop.f32.mrb[0].mxu0
        %v1072 = vadd.f32 %v932, %v1071
        %v1073 = vpop.f32.mrb[0].mxu0
        %1074 = vmatprep.mubr.f32.mxu0 0.0
        %1075 = vmatmul.mubr.f32.gmra.mrb[0].mxu0 %v953
        %v1076 = vpop.f32.mrb[0].mxu0
        %v1077 = vadd.f32 %v933, %v1076
        %v1078 = vpop.f32.mrb[0].mxu0
        %1079 = vmatprep.mubr.f32.mxu0 0.0
        %1080 = vmatmul.mubr.f32.gmra.mrb[0].mxu0 %v956
        %v1081 = vpop.f32.mrb[0].mxu0
        %v1082 = vadd.f32 %v934, %v1081
        %v1083 = vpop.f32.mrb[0].mxu0
        %1084 = vmatprep.mubr.f32.mxu0 0.0
        %1085 = vmatmul.mubr.f32.gmra.mrb[0].mxu0 %v959
        %v1086 = vpop.f32.mrb[0].mxu0
        %v1087 = vadd.f32 %v935, %v1086
        %v1088 = vpop.f32.mrb[0].mxu0
        %1089 = vdwg.mxu0
        %v1091 = vsel %vm936, %v872, 0
        %v1094 = vsel %vm936, %v873, 0
        %v1097 = vsel %vm936, %v874, 0
        %v1100 = vsel %vm936, %v875, 0
        %v1103 = vsel %vm936, %v876, 0
        %v1106 = vsel %vm936, %v877, 0
        %v1109 = vsel %vm936, %v878, 0
        %v1112 = vsel %vm936, %v879, 0
        %v1115 = vsel %vm936, %v675, 0
        %v1118 = vsel %vm936, %v681, 0
        %v1121 = vsel %vm936, %v687, 0
        %v1124 = vsel %vm936, %v693, 0
        %v1127 = vsel %vm936, %v699, 0
        %v1130 = vsel %vm936, %v705, 0
        %v1133 = vsel %vm936, %v711, 0
        %v1136 = vsel %vm936, %v717, 0
        %1138 = vmatprep.subr.mxu0 0.0
        %1139 = vmatpush1.xpose.msra.mxu0 %v1115
        %1140 = vmatprep.subr.mxu0 0.0
        %1141 = vmatpush1.xpose.msra.mxu0 %v1118
        %1142 = vmatprep.subr.mxu0 0.0
        %1143 = vmatpush1.xpose.msra.mxu0 %v1121
        %1144 = vmatprep.subr.mxu0 0.0
        %1145 = vmatpush1.xpose.msra.mxu0 %v1124
        %1146 = vmatprep.subr.mxu0 0.0
        %1147 = vmatpush1.xpose.msra.mxu0 %v1127
        %1148 = vmatprep.subr.mxu0 0.0
        %1149 = vmatpush1.xpose.msra.mxu0 %v1130
        %1150 = vmatprep.subr.mxu0 0.0
        %1151 = vmatpush1.xpose.msra.mxu0 %v1133
        %1152 = vmatprep.subr.mxu0 0.0
        %1153 = vmatpush1.xpose.msra.mxu0 %v1136
        %1154 = vmatprep.subr.mxu0 0.0
        %1155 = vmatpush1.xpose.msra.mxu0 0.0
        %1156 = vmatprep.subr.mxu0 0.0
        %1157 = vmatpush1.xpose.msra.mxu0 0.0
        %1158 = vmatprep.subr.mxu0 0.0
        %1159 = vmatpush1.xpose.msra.mxu0 0.0
        %1160 = vmatprep.subr.mxu0 0.0
        %1161 = vmatpush1.xpose.msra.mxu0 0.0
        %1162 = vmatprep.subr.mxu0 0.0
        %1163 = vmatpush1.xpose.msra.mxu0 0.0
        %1164 = vmatprep.subr.mxu0 0.0
        %1165 = vmatpush1.xpose.msra.mxu0 0.0
        %1166 = vmatprep.subr.mxu0 0.0
        %1167 = vmatpush1.xpose.msra.mxu0 0.0
        %1168 = vmatprep.subr.mxu0 0.0
        %1169 = vmatpush1.xpose.msra.mxu0 0.0
        %1170 = vmatprep.subr.mxu0 0.0
        %1171 = vmatpush1.xpose.msra.mxu0 0.0
        %1172 = vmatprep.subr.mxu0 0.0
        %1173 = vmatpush1.xpose.msra.mxu0 0.0
        %1174 = vmatprep.subr.mxu0 0.0
        %1175 = vmatpush1.xpose.msra.mxu0 0.0
        %1176 = vmatprep.subr.mxu0 0.0
        %1177 = vmatpush1.xpose.msra.mxu0 0.0
        %1178 = vmatprep.subr.mxu0 0.0
        %1179 = vmatpush1.xpose.msra.mxu0 0.0
        %1180 = vmatprep.subr.mxu0 0.0
        %1181 = vmatpush1.xpose.msra.mxu0 0.0
        %1182 = vmatprep.subr.mxu0 0.0
        %1183 = vmatpush1.xpose.msra.mxu0 0.0
        %1184 = vmatprep.subr.mxu0 0.0
        %1185 = vmatpush1.xpose.msra.mxu0 0.0
        %1186 = vmatprep.subr.mxu0 0.0
        %1187 = vmatpush1.xpose.msra.mxu0 0.0
        %1188 = vmatprep.subr.mxu0 0.0
        %1189 = vmatpush1.xpose.msra.mxu0 0.0
        %1190 = vmatprep.subr.mxu0 0.0
        %1191 = vmatpush1.xpose.msra.mxu0 0.0
        %1192 = vmatprep.subr.mxu0 0.0
        %1193 = vmatpush1.xpose.msra.mxu0 0.0
        %1194 = vmatprep.subr.mxu0 0.0
        %1195 = vmatpush1.xpose.msra.mxu0 0.0
        %1196 = vmatprep.subr.mxu0 0.0
        %1197 = vmatpush1.xpose.msra.mxu0 0.0
        %1198 = vmatprep.subr.mxu0 0.0
        %1199 = vmatpush1.xpose.msra.mxu0 0.0
        %1200 = vmatprep.subr.mxu0 0.0
        %1201 = vmatpush1.xpose.msra.mxu0 0.0
        %1202 = vmatprep.mubr.f32.mxu0 0.0
        %1203 = vmatmul.mubr.f32.gmra.mrb[0].mxu0 %v1091
        %v1204 = vpop.f32.mrb[0].mxu0
        %v1205 = vadd.f32 %v928, %v1204
        %v1206 = vpop.f32.mrb[0].mxu0
        %1207 = vmatprep.mubr.f32.mxu0 0.0
        %1208 = vmatmul.mubr.f32.gmra.mrb[0].mxu0 %v1094
        %v1209 = vpop.f32.mrb[0].mxu0
        %v1210 = vadd.f32 %v929, %v1209
        %v1211 = vpop.f32.mrb[0].mxu0
        %1212 = vmatprep.mubr.f32.mxu0 0.0
        %1213 = vmatmul.mubr.f32.gmra.mrb[0].mxu0 %v1097
        %v1214 = vpop.f32.mrb[0].mxu0
        %v1215 = vadd.f32 %v930, %v1214
        %v1216 = vpop.f32.mrb[0].mxu0
        %1217 = vmatprep.mubr.f32.mxu0 0.0
        %1218 = vmatmul.mubr.f32.gmra.mrb[0].mxu0 %v1100
        %v1219 = vpop.f32.mrb[0].mxu0
        %v1220 = vadd.f32 %v931, %v1219
        %v1221 = vpop.f32.mrb[0].mxu0
        %1222 = vmatprep.mubr.f32.mxu0 0.0
        %1223 = vmatmul.mubr.f32.gmra.mrb[0].mxu0 %v1103
        %v1224 = vpop.f32.mrb[0].mxu0
        %v1225 = vadd.f32 %v932, %v1224
        %v1226 = vpop.f32.mrb[0].mxu0
        %1227 = vmatprep.mubr.f32.mxu0 0.0
        %1228 = vmatmul.mubr.f32.gmra.mrb[0].mxu0 %v1106
        %v1229 = vpop.f32.mrb[0].mxu0
        %v1230 = vadd.f32 %v933, %v1229
        %v1231 = vpop.f32.mrb[0].mxu0
        %1232 = vmatprep.mubr.f32.mxu0 0.0
        %1233 = vmatmul.mubr.f32.gmra.mrb[0].mxu0 %v1109
        %v1234 = vpop.f32.mrb[0].mxu0
        %v1235 = vadd.f32 %v934, %v1234
        %v1236 = vpop.f32.mrb[0].mxu0
        %1237 = vmatprep.mubr.f32.mxu0 0.0
        %1238 = vmatmul.mubr.f32.gmra.mrb[0].mxu0 %v1112
        %v1239 = vpop.f32.mrb[0].mxu0
        %v1240 = vadd.f32 %v935, %v1239
        %v1241 = vpop.f32.mrb[0].mxu0
        %1242 = vdwg.mxu0
        %v1243 = vadd.f32 %v1052, %v912
        %v1244 = vadd.f32 %v1057, %v913
        %v1245 = vadd.f32 %v1062, %v914
        %v1246 = vadd.f32 %v1067, %v915
        %v1247 = vadd.f32 %v1072, %v916
        %v1248 = vadd.f32 %v1077, %v917
        %v1249 = vadd.f32 %v1082, %v918
        %v1250 = vadd.f32 %v1087, %v919
        %v1251 = vadd.f32 %v1205, %v920
        %v1252 = vadd.f32 %v1210, %v921
        %v1253 = vadd.f32 %v1215, %v922
        %v1254 = vadd.f32 %v1220, %v923
        %v1255 = vadd.f32 %v1225, %v924
        %v1256 = vadd.f32 %v1230, %v925
        %v1257 = vadd.f32 %v1235, %v926
        %v1258 = vadd.f32 %v1240, %v927
        %vm1259 = vcmask 523264
        %v1260 = vsel %vm1259, %v1243, -inf
        %1261 = vmax.xlane.f32.xlu0 %v1260
        %v1262 = vpop.xlane.xlu0 %1261
        %v1263 = vsel %vm1259, %v1244, -inf
        %1264 = vmax.xlane.f32.xlu0 %v1263
        %v1265 = vpop.xlane.xlu0 %1264
        %v1266 = vsel %vm1259, %v1245, -inf
        %1267 = vmax.xlane.f32.xlu0 %v1266
        %v1268 = vpop.xlane.xlu0 %1267
        %v1269 = vsel %vm1259, %v1246, -inf
        %1270 = vmax.xlane.f32.xlu0 %v1269
        %v1271 = vpop.xlane.xlu0 %1270
        %v1272 = vsel %vm1259, %v1247, -inf
        %1273 = vmax.xlane.f32.xlu0 %v1272
        %v1274 = vpop.xlane.xlu0 %1273
        %v1275 = vsel %vm1259, %v1248, -inf
        %1276 = vmax.xlane.f32.xlu0 %v1275
        %v1277 = vpop.xlane.xlu0 %1276
        %v1278 = vsel %vm1259, %v1249, -inf
        %1279 = vmax.xlane.f32.xlu0 %v1278
        %v1280 = vpop.xlane.xlu0 %1279
        %v1281 = vsel %vm1259, %v1250, -inf
        %1282 = vmax.xlane.f32.xlu0 %v1281
        %v1283 = vpop.xlane.xlu0 %1282
        %v1284 = vsel %vm1259, %v1251, -inf
        %1285 = vmax.xlane.f32.xlu0 %v1284
        %v1286 = vpop.xlane.xlu0 %1285
        %v1287 = vsel %vm1259, %v1252, -inf
        %1288 = vmax.xlane.f32.xlu0 %v1287
        %v1289 = vpop.xlane.xlu0 %1288
        %v1290 = vsel %vm1259, %v1253, -inf
        %1291 = vmax.xlane.f32.xlu0 %v1290
        %v1292 = vpop.xlane.xlu0 %1291
        %v1293 = vsel %vm1259, %v1254, -inf
        %1294 = vmax.xlane.f32.xlu0 %v1293
        %v1295 = vpop.xlane.xlu0 %1294
        %v1296 = vsel %vm1259, %v1255, -inf
        %1297 = vmax.xlane.f32.xlu0 %v1296
        %v1298 = vpop.xlane.xlu0 %1297
        %v1299 = vsel %vm1259, %v1256, -inf
        %1300 = vmax.xlane.f32.xlu0 %v1299
        %v1301 = vpop.xlane.xlu0 %1300
        %v1302 = vsel %vm1259, %v1257, -inf
        %1303 = vmax.xlane.f32.xlu0 %v1302
        %v1304 = vpop.xlane.xlu0 %1303
        %v1305 = vsel %vm1259, %v1258, -inf
        %1306 = vmax.xlane.f32.xlu0 %v1305
        %v1307 = vpop.xlane.xlu0 %1306
        %v1308 = vsub.f32 %v1243, %v1262
        %v1309 = vsub.f32 %v1244, %v1265
        %v1310 = vsub.f32 %v1245, %v1268
        %v1311 = vsub.f32 %v1246, %v1271
        %v1312 = vsub.f32 %v1247, %v1274
        %v1313 = vsub.f32 %v1248, %v1277
        %v1314 = vsub.f32 %v1249, %v1280
        %v1315 = vsub.f32 %v1250, %v1283
        %v1316 = vsub.f32 %v1251, %v1286
        %v1317 = vsub.f32 %v1252, %v1289
        %v1318 = vsub.f32 %v1253, %v1292
        %v1319 = vsub.f32 %v1254, %v1295
        %v1320 = vsub.f32 %v1255, %v1298
        %v1321 = vsub.f32 %v1256, %v1301
        %v1322 = vsub.f32 %v1257, %v1304
        %v1323 = vsub.f32 %v1258, %v1307
        %v1324 = vmul.f32 %v1308, 1.442695
        %v1325 = vpow.pop %v1324
        %v1326 = vmul.f32 %v1309, 1.442695
        %v1327 = vpow.pop %v1326
        %v1328 = vmul.f32 %v1310, 1.442695
        %v1329 = vpow.pop %v1328
        %v1330 = vmul.f32 %v1311, 1.442695
        %v1331 = vpow.pop %v1330
        %v1332 = vmul.f32 %v1312, 1.442695
        %v1333 = vpow.pop %v1332
        %v1334 = vmul.f32 %v1313, 1.442695
        %v1335 = vpow.pop %v1334
        %v1336 = vmul.f32 %v1314, 1.442695
        %v1337 = vpow.pop %v1336
        %v1338 = vmul.f32 %v1315, 1.442695
        %v1339 = vpow.pop %v1338
        %v1340 = vmul.f32 %v1316, 1.442695
        %v1341 = vpow.pop %v1340
        %v1342 = vmul.f32 %v1317, 1.442695
        %v1343 = vpow.pop %v1342
        %v1344 = vmul.f32 %v1318, 1.442695
        %v1345 = vpow.pop %v1344
        %v1346 = vmul.f32 %v1319, 1.442695
        %v1347 = vpow.pop %v1346
        %v1348 = vmul.f32 %v1320, 1.442695
        %v1349 = vpow.pop %v1348
        %v1350 = vmul.f32 %v1321, 1.442695
        %v1351 = vpow.pop %v1350
        %v1352 = vmul.f32 %v1322, 1.442695
        %v1353 = vpow.pop %v1352
        %v1354 = vmul.f32 %v1323, 1.442695
        %v1355 = vpow.pop %v1354
        %v1356 = vsel %vm1259, %v1325, 0.0
        %1357 = vadd.xlane.f32.xlu0 %v1356
        %v1358 = vpop.xlane.xlu0 %1357
        %v1359 = vsel %vm1259, %v1327, 0.0
        %1360 = vadd.xlane.f32.xlu0 %v1359
        %v1361 = vpop.xlane.xlu0 %1360
        %v1362 = vsel %vm1259, %v1329, 0.0
        %1363 = vadd.xlane.f32.xlu0 %v1362
        %v1364 = vpop.xlane.xlu0 %1363
        %v1365 = vsel %vm1259, %v1331, 0.0
        %1366 = vadd.xlane.f32.xlu0 %v1365
        %v1367 = vpop.xlane.xlu0 %1366
        %v1368 = vsel %vm1259, %v1333, 0.0
        %1369 = vadd.xlane.f32.xlu0 %v1368
        %v1370 = vpop.xlane.xlu0 %1369
        %v1371 = vsel %vm1259, %v1335, 0.0
        %1372 = vadd.xlane.f32.xlu0 %v1371
        %v1373 = vpop.xlane.xlu0 %1372
        %v1374 = vsel %vm1259, %v1337, 0.0
        %1375 = vadd.xlane.f32.xlu0 %v1374
        %v1376 = vpop.xlane.xlu0 %1375
        %v1377 = vsel %vm1259, %v1339, 0.0
        %1378 = vadd.xlane.f32.xlu0 %v1377
        %v1379 = vpop.xlane.xlu0 %1378
        %v1380 = vsel %vm1259, %v1341, 0.0
        %1381 = vadd.xlane.f32.xlu0 %v1380
        %v1382 = vpop.xlane.xlu0 %1381
        %v1383 = vsel %vm1259, %v1343, 0.0
        %1384 = vadd.xlane.f32.xlu0 %v1383
        %v1385 = vpop.xlane.xlu0 %1384
        %v1386 = vsel %vm1259, %v1345, 0.0
        %1387 = vadd.xlane.f32.xlu0 %v1386
        %v1388 = vpop.xlane.xlu0 %1387
        %v1389 = vsel %vm1259, %v1347, 0.0
        %1390 = vadd.xlane.f32.xlu0 %v1389
        %v1391 = vpop.xlane.xlu0 %1390
        %v1392 = vsel %vm1259, %v1349, 0.0
        %1393 = vadd.xlane.f32.xlu0 %v1392
        %v1394 = vpop.xlane.xlu0 %1393
        %v1395 = vsel %vm1259, %v1351, 0.0
        %1396 = vadd.xlane.f32.xlu0 %v1395
        %v1397 = vpop.xlane.xlu0 %1396
        %v1398 = vsel %vm1259, %v1353, 0.0
        %1399 = vadd.xlane.f32.xlu0 %v1398
        %v1400 = vpop.xlane.xlu0 %1399
        %v1401 = vsel %vm1259, %v1355, 0.0
        %1402 = vadd.xlane.f32.xlu0 %v1401
        %v1403 = vpop.xlane.xlu0 %1402
        %v1404 = vrcp.pop %v1358
        %v1405 = vmul.f32 %v1325, %v1404
        %v1406 = vrcp.pop %v1361
        %v1407 = vmul.f32 %v1327, %v1406
        %v1408 = vrcp.pop %v1364
        %v1409 = vmul.f32 %v1329, %v1408
        %v1410 = vrcp.pop %v1367
        %v1411 = vmul.f32 %v1331, %v1410
        %v1412 = vrcp.pop %v1370
        %v1413 = vmul.f32 %v1333, %v1412
        %v1414 = vrcp.pop %v1373
        %v1415 = vmul.f32 %v1335, %v1414
        %v1416 = vrcp.pop %v1376
        %v1417 = vmul.f32 %v1337, %v1416
        %v1418 = vrcp.pop %v1379
        %v1419 = vmul.f32 %v1339, %v1418
        %v1420 = vrcp.pop %v1382
        %v1421 = vmul.f32 %v1341, %v1420
        %v1422 = vrcp.pop %v1385
        %v1423 = vmul.f32 %v1343, %v1422
        %v1424 = vrcp.pop %v1388
        %v1425 = vmul.f32 %v1345, %v1424
        %v1426 = vrcp.pop %v1391
        %v1427 = vmul.f32 %v1347, %v1426
        %v1428 = vrcp.pop %v1394
        %v1429 = vmul.f32 %v1349, %v1428
        %v1430 = vrcp.pop %v1397
        %v1431 = vmul.f32 %v1351, %v1430
        %v1432 = vrcp.pop %v1400
        %v1433 = vmul.f32 %v1353, %v1432
        %v1434 = vrcp.pop %v1403
        %v1435 = vmul.f32 %v1355, %v1434
        %v1437 = vsel %vm1259, %v1405, 0
        %v1440 = vsel %vm1259, %v1407, 0
        %v1443 = vsel %vm1259, %v1409, 0
        %v1446 = vsel %vm1259, %v1411, 0
        %v1449 = vsel %vm1259, %v1413, 0
        %v1452 = vsel %vm1259, %v1415, 0
        %v1455 = vsel %vm1259, %v1417, 0
        %v1458 = vsel %vm1259, %v1419, 0
        %1460 = vmatprep.subr.mxu0 0.0
        %1461 = vmatpush1.msra.mxu0 %v896
        %1462 = vmatprep.subr.mxu0 0.0
        %1463 = vmatpush1.msra.mxu0 %v897
        %1464 = vmatprep.subr.mxu0 0.0
        %1465 = vmatpush1.msra.mxu0 %v898
        %1466 = vmatprep.subr.mxu0 0.0
        %1467 = vmatpush1.msra.mxu0 %v899
        %1468 = vmatprep.subr.mxu0 0.0
        %1469 = vmatpush1.msra.mxu0 %v900
        %1470 = vmatprep.subr.mxu0 0.0
        %1471 = vmatpush1.msra.mxu0 %v901
        %1472 = vmatprep.subr.mxu0 0.0
        %1473 = vmatpush1.msra.mxu0 %v902
        %1474 = vmatprep.subr.mxu0 0.0
        %1475 = vmatpush1.msra.mxu0 %v903
        %1476 = vmatprep.subr.mxu0 0.0
        %1477 = vmatpush1.msra.mxu0 0.0
        %1478 = vmatprep.subr.mxu0 0.0
        %1479 = vmatpush1.msra.mxu0 0.0
        %1480 = vmatprep.subr.mxu0 0.0
        %1481 = vmatpush1.msra.mxu0 0.0
        %1482 = vmatprep.subr.mxu0 0.0
        %1483 = vmatpush1.msra.mxu0 0.0
        %1484 = vmatprep.subr.mxu0 0.0
        %1485 = vmatpush1.msra.mxu0 0.0
        %1486 = vmatprep.subr.mxu0 0.0
        %1487 = vmatpush1.msra.mxu0 0.0
        %1488 = vmatprep.subr.mxu0 0.0
        %1489 = vmatpush1.msra.mxu0 0.0
        %1490 = vmatprep.subr.mxu0 0.0
        %1491 = vmatpush1.msra.mxu0 0.0
        %1492 = vmatprep.subr.mxu0 0.0
        %1493 = vmatpush1.msra.mxu0 0.0
        %1494 = vmatprep.subr.mxu0 0.0
        %1495 = vmatpush1.msra.mxu0 0.0
        %1496 = vmatprep.subr.mxu0 0.0
        %1497 = vmatpush1.msra.mxu0 0.0
        %1498 = vmatprep.subr.mxu0 0.0
        %1499 = vmatpush1.msra.mxu0 0.0
        %1500 = vmatprep.subr.mxu0 0.0
        %1501 = vmatpush1.msra.mxu0 0.0
        %1502 = vmatprep.subr.mxu0 0.0
        %1503 = vmatpush1.msra.mxu0 0.0
        %1504 = vmatprep.subr.mxu0 0.0
        %1505 = vmatpush1.msra.mxu0 0.0
        %1506 = vmatprep.subr.mxu0 0.0
        %1507 = vmatpush1.msra.mxu0 0.0
        %1508 = vmatprep.subr.mxu0 0.0
        %1509 = vmatpush1.msra.mxu0 0.0
        %1510 = vmatprep.subr.mxu0 0.0
        %1511 = vmatpush1.msra.mxu0 0.0
        %1512 = vmatprep.subr.mxu0 0.0
        %1513 = vmatpush1.msra.mxu0 0.0
        %1514 = vmatprep.subr.mxu0 0.0
        %1515 = vmatpush1.msra.mxu0 0.0
        %1516 = vmatprep.subr.mxu0 0.0
        %1517 = vmatpush1.msra.mxu0 0.0
        %1518 = vmatprep.subr.mxu0 0.0
        %1519 = vmatpush1.msra.mxu0 0.0
        %1520 = vmatprep.subr.mxu0 0.0
        %1521 = vmatpush1.msra.mxu0 0.0
        %1522 = vmatprep.subr.mxu0 0.0
        %1523 = vmatpush1.msra.mxu0 0.0
        %1524 = vmatprep.mubr.f32.mxu0 0.0
        %1525 = vmatmul.mubr.f32.gmra.mrb[0].mxu0 %v1437
        %v1526 = vpop.f32.mrb[0].mxu0
        %v1527 = vadd.f32 0.0, %v1526
        %v1528 = vpop.f32.mrb[0].mxu0
        %1529 = vmatprep.mubr.f32.mxu0 0.0
        %1530 = vmatmul.mubr.f32.gmra.mrb[0].mxu0 %v1440
        %v1531 = vpop.f32.mrb[0].mxu0
        %v1532 = vadd.f32 0.0, %v1531
        %v1533 = vpop.f32.mrb[0].mxu0
        %1534 = vmatprep.mubr.f32.mxu0 0.0
        %1535 = vmatmul.mubr.f32.gmra.mrb[0].mxu0 %v1443
        %v1536 = vpop.f32.mrb[0].mxu0
        %v1537 = vadd.f32 0.0, %v1536
        %v1538 = vpop.f32.mrb[0].mxu0
        %1539 = vmatprep.mubr.f32.mxu0 0.0
        %1540 = vmatmul.mubr.f32.gmra.mrb[0].mxu0 %v1446
        %v1541 = vpop.f32.mrb[0].mxu0
        %v1542 = vadd.f32 0.0, %v1541
        %v1543 = vpop.f32.mrb[0].mxu0
        %1544 = vmatprep.mubr.f32.mxu0 0.0
        %1545 = vmatmul.mubr.f32.gmra.mrb[0].mxu0 %v1449
        %v1546 = vpop.f32.mrb[0].mxu0
        %v1547 = vadd.f32 0.0, %v1546
        %v1548 = vpop.f32.mrb[0].mxu0
        %1549 = vmatprep.mubr.f32.mxu0 0.0
        %1550 = vmatmul.mubr.f32.gmra.mrb[0].mxu0 %v1452
        %v1551 = vpop.f32.mrb[0].mxu0
        %v1552 = vadd.f32 0.0, %v1551
        %v1553 = vpop.f32.mrb[0].mxu0
        %1554 = vmatprep.mubr.f32.mxu0 0.0
        %1555 = vmatmul.mubr.f32.gmra.mrb[0].mxu0 %v1455
        %v1556 = vpop.f32.mrb[0].mxu0
        %v1557 = vadd.f32 0.0, %v1556
        %v1558 = vpop.f32.mrb[0].mxu0
        %1559 = vmatprep.mubr.f32.mxu0 0.0
        %1560 = vmatmul.mubr.f32.gmra.mrb[0].mxu0 %v1458
        %v1561 = vpop.f32.mrb[0].mxu0
        %v1562 = vadd.f32 0.0, %v1561
        %v1563 = vpop.f32.mrb[0].mxu0
        %1564 = vdwg.mxu0
        %v1566 = vsel %vm1259, %v1421, 0
        %v1569 = vsel %vm1259, %v1423, 0
        %v1572 = vsel %vm1259, %v1425, 0
        %v1575 = vsel %vm1259, %v1427, 0
        %v1578 = vsel %vm1259, %v1429, 0
        %v1581 = vsel %vm1259, %v1431, 0
        %v1584 = vsel %vm1259, %v1433, 0
        %v1587 = vsel %vm1259, %v1435, 0
        %1589 = vmatprep.subr.mxu0 0.0
        %1590 = vmatpush1.msra.mxu0 %v904
        %1591 = vmatprep.subr.mxu0 0.0
        %1592 = vmatpush1.msra.mxu0 %v905
        %1593 = vmatprep.subr.mxu0 0.0
        %1594 = vmatpush1.msra.mxu0 %v906
        %1595 = vmatprep.subr.mxu0 0.0
        %1596 = vmatpush1.msra.mxu0 %v907
        %1597 = vmatprep.subr.mxu0 0.0
        %1598 = vmatpush1.msra.mxu0 %v908
        %1599 = vmatprep.subr.mxu0 0.0
        %1600 = vmatpush1.msra.mxu0 %v909
        %1601 = vmatprep.subr.mxu0 0.0
        %1602 = vmatpush1.msra.mxu0 %v910
        %1603 = vmatprep.subr.mxu0 0.0
        %1604 = vmatpush1.msra.mxu0 %v911
        %1605 = vmatprep.subr.mxu0 0.0
        %1606 = vmatpush1.msra.mxu0 0.0
        %1607 = vmatprep.subr.mxu0 0.0
        %1608 = vmatpush1.msra.mxu0 0.0
        %1609 = vmatprep.subr.mxu0 0.0
        %1610 = vmatpush1.msra.mxu0 0.0
        %1611 = vmatprep.subr.mxu0 0.0
        %1612 = vmatpush1.msra.mxu0 0.0
        %1613 = vmatprep.subr.mxu0 0.0
        %1614 = vmatpush1.msra.mxu0 0.0
        %1615 = vmatprep.subr.mxu0 0.0
        %1616 = vmatpush1.msra.mxu0 0.0
        %1617 = vmatprep.subr.mxu0 0.0
        %1618 = vmatpush1.msra.mxu0 0.0
        %1619 = vmatprep.subr.mxu0 0.0
        %1620 = vmatpush1.msra.mxu0 0.0
        %1621 = vmatprep.subr.mxu0 0.0
        %1622 = vmatpush1.msra.mxu0 0.0
        %1623 = vmatprep.subr.mxu0 0.0
        %1624 = vmatpush1.msra.mxu0 0.0
        %1625 = vmatprep.subr.mxu0 0.0
        %1626 = vmatpush1.msra.mxu0 0.0
        %1627 = vmatprep.subr.mxu0 0.0
        %1628 = vmatpush1.msra.mxu0 0.0
        %1629 = vmatprep.subr.mxu0 0.0
        %1630 = vmatpush1.msra.mxu0 0.0
        %1631 = vmatprep.subr.mxu0 0.0
        %1632 = vmatpush1.msra.mxu0 0.0
        %1633 = vmatprep.subr.mxu0 0.0
        %1634 = vmatpush1.msra.mxu0 0.0
        %1635 = vmatprep.subr.mxu0 0.0
        %1636 = vmatpush1.msra.mxu0 0.0
        %1637 = vmatprep.subr.mxu0 0.0
        %1638 = vmatpush1.msra.mxu0 0.0
        %1639 = vmatprep.subr.mxu0 0.0
        %1640 = vmatpush1.msra.mxu0 0.0
        %1641 = vmatprep.subr.mxu0 0.0
        %1642 = vmatpush1.msra.mxu0 0.0
        %1643 = vmatprep.subr.mxu0 0.0
        %1644 = vmatpush1.msra.mxu0 0.0
        %1645 = vmatprep.subr.mxu0 0.0
        %1646 = vmatpush1.msra.mxu0 0.0
        %1647 = vmatprep.subr.mxu0 0.0
        %1648 = vmatpush1.msra.mxu0 0.0
        %1649 = vmatprep.subr.mxu0 0.0
        %1650 = vmatpush1.msra.mxu0 0.0
        %1651 = vmatprep.subr.mxu0 0.0
        %1652 = vmatpush1.msra.mxu0 0.0
        %1653 = vmatprep.mubr.f32.mxu0 0.0
        %1654 = vmatmul.mubr.f32.gmra.mrb[0].mxu0 %v1566
        %v1655 = vpop.f32.mrb[0].mxu0
        %v1656 = vadd.f32 0.0, %v1655
        %v1657 = vpop.f32.mrb[0].mxu0
        %1658 = vmatprep.mubr.f32.mxu0 0.0
        %1659 = vmatmul.mubr.f32.gmra.mrb[0].mxu0 %v1569
        %v1660 = vpop.f32.mrb[0].mxu0
        %v1661 = vadd.f32 0.0, %v1660
        %v1662 = vpop.f32.mrb[0].mxu0
        %1663 = vmatprep.mubr.f32.mxu0 0.0
        %1664 = vmatmul.mubr.f32.gmra.mrb[0].mxu0 %v1572
        %v1665 = vpop.f32.mrb[0].mxu0
        %v1666 = vadd.f32 0.0, %v1665
        %v1667 = vpop.f32.mrb[0].mxu0
        %1668 = vmatprep.mubr.f32.mxu0 0.0
        %1669 = vmatmul.mubr.f32.gmra.mrb[0].mxu0 %v1575
        %v1670 = vpop.f32.mrb[0].mxu0
        %v1671 = vadd.f32 0.0, %v1670
        %v1672 = vpop.f32.mrb[0].mxu0
        %1673 = vmatprep.mubr.f32.mxu0 0.0
        %1674 = vmatmul.mubr.f32.gmra.mrb[0].mxu0 %v1578
        %v1675 = vpop.f32.mrb[0].mxu0
        %v1676 = vadd.f32 0.0, %v1675
        %v1677 = vpop.f32.mrb[0].mxu0
        %1678 = vmatprep.mubr.f32.mxu0 0.0
        %1679 = vmatmul.mubr.f32.gmra.mrb[0].mxu0 %v1581
        %v1680 = vpop.f32.mrb[0].mxu0
        %v1681 = vadd.f32 0.0, %v1680
        %v1682 = vpop.f32.mrb[0].mxu0
        %1683 = vmatprep.mubr.f32.mxu0 0.0
        %1684 = vmatmul.mubr.f32.gmra.mrb[0].mxu0 %v1584
        %v1685 = vpop.f32.mrb[0].mxu0
        %v1686 = vadd.f32 0.0, %v1685
        %v1687 = vpop.f32.mrb[0].mxu0
        %1688 = vmatprep.mubr.f32.mxu0 0.0
        %1689 = vmatmul.mubr.f32.gmra.mrb[0].mxu0 %v1587
        %v1690 = vpop.f32.mrb[0].mxu0
        %v1691 = vadd.f32 0.0, %v1690
        %v1692 = vpop.f32.mrb[0].mxu0
        %1693 = vdwg.mxu0
        %1694 = vst.msk [vmem:[#allocation2] sm:$0xff] %vm936, %v1527
        %1695 = vst.msk [vmem:[#allocation2 + $0x8] sm:$0xff] %vm936, %v1532
        %1696 = vst.msk [vmem:[#allocation2 + $0x10] sm:$0xff] %vm936, %v1537
        %1697 = vst.msk [vmem:[#allocation2 + $0x18] sm:$0xff] %vm936, %v1542
        %1698 = vst.msk [vmem:[#allocation2 + $0x20] sm:$0xff] %vm936, %v1547
        %1699 = vst.msk [vmem:[#allocation2 + $0x28] sm:$0xff] %vm936, %v1552
        %1700 = vst.msk [vmem:[#allocation2 + $0x30] sm:$0xff] %vm936, %v1557
        %1701 = vst.msk [vmem:[#allocation2 + $0x38] sm:$0xff] %vm936, %v1562
        %1702 = vst.msk [vmem:[#allocation2 + $0x40] sm:$0xff] %vm936, %v1656
        %1703 = vst.msk [vmem:[#allocation2 + $0x48] sm:$0xff] %vm936, %v1661
        %1704 = vst.msk [vmem:[#allocation2 + $0x50] sm:$0xff] %vm936, %v1666
        %1705 = vst.msk [vmem:[#allocation2 + $0x58] sm:$0xff] %vm936, %v1671
        %1706 = vst.msk [vmem:[#allocation2 + $0x60] sm:$0xff] %vm936, %v1676
        %1707 = vst.msk [vmem:[#allocation2 + $0x68] sm:$0xff] %vm936, %v1681
        %1708 = vst.msk [vmem:[#allocation2 + $0x70] sm:$0xff] %vm936, %v1686
        %1709 = vst.msk [vmem:[#allocation2 + $0x78] sm:$0xff] %vm936, %v1691
        %s1710 = scalar_lea.vmem [#allocation9], 64
        %v1711 = vld [vmem:[%s1710] sm:$0xff]
        %v1712 = vld [vmem:[%s1710 + $0x8] sm:$0xff]
        %v1713 = vld [vmem:[%s1710 + $0x10] sm:$0xff]
        %v1714 = vld [vmem:[%s1710 + $0x18] sm:$0xff]
        %v1715 = vld [vmem:[%s1710 + $0x20] sm:$0xff]
        %v1716 = vld [vmem:[%s1710 + $0x28] sm:$0xff]
        %v1717 = vld [vmem:[%s1710 + $0x30] sm:$0xff]
        %v1718 = vld [vmem:[%s1710 + $0x38] sm:$0xff]
        %1719 = vrot.lane.b32.xlu0 %v864, 96
        %v1720 = vpop.permute.xlu0 %1719
        %1721 = vrot.lane.b32.xlu0 %v865, 96
        %v1722 = vpop.permute.xlu0 %1721
        %1723 = vrot.lane.b32.xlu0 %v866, 96
        %v1724 = vpop.permute.xlu0 %1723
        %1725 = vrot.lane.b32.xlu0 %v867, 96
        %v1726 = vpop.permute.xlu0 %1725
        %1727 = vrot.lane.b32.xlu0 %v868, 96
        %v1728 = vpop.permute.xlu0 %1727
        %1729 = vrot.lane.b32.xlu0 %v869, 96
        %v1730 = vpop.permute.xlu0 %1729
        %1731 = vrot.lane.b32.xlu0 %v870, 96
        %v1732 = vpop.permute.xlu0 %1731
        %1733 = vrot.lane.b32.xlu0 %v871, 96
        %v1734 = vpop.permute.xlu0 %1733
        %1735 = vrot.lane.b32.xlu0 %v627, 96
        %v1736 = vpop.permute.xlu0 %1735
        %1737 = vrot.lane.b32.xlu0 %v633, 96
        %v1738 = vpop.permute.xlu0 %1737
        %1739 = vrot.lane.b32.xlu0 %v639, 96
        %v1740 = vpop.permute.xlu0 %1739
        %1741 = vrot.lane.b32.xlu0 %v645, 96
        %v1742 = vpop.permute.xlu0 %1741
        %1743 = vrot.lane.b32.xlu0 %v651, 96
        %v1744 = vpop.permute.xlu0 %1743
        %1745 = vrot.lane.b32.xlu0 %v657, 96
        %v1746 = vpop.permute.xlu0 %1745
        %1747 = vrot.lane.b32.xlu0 %v663, 96
        %v1748 = vpop.permute.xlu0 %1747
        %1749 = vrot.lane.b32.xlu0 %v669, 96
        %v1750 = vpop.permute.xlu0 %1749
        %v1751 = vsel %vm936, %v1720, 0
        %v1753 = vsel %vm936, %v1722, 0
        %v1755 = vsel %vm936, %v1724, 0
        %v1757 = vsel %vm936, %v1726, 0
        %v1759 = vsel %vm936, %v1728, 0
        %v1761 = vsel %vm936, %v1730, 0
        %v1763 = vsel %vm936, %v1732, 0
        %v1765 = vsel %vm936, %v1734, 0
        %v1767 = vsel %vm936, %v1736, 0
        %v1769 = vsel %vm936, %v1738, 0
        %v1771 = vsel %vm936, %v1740, 0
        %v1773 = vsel %vm936, %v1742, 0
        %v1775 = vsel %vm936, %v1744, 0
        %v1777 = vsel %vm936, %v1746, 0
        %v1779 = vsel %vm936, %v1748, 0
        %v1781 = vsel %vm936, %v1750, 0
        %1783 = vmatprep.subr.mxu0 0.0
        %1784 = vmatpush1.xpose.msra.mxu0 %v1767
        %1785 = vmatprep.subr.mxu0 0.0
        %1786 = vmatpush1.xpose.msra.mxu0 %v1769
        %1787 = vmatprep.subr.mxu0 0.0
        %1788 = vmatpush1.xpose.msra.mxu0 %v1771
        %1789 = vmatprep.subr.mxu0 0.0
        %1790 = vmatpush1.xpose.msra.mxu0 %v1773
        %1791 = vmatprep.subr.mxu0 0.0
        %1792 = vmatpush1.xpose.msra.mxu0 %v1775
        %1793 = vmatprep.subr.mxu0 0.0
        %1794 = vmatpush1.xpose.msra.mxu0 %v1777
        %1795 = vmatprep.subr.mxu0 0.0
        %1796 = vmatpush1.xpose.msra.mxu0 %v1779
        %1797 = vmatprep.subr.mxu0 0.0
        %1798 = vmatpush1.xpose.msra.mxu0 %v1781
        %1799 = vmatprep.subr.mxu0 0.0
        %1800 = vmatpush1.xpose.msra.mxu0 0.0
        %1801 = vmatprep.subr.mxu0 0.0
        %1802 = vmatpush1.xpose.msra.mxu0 0.0
        %1803 = vmatprep.subr.mxu0 0.0
        %1804 = vmatpush1.xpose.msra.mxu0 0.0
        %1805 = vmatprep.subr.mxu0 0.0
        %1806 = vmatpush1.xpose.msra.mxu0 0.0
        %1807 = vmatprep.subr.mxu0 0.0
        %1808 = vmatpush1.xpose.msra.mxu0 0.0
        %1809 = vmatprep.subr.mxu0 0.0
        %1810 = vmatpush1.xpose.msra.mxu0 0.0
        %1811 = vmatprep.subr.mxu0 0.0
        %1812 = vmatpush1.xpose.msra.mxu0 0.0
        %1813 = vmatprep.subr.mxu0 0.0
        %1814 = vmatpush1.xpose.msra.mxu0 0.0
        %1815 = vmatprep.subr.mxu0 0.0
        %1816 = vmatpush1.xpose.msra.mxu0 0.0
        %1817 = vmatprep.subr.mxu0 0.0
        %1818 = vmatpush1.xpose.msra.mxu0 0.0
        %1819 = vmatprep.subr.mxu0 0.0
        %1820 = vmatpush1.xpose.msra.mxu0 0.0
        %1821 = vmatprep.subr.mxu0 0.0
        %1822 = vmatpush1.xpose.msra.mxu0 0.0
        %1823 = vmatprep.subr.mxu0 0.0
        %1824 = vmatpush1.xpose.msra.mxu0 0.0
        %1825 = vmatprep.subr.mxu0 0.0
        %1826 = vmatpush1.xpose.msra.mxu0 0.0
        %1827 = vmatprep.subr.mxu0 0.0
        %1828 = vmatpush1.xpose.msra.mxu0 0.0
        %1829 = vmatprep.subr.mxu0 0.0
        %1830 = vmatpush1.xpose.msra.mxu0 0.0
        %1831 = vmatprep.subr.mxu0 0.0
        %1832 = vmatpush1.xpose.msra.mxu0 0.0
        %1833 = vmatprep.subr.mxu0 0.0
        %1834 = vmatpush1.xpose.msra.mxu0 0.0
        %1835 = vmatprep.subr.mxu0 0.0
        %1836 = vmatpush1.xpose.msra.mxu0 0.0
        %1837 = vmatprep.subr.mxu0 0.0
        %1838 = vmatpush1.xpose.msra.mxu0 0.0
        %1839 = vmatprep.subr.mxu0 0.0
        %1840 = vmatpush1.xpose.msra.mxu0 0.0
        %1841 = vmatprep.subr.mxu0 0.0
        %1842 = vmatpush1.xpose.msra.mxu0 0.0
        %1843 = vmatprep.subr.mxu0 0.0
        %1844 = vmatpush1.xpose.msra.mxu0 0.0
        %1845 = vmatprep.subr.mxu0 0.0
        %1846 = vmatpush1.xpose.msra.mxu0 0.0
        %1847 = vmatprep.mubr.f32.mxu0 0.0
        %1848 = vmatmul.mubr.f32.gmra.mrb[0].mxu0 %v1751
        %v1849 = vpop.f32.mrb[0].mxu0
        %v1850 = vadd.f32 %v1711, %v1849
        %v1851 = vpop.f32.mrb[0].mxu0
        %1852 = vmatprep.mubr.f32.mxu0 0.0
        %1853 = vmatmul.mubr.f32.gmra.mrb[0].mxu0 %v1753
        %v1854 = vpop.f32.mrb[0].mxu0
        %v1855 = vadd.f32 %v1712, %v1854
        %v1856 = vpop.f32.mrb[0].mxu0
        %1857 = vmatprep.mubr.f32.mxu0 0.0
        %1858 = vmatmul.mubr.f32.gmra.mrb[0].mxu0 %v1755
        %v1859 = vpop.f32.mrb[0].mxu0
        %v1860 = vadd.f32 %v1713, %v1859
        %v1861 = vpop.f32.mrb[0].mxu0
        %1862 = vmatprep.mubr.f32.mxu0 0.0
        %1863 = vmatmul.mubr.f32.gmra.mrb[0].mxu0 %v1757
        %v1864 = vpop.f32.mrb[0].mxu0
        %v1865 = vadd.f32 %v1714, %v1864
        %v1866 = vpop.f32.mrb[0].mxu0
        %1867 = vmatprep.mubr.f32.mxu0 0.0
        %1868 = vmatmul.mubr.f32.gmra.mrb[0].mxu0 %v1759
        %v1869 = vpop.f32.mrb[0].mxu0
        %v1870 = vadd.f32 %v1715, %v1869
        %v1871 = vpop.f32.mrb[0].mxu0
        %1872 = vmatprep.mubr.f32.mxu0 0.0
        %1873 = vmatmul.mubr.f32.gmra.mrb[0].mxu0 %v1761
        %v1874 = vpop.f32.mrb[0].mxu0
        %v1875 = vadd.f32 %v1716, %v1874
        %v1876 = vpop.f32.mrb[0].mxu0
        %1877 = vmatprep.mubr.f32.mxu0 0.0
        %1878 = vmatmul.mubr.f32.gmra.mrb[0].mxu0 %v1763
        %v1879 = vpop.f32.mrb[0].mxu0
        %v1880 = vadd.f32 %v1717, %v1879
        %v1881 = vpop.f32.mrb[0].mxu0
        %1882 = vmatprep.mubr.f32.mxu0 0.0
        %1883 = vmatmul.mubr.f32.gmra.mrb[0].mxu0 %v1765
        %v1884 = vpop.f32.mrb[0].mxu0
        %v1885 = vadd.f32 %v1718, %v1884
        %v1886 = vpop.f32.mrb[0].mxu0
        %1887 = vdwg.mxu0
        %1888 = vrot.lane.b32.xlu0 %v872, 96
        %v1889 = vpop.permute.xlu0 %1888
        %1890 = vrot.lane.b32.xlu0 %v873, 96
        %v1891 = vpop.permute.xlu0 %1890
        %1892 = vrot.lane.b32.xlu0 %v874, 96
        %v1893 = vpop.permute.xlu0 %1892
        %1894 = vrot.lane.b32.xlu0 %v875, 96
        %v1895 = vpop.permute.xlu0 %1894
        %1896 = vrot.lane.b32.xlu0 %v876, 96
        %v1897 = vpop.permute.xlu0 %1896
        %1898 = vrot.lane.b32.xlu0 %v877, 96
        %v1899 = vpop.permute.xlu0 %1898
        %1900 = vrot.lane.b32.xlu0 %v878, 96
        %v1901 = vpop.permute.xlu0 %1900
        %1902 = vrot.lane.b32.xlu0 %v879, 96
        %v1903 = vpop.permute.xlu0 %1902
        %1904 = vrot.lane.b32.xlu0 %v675, 96
        %v1905 = vpop.permute.xlu0 %1904
        %1906 = vrot.lane.b32.xlu0 %v681, 96
        %v1907 = vpop.permute.xlu0 %1906
        %1908 = vrot.lane.b32.xlu0 %v687, 96
        %v1909 = vpop.permute.xlu0 %1908
        %1910 = vrot.lane.b32.xlu0 %v693, 96
        %v1911 = vpop.permute.xlu0 %1910
        %1912 = vrot.lane.b32.xlu0 %v699, 96
        %v1913 = vpop.permute.xlu0 %1912
        %1914 = vrot.lane.b32.xlu0 %v705, 96
        %v1915 = vpop.permute.xlu0 %1914
        %1916 = vrot.lane.b32.xlu0 %v711, 96
        %v1917 = vpop.permute.xlu0 %1916
        %1918 = vrot.lane.b32.xlu0 %v717, 96
        %v1919 = vpop.permute.xlu0 %1918
        %v1920 = vsel %vm936, %v1889, 0
        %v1922 = vsel %vm936, %v1891, 0
        %v1924 = vsel %vm936, %v1893, 0
        %v1926 = vsel %vm936, %v1895, 0
        %v1928 = vsel %vm936, %v1897, 0
        %v1930 = vsel %vm936, %v1899, 0
        %v1932 = vsel %vm936, %v1901, 0
        %v1934 = vsel %vm936, %v1903, 0
        %v1936 = vsel %vm936, %v1905, 0
        %v1938 = vsel %vm936, %v1907, 0
        %v1940 = vsel %vm936, %v1909, 0
        %v1942 = vsel %vm936, %v1911, 0
        %v1944 = vsel %vm936, %v1913, 0
        %v1946 = vsel %vm936, %v1915, 0
        %v1948 = vsel %vm936, %v1917, 0
        %v1950 = vsel %vm936, %v1919, 0
        %1952 = vmatprep.subr.mxu0 0.0
        %1953 = vmatpush1.xpose.msra.mxu0 %v1936
        %1954 = vmatprep.subr.mxu0 0.0
        %1955 = vmatpush1.xpose.msra.mxu0 %v1938
        %1956 = vmatprep.subr.mxu0 0.0
        %1957 = vmatpush1.xpose.msra.mxu0 %v1940
        %1958 = vmatprep.subr.mxu0 0.0
        %1959 = vmatpush1.xpose.msra.mxu0 %v1942
        %1960 = vmatprep.subr.mxu0 0.0
        %1961 = vmatpush1.xpose.msra.mxu0 %v1944
        %1962 = vmatprep.subr.mxu0 0.0
        %1963 = vmatpush1.xpose.msra.mxu0 %v1946
        %1964 = vmatprep.subr.mxu0 0.0
        %1965 = vmatpush1.xpose.msra.mxu0 %v1948
        %1966 = vmatprep.subr.mxu0 0.0
        %1967 = vmatpush1.xpose.msra.mxu0 %v1950
        %1968 = vmatprep.subr.mxu0 0.0
        %1969 = vmatpush1.xpose.msra.mxu0 0.0
        %1970 = vmatprep.subr.mxu0 0.0
        %1971 = vmatpush1.xpose.msra.mxu0 0.0
        %1972 = vmatprep.subr.mxu0 0.0
        %1973 = vmatpush1.xpose.msra.mxu0 0.0
        %1974 = vmatprep.subr.mxu0 0.0
        %1975 = vmatpush1.xpose.msra.mxu0 0.0
        %1976 = vmatprep.subr.mxu0 0.0
        %1977 = vmatpush1.xpose.msra.mxu0 0.0
        %1978 = vmatprep.subr.mxu0 0.0
        %1979 = vmatpush1.xpose.msra.mxu0 0.0
        %1980 = vmatprep.subr.mxu0 0.0
        %1981 = vmatpush1.xpose.msra.mxu0 0.0
        %1982 = vmatprep.subr.mxu0 0.0
        %1983 = vmatpush1.xpose.msra.mxu0 0.0
        %1984 = vmatprep.subr.mxu0 0.0
        %1985 = vmatpush1.xpose.msra.mxu0 0.0
        %1986 = vmatprep.subr.mxu0 0.0
        %1987 = vmatpush1.xpose.msra.mxu0 0.0
        %1988 = vmatprep.subr.mxu0 0.0
        %1989 = vmatpush1.xpose.msra.mxu0 0.0
        %1990 = vmatprep.subr.mxu0 0.0
        %1991 = vmatpush1.xpose.msra.mxu0 0.0
        %1992 = vmatprep.subr.mxu0 0.0
        %1993 = vmatpush1.xpose.msra.mxu0 0.0
        %1994 = vmatprep.subr.mxu0 0.0
        %1995 = vmatpush1.xpose.msra.mxu0 0.0
        %1996 = vmatprep.subr.mxu0 0.0
        %1997 = vmatpush1.xpose.msra.mxu0 0.0
        %1998 = vmatprep.subr.mxu0 0.0
        %1999 = vmatpush1.xpose.msra.mxu0 0.0
        %2000 = vmatprep.subr.mxu0 0.0
        %2001 = vmatpush1.xpose.msra.mxu0 0.0
        %2002 = vmatprep.subr.mxu0 0.0
        %2003 = vmatpush1.xpose.msra.mxu0 0.0
        %2004 = vmatprep.subr.mxu0 0.0
        %2005 = vmatpush1.xpose.msra.mxu0 0.0
        %2006 = vmatprep.subr.mxu0 0.0
        %2007 = vmatpush1.xpose.msra.mxu0 0.0
        %2008 = vmatprep.subr.mxu0 0.0
        %2009 = vmatpush1.xpose.msra.mxu0 0.0
        %2010 = vmatprep.subr.mxu0 0.0
        %2011 = vmatpush1.xpose.msra.mxu0 0.0
        %2012 = vmatprep.subr.mxu0 0.0
        %2013 = vmatpush1.xpose.msra.mxu0 0.0
        %2014 = vmatprep.subr.mxu0 0.0
        %2015 = vmatpush1.xpose.msra.mxu0 0.0
        %2016 = vmatprep.mubr.f32.mxu0 0.0
        %2017 = vmatmul.mubr.f32.gmra.mrb[0].mxu0 %v1920
        %v2018 = vpop.f32.mrb[0].mxu0
        %v2019 = vadd.f32 %v1711, %v2018
        %v2020 = vpop.f32.mrb[0].mxu0
        %2021 = vmatprep.mubr.f32.mxu0 0.0
        %2022 = vmatmul.mubr.f32.gmra.mrb[0].mxu0 %v1922
        %v2023 = vpop.f32.mrb[0].mxu0
        %v2024 = vadd.f32 %v1712, %v2023
        %v2025 = vpop.f32.mrb[0].mxu0
        %2026 = vmatprep.mubr.f32.mxu0 0.0
        %2027 = vmatmul.mubr.f32.gmra.mrb[0].mxu0 %v1924
        %v2028 = vpop.f32.mrb[0].mxu0
        %v2029 = vadd.f32 %v1713, %v2028
        %v2030 = vpop.f32.mrb[0].mxu0
        %2031 = vmatprep.mubr.f32.mxu0 0.0
        %2032 = vmatmul.mubr.f32.gmra.mrb[0].mxu0 %v1926
        %v2033 = vpop.f32.mrb[0].mxu0
        %v2034 = vadd.f32 %v1714, %v2033
        %v2035 = vpop.f32.mrb[0].mxu0
        %2036 = vmatprep.mubr.f32.mxu0 0.0
        %2037 = vmatmul.mubr.f32.gmra.mrb[0].mxu0 %v1928
        %v2038 = vpop.f32.mrb[0].mxu0
        %v2039 = vadd.f32 %v1715, %v2038
        %v2040 = vpop.f32.mrb[0].mxu0
        %2041 = vmatprep.mubr.f32.mxu0 0.0
        %2042 = vmatmul.mubr.f32.gmra.mrb[0].mxu0 %v1930
        %v2043 = vpop.f32.mrb[0].mxu0
        %v2044 = vadd.f32 %v1716, %v2043
        %v2045 = vpop.f32.mrb[0].mxu0
        %2046 = vmatprep.mubr.f32.mxu0 0.0
        %2047 = vmatmul.mubr.f32.gmra.mrb[0].mxu0 %v1932
        %v2048 = vpop.f32.mrb[0].mxu0
        %v2049 = vadd.f32 %v1717, %v2048
        %v2050 = vpop.f32.mrb[0].mxu0
        %2051 = vmatprep.mubr.f32.mxu0 0.0
        %2052 = vmatmul.mubr.f32.gmra.mrb[0].mxu0 %v1934
        %v2053 = vpop.f32.mrb[0].mxu0
        %v2054 = vadd.f32 %v1718, %v2053
        %v2055 = vpop.f32.mrb[0].mxu0
        %2056 = vdwg.mxu0
        %v2057 = vadd.f32 %v1850, %v912
        %v2058 = vadd.f32 %v1855, %v913
        %v2059 = vadd.f32 %v1860, %v914
        %v2060 = vadd.f32 %v1865, %v915
        %v2061 = vadd.f32 %v1870, %v916
        %v2062 = vadd.f32 %v1875, %v917
        %v2063 = vadd.f32 %v1880, %v918
        %v2064 = vadd.f32 %v1885, %v919
        %v2065 = vadd.f32 %v2019, %v920
        %v2066 = vadd.f32 %v2024, %v921
        %v2067 = vadd.f32 %v2029, %v922
        %v2068 = vadd.f32 %v2034, %v923
        %v2069 = vadd.f32 %v2039, %v924
        %v2070 = vadd.f32 %v2044, %v925
        %v2071 = vadd.f32 %v2049, %v926
        %v2072 = vadd.f32 %v2054, %v927
        %v2073 = vsel %vm1259, %v2057, -inf
        %2074 = vmax.xlane.f32.xlu0 %v2073
        %v2075 = vpop.xlane.xlu0 %2074
        %v2076 = vsel %vm1259, %v2058, -inf
        %2077 = vmax.xlane.f32.xlu0 %v2076
        %v2078 = vpop.xlane.xlu0 %2077
        %v2079 = vsel %vm1259, %v2059, -inf
        %2080 = vmax.xlane.f32.xlu0 %v2079
        %v2081 = vpop.xlane.xlu0 %2080
        %v2082 = vsel %vm1259, %v2060, -inf
        %2083 = vmax.xlane.f32.xlu0 %v2082
        %v2084 = vpop.xlane.xlu0 %2083
        %v2085 = vsel %vm1259, %v2061, -inf
        %2086 = vmax.xlane.f32.xlu0 %v2085
        %v2087 = vpop.xlane.xlu0 %2086
        %v2088 = vsel %vm1259, %v2062, -inf
        %2089 = vmax.xlane.f32.xlu0 %v2088
        %v2090 = vpop.xlane.xlu0 %2089
        %v2091 = vsel %vm1259, %v2063, -inf
        %2092 = vmax.xlane.f32.xlu0 %v2091
        %v2093 = vpop.xlane.xlu0 %2092
        %v2094 = vsel %vm1259, %v2064, -inf
        %2095 = vmax.xlane.f32.xlu0 %v2094
        %v2096 = vpop.xlane.xlu0 %2095
        %v2097 = vsel %vm1259, %v2065, -inf
        %2098 = vmax.xlane.f32.xlu0 %v2097
        %v2099 = vpop.xlane.xlu0 %2098
        %v2100 = vsel %vm1259, %v2066, -inf
        %2101 = vmax.xlane.f32.xlu0 %v2100
        %v2102 = vpop.xlane.xlu0 %2101
        %v2103 = vsel %vm1259, %v2067, -inf
        %2104 = vmax.xlane.f32.xlu0 %v2103
        %v2105 = vpop.xlane.xlu0 %2104
        %v2106 = vsel %vm1259, %v2068, -inf
        %2107 = vmax.xlane.f32.xlu0 %v2106
        %v2108 = vpop.xlane.xlu0 %2107
        %v2109 = vsel %vm1259, %v2069, -inf
        %2110 = vmax.xlane.f32.xlu0 %v2109
        %v2111 = vpop.xlane.xlu0 %2110
        %v2112 = vsel %vm1259, %v2070, -inf
        %2113 = vmax.xlane.f32.xlu0 %v2112
        %v2114 = vpop.xlane.xlu0 %2113
        %v2115 = vsel %vm1259, %v2071, -inf
        %2116 = vmax.xlane.f32.xlu0 %v2115
        %v2117 = vpop.xlane.xlu0 %2116
        %v2118 = vsel %vm1259, %v2072, -inf
        %2119 = vmax.xlane.f32.xlu0 %v2118
        %v2120 = vpop.xlane.xlu0 %2119
        %v2121 = vsub.f32 %v2057, %v2075
        %v2122 = vsub.f32 %v2058, %v2078
        %v2123 = vsub.f32 %v2059, %v2081
        %v2124 = vsub.f32 %v2060, %v2084
        %v2125 = vsub.f32 %v2061, %v2087
        %v2126 = vsub.f32 %v2062, %v2090
        %v2127 = vsub.f32 %v2063, %v2093
        %v2128 = vsub.f32 %v2064, %v2096
        %v2129 = vsub.f32 %v2065, %v2099
        %v2130 = vsub.f32 %v2066, %v2102
        %v2131 = vsub.f32 %v2067, %v2105
        %v2132 = vsub.f32 %v2068, %v2108
        %v2133 = vsub.f32 %v2069, %v2111
        %v2134 = vsub.f32 %v2070, %v2114
        %v2135 = vsub.f32 %v2071, %v2117
        %v2136 = vsub.f32 %v2072, %v2120
        %v2137 = vmul.f32 %v2121, 1.442695
        %v2138 = vpow.pop %v2137
        %v2139 = vmul.f32 %v2122, 1.442695
        %v2140 = vpow.pop %v2139
        %v2141 = vmul.f32 %v2123, 1.442695
        %v2142 = vpow.pop %v2141
        %v2143 = vmul.f32 %v2124, 1.442695
        %v2144 = vpow.pop %v2143
        %v2145 = vmul.f32 %v2125, 1.442695
        %v2146 = vpow.pop %v2145
        %v2147 = vmul.f32 %v2126, 1.442695
        %v2148 = vpow.pop %v2147
        %v2149 = vmul.f32 %v2127, 1.442695
        %v2150 = vpow.pop %v2149
        %v2151 = vmul.f32 %v2128, 1.442695
        %v2152 = vpow.pop %v2151
        %v2153 = vmul.f32 %v2129, 1.442695
        %v2154 = vpow.pop %v2153
        %v2155 = vmul.f32 %v2130, 1.442695
        %v2156 = vpow.pop %v2155
        %v2157 = vmul.f32 %v2131, 1.442695
        %v2158 = vpow.pop %v2157
        %v2159 = vmul.f32 %v2132, 1.442695
        %v2160 = vpow.pop %v2159
        %v2161 = vmul.f32 %v2133, 1.442695
        %v2162 = vpow.pop %v2161
        %v2163 = vmul.f32 %v2134, 1.442695
        %v2164 = vpow.pop %v2163
        %v2165 = vmul.f32 %v2135, 1.442695
        %v2166 = vpow.pop %v2165
        %v2167 = vmul.f32 %v2136, 1.442695
        %v2168 = vpow.pop %v2167
        %v2169 = vsel %vm1259, %v2138, 0.0
        %2170 = vadd.xlane.f32.xlu0 %v2169
        %v2171 = vpop.xlane.xlu0 %2170
        %v2172 = vsel %vm1259, %v2140, 0.0
        %2173 = vadd.xlane.f32.xlu0 %v2172
        %v2174 = vpop.xlane.xlu0 %2173
        %v2175 = vsel %vm1259, %v2142, 0.0
        %2176 = vadd.xlane.f32.xlu0 %v2175
        %v2177 = vpop.xlane.xlu0 %2176
        %v2178 = vsel %vm1259, %v2144, 0.0
        %2179 = vadd.xlane.f32.xlu0 %v2178
        %v2180 = vpop.xlane.xlu0 %2179
        %v2181 = vsel %vm1259, %v2146, 0.0
        %2182 = vadd.xlane.f32.xlu0 %v2181
        %v2183 = vpop.xlane.xlu0 %2182
        %v2184 = vsel %vm1259, %v2148, 0.0
        %2185 = vadd.xlane.f32.xlu0 %v2184
        %v2186 = vpop.xlane.xlu0 %2185
        %v2187 = vsel %vm1259, %v2150, 0.0
        %2188 = vadd.xlane.f32.xlu0 %v2187
        %v2189 = vpop.xlane.xlu0 %2188
        %v2190 = vsel %vm1259, %v2152, 0.0
        %2191 = vadd.xlane.f32.xlu0 %v2190
        %v2192 = vpop.xlane.xlu0 %2191
        %v2193 = vsel %vm1259, %v2154, 0.0
        %2194 = vadd.xlane.f32.xlu0 %v2193
        %v2195 = vpop.xlane.xlu0 %2194
        %v2196 = vsel %vm1259, %v2156, 0.0
        %2197 = vadd.xlane.f32.xlu0 %v2196
        %v2198 = vpop.xlane.xlu0 %2197
        %v2199 = vsel %vm1259, %v2158, 0.0
        %2200 = vadd.xlane.f32.xlu0 %v2199
        %v2201 = vpop.xlane.xlu0 %2200
        %v2202 = vsel %vm1259, %v2160, 0.0
        %2203 = vadd.xlane.f32.xlu0 %v2202
        %v2204 = vpop.xlane.xlu0 %2203
        %v2205 = vsel %vm1259, %v2162, 0.0
        %2206 = vadd.xlane.f32.xlu0 %v2205
        %v2207 = vpop.xlane.xlu0 %2206
        %v2208 = vsel %vm1259, %v2164, 0.0
        %2209 = vadd.xlane.f32.xlu0 %v2208
        %v2210 = vpop.xlane.xlu0 %2209
        %v2211 = vsel %vm1259, %v2166, 0.0
        %2212 = vadd.xlane.f32.xlu0 %v2211
        %v2213 = vpop.xlane.xlu0 %2212
        %v2214 = vsel %vm1259, %v2168, 0.0
        %2215 = vadd.xlane.f32.xlu0 %v2214
        %v2216 = vpop.xlane.xlu0 %2215
        %v2217 = vrcp.pop %v2171
        %v2218 = vmul.f32 %v2138, %v2217
        %v2219 = vrcp.pop %v2174
        %v2220 = vmul.f32 %v2140, %v2219
        %v2221 = vrcp.pop %v2177
        %v2222 = vmul.f32 %v2142, %v2221
        %v2223 = vrcp.pop %v2180
        %v2224 = vmul.f32 %v2144, %v2223
        %v2225 = vrcp.pop %v2183
        %v2226 = vmul.f32 %v2146, %v2225
        %v2227 = vrcp.pop %v2186
        %v2228 = vmul.f32 %v2148, %v2227
        %v2229 = vrcp.pop %v2189
        %v2230 = vmul.f32 %v2150, %v2229
        %v2231 = vrcp.pop %v2192
        %v2232 = vmul.f32 %v2152, %v2231
        %v2233 = vrcp.pop %v2195
        %v2234 = vmul.f32 %v2154, %v2233
        %v2235 = vrcp.pop %v2198
        %v2236 = vmul.f32 %v2156, %v2235
        %v2237 = vrcp.pop %v2201
        %v2238 = vmul.f32 %v2158, %v2237
        %v2239 = vrcp.pop %v2204
        %v2240 = vmul.f32 %v2160, %v2239
        %v2241 = vrcp.pop %v2207
        %v2242 = vmul.f32 %v2162, %v2241
        %v2243 = vrcp.pop %v2210
        %v2244 = vmul.f32 %v2164, %v2243
        %v2245 = vrcp.pop %v2213
        %v2246 = vmul.f32 %v2166, %v2245
        %v2247 = vrcp.pop %v2216
        %v2248 = vmul.f32 %v2168, %v2247
        %2257 = vrot.lane.b32.xlu0 %v896, 96
        %v2258 = vpop.permute.xlu0 %2257
        %2259 = vrot.lane.b32.xlu0 %v897, 96
        %v2260 = vpop.permute.xlu0 %2259
        %2261 = vrot.lane.b32.xlu0 %v898, 96
        %v2262 = vpop.permute.xlu0 %2261
        %2263 = vrot.lane.b32.xlu0 %v899, 96
        %v2264 = vpop.permute.xlu0 %2263
        %2265 = vrot.lane.b32.xlu0 %v900, 96
        %v2266 = vpop.permute.xlu0 %2265
        %2267 = vrot.lane.b32.xlu0 %v901, 96
        %v2268 = vpop.permute.xlu0 %2267
        %2269 = vrot.lane.b32.xlu0 %v902, 96
        %v2270 = vpop.permute.xlu0 %2269
        %2271 = vrot.lane.b32.xlu0 %v903, 96
        %v2272 = vpop.permute.xlu0 %2271
        %v2282 = vsel %vm1259, %v2218, 0
        %v2285 = vsel %vm1259, %v2220, 0
        %v2288 = vsel %vm1259, %v2222, 0
        %v2291 = vsel %vm1259, %v2224, 0
        %v2294 = vsel %vm1259, %v2226, 0
        %v2297 = vsel %vm1259, %v2228, 0
        %v2300 = vsel %vm1259, %v2230, 0
        %v2303 = vsel %vm1259, %v2232, 0
        %2305 = vmatprep.subr.mxu0 0.0
        %2306 = vmatpush1.msra.mxu0 %v2258
        %2307 = vmatprep.subr.mxu0 0.0
        %2308 = vmatpush1.msra.mxu0 %v2260
        %2309 = vmatprep.subr.mxu0 0.0
        %2310 = vmatpush1.msra.mxu0 %v2262
        %2311 = vmatprep.subr.mxu0 0.0
        %2312 = vmatpush1.msra.mxu0 %v2264
        %2313 = vmatprep.subr.mxu0 0.0
        %2314 = vmatpush1.msra.mxu0 %v2266
        %2315 = vmatprep.subr.mxu0 0.0
        %2316 = vmatpush1.msra.mxu0 %v2268
        %2317 = vmatprep.subr.mxu0 0.0
        %2318 = vmatpush1.msra.mxu0 %v2270
        %2319 = vmatprep.subr.mxu0 0.0
        %2320 = vmatpush1.msra.mxu0 %v2272
        %2321 = vmatprep.subr.mxu0 0.0
        %2322 = vmatpush1.msra.mxu0 0.0
        %2323 = vmatprep.subr.mxu0 0.0
        %2324 = vmatpush1.msra.mxu0 0.0
        %2325 = vmatprep.subr.mxu0 0.0
        %2326 = vmatpush1.msra.mxu0 0.0
        %2327 = vmatprep.subr.mxu0 0.0
        %2328 = vmatpush1.msra.mxu0 0.0
        %2329 = vmatprep.subr.mxu0 0.0
        %2330 = vmatpush1.msra.mxu0 0.0
        %2331 = vmatprep.subr.mxu0 0.0
        %2332 = vmatpush1.msra.mxu0 0.0
        %2333 = vmatprep.subr.mxu0 0.0
        %2334 = vmatpush1.msra.mxu0 0.0
        %2335 = vmatprep.subr.mxu0 0.0
        %2336 = vmatpush1.msra.mxu0 0.0
        %2337 = vmatprep.subr.mxu0 0.0
        %2338 = vmatpush1.msra.mxu0 0.0
        %2339 = vmatprep.subr.mxu0 0.0
        %2340 = vmatpush1.msra.mxu0 0.0
        %2341 = vmatprep.subr.mxu0 0.0
        %2342 = vmatpush1.msra.mxu0 0.0
        %2343 = vmatprep.subr.mxu0 0.0
        %2344 = vmatpush1.msra.mxu0 0.0
        %2345 = vmatprep.subr.mxu0 0.0
        %2346 = vmatpush1.msra.mxu0 0.0
        %2347 = vmatprep.subr.mxu0 0.0
        %2348 = vmatpush1.msra.mxu0 0.0
        %2349 = vmatprep.subr.mxu0 0.0
        %2350 = vmatpush1.msra.mxu0 0.0
        %2351 = vmatprep.subr.mxu0 0.0
        %2352 = vmatpush1.msra.mxu0 0.0
        %2353 = vmatprep.subr.mxu0 0.0
        %2354 = vmatpush1.msra.mxu0 0.0
        %2355 = vmatprep.subr.mxu0 0.0
        %2356 = vmatpush1.msra.mxu0 0.0
        %2357 = vmatprep.subr.mxu0 0.0
        %2358 = vmatpush1.msra.mxu0 0.0
        %2359 = vmatprep.subr.mxu0 0.0
        %2360 = vmatpush1.msra.mxu0 0.0
        %2361 = vmatprep.subr.mxu0 0.0
        %2362 = vmatpush1.msra.mxu0 0.0
        %2363 = vmatprep.subr.mxu0 0.0
        %2364 = vmatpush1.msra.mxu0 0.0
        %2365 = vmatprep.subr.mxu0 0.0
        %2366 = vmatpush1.msra.mxu0 0.0
        %2367 = vmatprep.subr.mxu0 0.0
        %2368 = vmatpush1.msra.mxu0 0.0
        %2369 = vmatprep.mubr.f32.mxu0 0.0
        %2370 = vmatmul.mubr.f32.gmra.mrb[0].mxu0 %v2282
        %v2371 = vpop.f32.mrb[0].mxu0
        %v2372 = vadd.f32 0.0, %v2371
        %v2373 = vpop.f32.mrb[0].mxu0
        %2374 = vmatprep.mubr.f32.mxu0 0.0
        %2375 = vmatmul.mubr.f32.gmra.mrb[0].mxu0 %v2285
        %v2376 = vpop.f32.mrb[0].mxu0
        %v2377 = vadd.f32 0.0, %v2376
        %v2378 = vpop.f32.mrb[0].mxu0
        %2379 = vmatprep.mubr.f32.mxu0 0.0
        %2380 = vmatmul.mubr.f32.gmra.mrb[0].mxu0 %v2288
        %v2381 = vpop.f32.mrb[0].mxu0
        %v2382 = vadd.f32 0.0, %v2381
        %v2383 = vpop.f32.mrb[0].mxu0
        %2384 = vmatprep.mubr.f32.mxu0 0.0
        %2385 = vmatmul.mubr.f32.gmra.mrb[0].mxu0 %v2291
        %v2386 = vpop.f32.mrb[0].mxu0
        %v2387 = vadd.f32 0.0, %v2386
        %v2388 = vpop.f32.mrb[0].mxu0
        %2389 = vmatprep.mubr.f32.mxu0 0.0
        %2390 = vmatmul.mubr.f32.gmra.mrb[0].mxu0 %v2294
        %v2391 = vpop.f32.mrb[0].mxu0
        %v2392 = vadd.f32 0.0, %v2391
        %v2393 = vpop.f32.mrb[0].mxu0
        %2394 = vmatprep.mubr.f32.mxu0 0.0
        %2395 = vmatmul.mubr.f32.gmra.mrb[0].mxu0 %v2297
        %v2396 = vpop.f32.mrb[0].mxu0
        %v2397 = vadd.f32 0.0, %v2396
        %v2398 = vpop.f32.mrb[0].mxu0
        %2399 = vmatprep.mubr.f32.mxu0 0.0
        %2400 = vmatmul.mubr.f32.gmra.mrb[0].mxu0 %v2300
        %v2401 = vpop.f32.mrb[0].mxu0
        %v2402 = vadd.f32 0.0, %v2401
        %v2403 = vpop.f32.mrb[0].mxu0
        %2404 = vmatprep.mubr.f32.mxu0 0.0
        %2405 = vmatmul.mubr.f32.gmra.mrb[0].mxu0 %v2303
        %v2406 = vpop.f32.mrb[0].mxu0
        %v2407 = vadd.f32 0.0, %v2406
        %v2408 = vpop.f32.mrb[0].mxu0
        %2409 = vdwg.mxu0
        %2418 = vrot.lane.b32.xlu0 %v904, 96
        %v2419 = vpop.permute.xlu0 %2418
        %2420 = vrot.lane.b32.xlu0 %v905, 96
        %v2421 = vpop.permute.xlu0 %2420
        %2422 = vrot.lane.b32.xlu0 %v906, 96
        %v2423 = vpop.permute.xlu0 %2422
        %2424 = vrot.lane.b32.xlu0 %v907, 96
        %v2425 = vpop.permute.xlu0 %2424
        %2426 = vrot.lane.b32.xlu0 %v908, 96
        %v2427 = vpop.permute.xlu0 %2426
        %2428 = vrot.lane.b32.xlu0 %v909, 96
        %v2429 = vpop.permute.xlu0 %2428
        %2430 = vrot.lane.b32.xlu0 %v910, 96
        %v2431 = vpop.permute.xlu0 %2430
        %2432 = vrot.lane.b32.xlu0 %v911, 96
        %v2433 = vpop.permute.xlu0 %2432
        %v2443 = vsel %vm1259, %v2234, 0
        %v2446 = vsel %vm1259, %v2236, 0
        %v2449 = vsel %vm1259, %v2238, 0
        %v2452 = vsel %vm1259, %v2240, 0
        %v2455 = vsel %vm1259, %v2242, 0
        %v2458 = vsel %vm1259, %v2244, 0
        %v2461 = vsel %vm1259, %v2246, 0
        %v2464 = vsel %vm1259, %v2248, 0
        %2466 = vmatprep.subr.mxu0 0.0
        %2467 = vmatpush1.msra.mxu0 %v2419
        %2468 = vmatprep.subr.mxu0 0.0
        %2469 = vmatpush1.msra.mxu0 %v2421
        %2470 = vmatprep.subr.mxu0 0.0
        %2471 = vmatpush1.msra.mxu0 %v2423
        %2472 = vmatprep.subr.mxu0 0.0
        %2473 = vmatpush1.msra.mxu0 %v2425
        %2474 = vmatprep.subr.mxu0 0.0
        %2475 = vmatpush1.msra.mxu0 %v2427
        %2476 = vmatprep.subr.mxu0 0.0
        %2477 = vmatpush1.msra.mxu0 %v2429
        %2478 = vmatprep.subr.mxu0 0.0
        %2479 = vmatpush1.msra.mxu0 %v2431
        %2480 = vmatprep.subr.mxu0 0.0
        %2481 = vmatpush1.msra.mxu0 %v2433
        %2482 = vmatprep.subr.mxu0 0.0
        %2483 = vmatpush1.msra.mxu0 0.0
        %2484 = vmatprep.subr.mxu0 0.0
        %2485 = vmatpush1.msra.mxu0 0.0
        %2486 = vmatprep.subr.mxu0 0.0
        %2487 = vmatpush1.msra.mxu0 0.0
        %2488 = vmatprep.subr.mxu0 0.0
        %2489 = vmatpush1.msra.mxu0 0.0
        %2490 = vmatprep.subr.mxu0 0.0
        %2491 = vmatpush1.msra.mxu0 0.0
        %2492 = vmatprep.subr.mxu0 0.0
        %2493 = vmatpush1.msra.mxu0 0.0
        %2494 = vmatprep.subr.mxu0 0.0
        %2495 = vmatpush1.msra.mxu0 0.0
        %2496 = vmatprep.subr.mxu0 0.0
        %2497 = vmatpush1.msra.mxu0 0.0
        %2498 = vmatprep.subr.mxu0 0.0
        %2499 = vmatpush1.msra.mxu0 0.0
        %2500 = vmatprep.subr.mxu0 0.0
        %2501 = vmatpush1.msra.mxu0 0.0
        %2502 = vmatprep.subr.mxu0 0.0
        %2503 = vmatpush1.msra.mxu0 0.0
        %2504 = vmatprep.subr.mxu0 0.0
        %2505 = vmatpush1.msra.mxu0 0.0
        %2506 = vmatprep.subr.mxu0 0.0
        %2507 = vmatpush1.msra.mxu0 0.0
        %2508 = vmatprep.subr.mxu0 0.0
        %2509 = vmatpush1.msra.mxu0 0.0
        %2510 = vmatprep.subr.mxu0 0.0
        %2511 = vmatpush1.msra.mxu0 0.0
        %2512 = vmatprep.subr.mxu0 0.0
        %2513 = vmatpush1.msra.mxu0 0.0
        %2514 = vmatprep.subr.mxu0 0.0
        %2515 = vmatpush1.msra.mxu0 0.0
        %2516 = vmatprep.subr.mxu0 0.0
        %2517 = vmatpush1.msra.mxu0 0.0
        %2518 = vmatprep.subr.mxu0 0.0
        %2519 = vmatpush1.msra.mxu0 0.0
        %2520 = vmatprep.subr.mxu0 0.0
        %2521 = vmatpush1.msra.mxu0 0.0
        %2522 = vmatprep.subr.mxu0 0.0
        %2523 = vmatpush1.msra.mxu0 0.0
        %2524 = vmatprep.subr.mxu0 0.0
        %2525 = vmatpush1.msra.mxu0 0.0
        %2526 = vmatprep.subr.mxu0 0.0
        %2527 = vmatpush1.msra.mxu0 0.0
        %2528 = vmatprep.subr.mxu0 0.0
        %2529 = vmatpush1.msra.mxu0 0.0
        %2530 = vmatprep.mubr.f32.mxu0 0.0
        %2531 = vmatmul.mubr.f32.gmra.mrb[0].mxu0 %v2443
        %v2532 = vpop.f32.mrb[0].mxu0
        %v2533 = vadd.f32 0.0, %v2532
        %v2534 = vpop.f32.mrb[0].mxu0
        %2535 = vmatprep.mubr.f32.mxu0 0.0
        %2536 = vmatmul.mubr.f32.gmra.mrb[0].mxu0 %v2446
        %v2537 = vpop.f32.mrb[0].mxu0
        %v2538 = vadd.f32 0.0, %v2537
        %v2539 = vpop.f32.mrb[0].mxu0
        %2540 = vmatprep.mubr.f32.mxu0 0.0
        %2541 = vmatmul.mubr.f32.gmra.mrb[0].mxu0 %v2449
        %v2542 = vpop.f32.mrb[0].mxu0
        %v2543 = vadd.f32 0.0, %v2542
        %v2544 = vpop.f32.mrb[0].mxu0
        %2545 = vmatprep.mubr.f32.mxu0 0.0
        %2546 = vmatmul.mubr.f32.gmra.mrb[0].mxu0 %v2452
        %v2547 = vpop.f32.mrb[0].mxu0
        %v2548 = vadd.f32 0.0, %v2547
        %v2549 = vpop.f32.mrb[0].mxu0
        %2550 = vmatprep.mubr.f32.mxu0 0.0
        %2551 = vmatmul.mubr.f32.gmra.mrb[0].mxu0 %v2455
        %v2552 = vpop.f32.mrb[0].mxu0
        %v2553 = vadd.f32 0.0, %v2552
        %v2554 = vpop.f32.mrb[0].mxu0
        %2555 = vmatprep.mubr.f32.mxu0 0.0
        %2556 = vmatmul.mubr.f32.gmra.mrb[0].mxu0 %v2458
        %v2557 = vpop.f32.mrb[0].mxu0
        %v2558 = vadd.f32 0.0, %v2557
        %v2559 = vpop.f32.mrb[0].mxu0
        %2560 = vmatprep.mubr.f32.mxu0 0.0
        %2561 = vmatmul.mubr.f32.gmra.mrb[0].mxu0 %v2461
        %v2562 = vpop.f32.mrb[0].mxu0
        %v2563 = vadd.f32 0.0, %v2562
        %v2564 = vpop.f32.mrb[0].mxu0
        %2565 = vmatprep.mubr.f32.mxu0 0.0
        %2566 = vmatmul.mubr.f32.gmra.mrb[0].mxu0 %v2464
        %v2567 = vpop.f32.mrb[0].mxu0
        %v2568 = vadd.f32 0.0, %v2567
        %v2569 = vpop.f32.mrb[0].mxu0
        %2570 = vdwg.mxu0
        %2587 = vrot.lane.b32.xlu0 %v2372, 32
        %v2588 = vpop.permute.xlu0 %2587
        %2589 = vrot.lane.b32.xlu0 %v2377, 32
        %v2590 = vpop.permute.xlu0 %2589
        %2591 = vrot.lane.b32.xlu0 %v2382, 32
        %v2592 = vpop.permute.xlu0 %2591
        %2593 = vrot.lane.b32.xlu0 %v2387, 32
        %v2594 = vpop.permute.xlu0 %2593
        %2595 = vrot.lane.b32.xlu0 %v2392, 32
        %v2596 = vpop.permute.xlu0 %2595
        %2597 = vrot.lane.b32.xlu0 %v2397, 32
        %v2598 = vpop.permute.xlu0 %2597
        %2599 = vrot.lane.b32.xlu0 %v2402, 32
        %v2600 = vpop.permute.xlu0 %2599
        %2601 = vrot.lane.b32.xlu0 %v2407, 32
        %v2602 = vpop.permute.xlu0 %2601
        %2603 = vrot.lane.b32.xlu0 %v2533, 32
        %v2604 = vpop.permute.xlu0 %2603
        %2605 = vrot.lane.b32.xlu0 %v2538, 32
        %v2606 = vpop.permute.xlu0 %2605
        %2607 = vrot.lane.b32.xlu0 %v2543, 32
        %v2608 = vpop.permute.xlu0 %2607
        %2609 = vrot.lane.b32.xlu0 %v2548, 32
        %v2610 = vpop.permute.xlu0 %2609
        %2611 = vrot.lane.b32.xlu0 %v2553, 32
        %v2612 = vpop.permute.xlu0 %2611
        %2613 = vrot.lane.b32.xlu0 %v2558, 32
        %v2614 = vpop.permute.xlu0 %2613
        %2615 = vrot.lane.b32.xlu0 %v2563, 32
        %v2616 = vpop.permute.xlu0 %2615
        %2617 = vrot.lane.b32.xlu0 %v2568, 32
        %v2618 = vpop.permute.xlu0 %2617
        %vm2635 = vcmask 523520
        %2636 = vst.msk [vmem:[#allocation2] sm:$0xff] %vm2635, %v2588
        %2637 = vst.msk [vmem:[#allocation2 + $0x8] sm:$0xff] %vm2635, %v2590
        %2638 = vst.msk [vmem:[#allocation2 + $0x10] sm:$0xff] %vm2635, %v2592
        %2639 = vst.msk [vmem:[#allocation2 + $0x18] sm:$0xff] %vm2635, %v2594
        %2640 = vst.msk [vmem:[#allocation2 + $0x20] sm:$0xff] %vm2635, %v2596
        %2641 = vst.msk [vmem:[#allocation2 + $0x28] sm:$0xff] %vm2635, %v2598
        %2642 = vst.msk [vmem:[#allocation2 + $0x30] sm:$0xff] %vm2635, %v2600
        %2643 = vst.msk [vmem:[#allocation2 + $0x38] sm:$0xff] %vm2635, %v2602
        %2644 = vst.msk [vmem:[#allocation2 + $0x40] sm:$0xff] %vm2635, %v2604
        %2645 = vst.msk [vmem:[#allocation2 + $0x48] sm:$0xff] %vm2635, %v2606
        %2646 = vst.msk [vmem:[#allocation2 + $0x50] sm:$0xff] %vm2635, %v2608
        %2647 = vst.msk [vmem:[#allocation2 + $0x58] sm:$0xff] %vm2635, %v2610
        %2648 = vst.msk [vmem:[#allocation2 + $0x60] sm:$0xff] %vm2635, %v2612
        %2649 = vst.msk [vmem:[#allocation2 + $0x68] sm:$0xff] %vm2635, %v2614
        %2650 = vst.msk [vmem:[#allocation2 + $0x70] sm:$0xff] %vm2635, %v2616
        %2651 = vst.msk [vmem:[#allocation2 + $0x78] sm:$0xff] %vm2635, %v2618
        %s2652 = scalar_lea.vmem [#allocation9], 128
        %v2653 = vld [vmem:[%s2652] sm:$0xff]
        %v2654 = vld [vmem:[%s2652 + $0x8] sm:$0xff]
        %v2655 = vld [vmem:[%s2652 + $0x10] sm:$0xff]
        %v2656 = vld [vmem:[%s2652 + $0x18] sm:$0xff]
        %v2657 = vld [vmem:[%s2652 + $0x20] sm:$0xff]
        %v2658 = vld [vmem:[%s2652 + $0x28] sm:$0xff]
        %v2659 = vld [vmem:[%s2652 + $0x30] sm:$0xff]
        %v2660 = vld [vmem:[%s2652 + $0x38] sm:$0xff]
        %2661 = vrot.lane.b32.xlu0 %v864, 64
        %v2662 = vpop.permute.xlu0 %2661
        %2663 = vrot.lane.b32.xlu0 %v865, 64
        %v2664 = vpop.permute.xlu0 %2663
        %2665 = vrot.lane.b32.xlu0 %v866, 64
        %v2666 = vpop.permute.xlu0 %2665
        %2667 = vrot.lane.b32.xlu0 %v867, 64
        %v2668 = vpop.permute.xlu0 %2667
        %2669 = vrot.lane.b32.xlu0 %v868, 64
        %v2670 = vpop.permute.xlu0 %2669
        %2671 = vrot.lane.b32.xlu0 %v869, 64
        %v2672 = vpop.permute.xlu0 %2671
        %2673 = vrot.lane.b32.xlu0 %v870, 64
        %v2674 = vpop.permute.xlu0 %2673
        %2675 = vrot.lane.b32.xlu0 %v871, 64
        %v2676 = vpop.permute.xlu0 %2675
        %2677 = vrot.lane.b32.xlu0 %v627, 64
        %v2678 = vpop.permute.xlu0 %2677
        %2679 = vrot.lane.b32.xlu0 %v633, 64
        %v2680 = vpop.permute.xlu0 %2679
        %2681 = vrot.lane.b32.xlu0 %v639, 64
        %v2682 = vpop.permute.xlu0 %2681
        %2683 = vrot.lane.b32.xlu0 %v645, 64
        %v2684 = vpop.permute.xlu0 %2683
        %2685 = vrot.lane.b32.xlu0 %v651, 64
        %v2686 = vpop.permute.xlu0 %2685
        %2687 = vrot.lane.b32.xlu0 %v657, 64
        %v2688 = vpop.permute.xlu0 %2687
        %2689 = vrot.lane.b32.xlu0 %v663, 64
        %v2690 = vpop.permute.xlu0 %2689
        %2691 = vrot.lane.b32.xlu0 %v669, 64
        %v2692 = vpop.permute.xlu0 %2691
        %v2693 = vsel %vm936, %v2662, 0
        %v2695 = vsel %vm936, %v2664, 0
        %v2697 = vsel %vm936, %v2666, 0
        %v2699 = vsel %vm936, %v2668, 0
        %v2701 = vsel %vm936, %v2670, 0
        %v2703 = vsel %vm936, %v2672, 0
        %v2705 = vsel %vm936, %v2674, 0
        %v2707 = vsel %vm936, %v2676, 0
        %v2709 = vsel %vm936, %v2678, 0
        %v2711 = vsel %vm936, %v2680, 0
        %v2713 = vsel %vm936, %v2682, 0
        %v2715 = vsel %vm936, %v2684, 0
        %v2717 = vsel %vm936, %v2686, 0
        %v2719 = vsel %vm936, %v2688, 0
        %v2721 = vsel %vm936, %v2690, 0
        %v2723 = vsel %vm936, %v2692, 0
        %2725 = vmatprep.subr.mxu0 0.0
        %2726 = vmatpush1.xpose.msra.mxu0 %v2709
        %2727 = vmatprep.subr.mxu0 0.0
        %2728 = vmatpush1.xpose.msra.mxu0 %v2711
        %2729 = vmatprep.subr.mxu0 0.0
        %2730 = vmatpush1.xpose.msra.mxu0 %v2713
        %2731 = vmatprep.subr.mxu0 0.0
        %2732 = vmatpush1.xpose.msra.mxu0 %v2715
        %2733 = vmatprep.subr.mxu0 0.0
        %2734 = vmatpush1.xpose.msra.mxu0 %v2717
        %2735 = vmatprep.subr.mxu0 0.0
        %2736 = vmatpush1.xpose.msra.mxu0 %v2719
        %2737 = vmatprep.subr.mxu0 0.0
        %2738 = vmatpush1.xpose.msra.mxu0 %v2721
        %2739 = vmatprep.subr.mxu0 0.0
        %2740 = vmatpush1.xpose.msra.mxu0 %v2723
        %2741 = vmatprep.subr.mxu0 0.0
        %2742 = vmatpush1.xpose.msra.mxu0 0.0
        %2743 = vmatprep.subr.mxu0 0.0
        %2744 = vmatpush1.xpose.msra.mxu0 0.0
        %2745 = vmatprep.subr.mxu0 0.0
        %2746 = vmatpush1.xpose.msra.mxu0 0.0
        %2747 = vmatprep.subr.mxu0 0.0
        %2748 = vmatpush1.xpose.msra.mxu0 0.0
        %2749 = vmatprep.subr.mxu0 0.0
        %2750 = vmatpush1.xpose.msra.mxu0 0.0
        %2751 = vmatprep.subr.mxu0 0.0
        %2752 = vmatpush1.xpose.msra.mxu0 0.0
        %2753 = vmatprep.subr.mxu0 0.0
        %2754 = vmatpush1.xpose.msra.mxu0 0.0
        %2755 = vmatprep.subr.mxu0 0.0
        %2756 = vmatpush1.xpose.msra.mxu0 0.0
        %2757 = vmatprep.subr.mxu0 0.0
        %2758 = vmatpush1.xpose.msra.mxu0 0.0
        %2759 = vmatprep.subr.mxu0 0.0
        %2760 = vmatpush1.xpose.msra.mxu0 0.0
        %2761 = vmatprep.subr.mxu0 0.0
        %2762 = vmatpush1.xpose.msra.mxu0 0.0
        %2763 = vmatprep.subr.mxu0 0.0
        %2764 = vmatpush1.xpose.msra.mxu0 0.0
        %2765 = vmatprep.subr.mxu0 0.0
        %2766 = vmatpush1.xpose.msra.mxu0 0.0
        %2767 = vmatprep.subr.mxu0 0.0
        %2768 = vmatpush1.xpose.msra.mxu0 0.0
        %2769 = vmatprep.subr.mxu0 0.0
        %2770 = vmatpush1.xpose.msra.mxu0 0.0
        %2771 = vmatprep.subr.mxu0 0.0
        %2772 = vmatpush1.xpose.msra.mxu0 0.0
        %2773 = vmatprep.subr.mxu0 0.0
        %2774 = vmatpush1.xpose.msra.mxu0 0.0
        %2775 = vmatprep.subr.mxu0 0.0
        %2776 = vmatpush1.xpose.msra.mxu0 0.0
        %2777 = vmatprep.subr.mxu0 0.0
        %2778 = vmatpush1.xpose.msra.mxu0 0.0
        %2779 = vmatprep.subr.mxu0 0.0
        %2780 = vmatpush1.xpose.msra.mxu0 0.0
        %2781 = vmatprep.subr.mxu0 0.0
        %2782 = vmatpush1.xpose.msra.mxu0 0.0
        %2783 = vmatprep.subr.mxu0 0.0
        %2784 = vmatpush1.xpose.msra.mxu0 0.0
        %2785 = vmatprep.subr.mxu0 0.0
        %2786 = vmatpush1.xpose.msra.mxu0 0.0
        %2787 = vmatprep.subr.mxu0 0.0
        %2788 = vmatpush1.xpose.msra.mxu0 0.0
        %2789 = vmatprep.mubr.f32.mxu0 0.0
        %2790 = vmatmul.mubr.f32.gmra.mrb[0].mxu0 %v2693
        %v2791 = vpop.f32.mrb[0].mxu0
        %v2792 = vadd.f32 %v2653, %v2791
        %v2793 = vpop.f32.mrb[0].mxu0
        %2794 = vmatprep.mubr.f32.mxu0 0.0
        %2795 = vmatmul.mubr.f32.gmra.mrb[0].mxu0 %v2695
        %v2796 = vpop.f32.mrb[0].mxu0
        %v2797 = vadd.f32 %v2654, %v2796
        %v2798 = vpop.f32.mrb[0].mxu0
        %2799 = vmatprep.mubr.f32.mxu0 0.0
        %2800 = vmatmul.mubr.f32.gmra.mrb[0].mxu0 %v2697
        %v2801 = vpop.f32.mrb[0].mxu0
        %v2802 = vadd.f32 %v2655, %v2801
        %v2803 = vpop.f32.mrb[0].mxu0
        %2804 = vmatprep.mubr.f32.mxu0 0.0
        %2805 = vmatmul.mubr.f32.gmra.mrb[0].mxu0 %v2699
        %v2806 = vpop.f32.mrb[0].mxu0
        %v2807 = vadd.f32 %v2656, %v2806
        %v2808 = vpop.f32.mrb[0].mxu0
        %2809 = vmatprep.mubr.f32.mxu0 0.0
        %2810 = vmatmul.mubr.f32.gmra.mrb[0].mxu0 %v2701
        %v2811 = vpop.f32.mrb[0].mxu0
        %v2812 = vadd.f32 %v2657, %v2811
        %v2813 = vpop.f32.mrb[0].mxu0
        %2814 = vmatprep.mubr.f32.mxu0 0.0
        %2815 = vmatmul.mubr.f32.gmra.mrb[0].mxu0 %v2703
        %v2816 = vpop.f32.mrb[0].mxu0
        %v2817 = vadd.f32 %v2658, %v2816
        %v2818 = vpop.f32.mrb[0].mxu0
        %2819 = vmatprep.mubr.f32.mxu0 0.0
        %2820 = vmatmul.mubr.f32.gmra.mrb[0].mxu0 %v2705
        %v2821 = vpop.f32.mrb[0].mxu0
        %v2822 = vadd.f32 %v2659, %v2821
        %v2823 = vpop.f32.mrb[0].mxu0
        %2824 = vmatprep.mubr.f32.mxu0 0.0
        %2825 = vmatmul.mubr.f32.gmra.mrb[0].mxu0 %v2707
        %v2826 = vpop.f32.mrb[0].mxu0
        %v2827 = vadd.f32 %v2660, %v2826
        %v2828 = vpop.f32.mrb[0].mxu0
        %2829 = vdwg.mxu0
        %2830 = vrot.lane.b32.xlu0 %v872, 64
        %v2831 = vpop.permute.xlu0 %2830
        %2832 = vrot.lane.b32.xlu0 %v873, 64
        %v2833 = vpop.permute.xlu0 %2832
        %2834 = vrot.lane.b32.xlu0 %v874, 64
        %v2835 = vpop.permute.xlu0 %2834
        %2836 = vrot.lane.b32.xlu0 %v875, 64
        %v2837 = vpop.permute.xlu0 %2836
        %2838 = vrot.lane.b32.xlu0 %v876, 64
        %v2839 = vpop.permute.xlu0 %2838
        %2840 = vrot.lane.b32.xlu0 %v877, 64
        %v2841 = vpop.permute.xlu0 %2840
        %2842 = vrot.lane.b32.xlu0 %v878, 64
        %v2843 = vpop.permute.xlu0 %2842
        %2844 = vrot.lane.b32.xlu0 %v879, 64
        %v2845 = vpop.permute.xlu0 %2844
        %2846 = vrot.lane.b32.xlu0 %v675, 64
        %v2847 = vpop.permute.xlu0 %2846
        %2848 = vrot.lane.b32.xlu0 %v681, 64
        %v2849 = vpop.permute.xlu0 %2848
        %2850 = vrot.lane.b32.xlu0 %v687, 64
        %v2851 = vpop.permute.xlu0 %2850
        %2852 = vrot.lane.b32.xlu0 %v693, 64
        %v2853 = vpop.permute.xlu0 %2852
        %2854 = vrot.lane.b32.xlu0 %v699, 64
        %v2855 = vpop.permute.xlu0 %2854
        %2856 = vrot.lane.b32.xlu0 %v705, 64
        %v2857 = vpop.permute.xlu0 %2856
        %2858 = vrot.lane.b32.xlu0 %v711, 64
        %v2859 = vpop.permute.xlu0 %2858
        %2860 = vrot.lane.b32.xlu0 %v717, 64
        %v2861 = vpop.permute.xlu0 %2860
        %v2862 = vsel %vm936, %v2831, 0
        %v2864 = vsel %vm936, %v2833, 0
        %v2866 = vsel %vm936, %v2835, 0
        %v2868 = vsel %vm936, %v2837, 0
        %v2870 = vsel %vm936, %v2839, 0
        %v2872 = vsel %vm936, %v2841, 0
        %v2874 = vsel %vm936, %v2843, 0
        %v2876 = vsel %vm936, %v2845, 0
        %v2878 = vsel %vm936, %v2847, 0
        %v2880 = vsel %vm936, %v2849, 0
        %v2882 = vsel %vm936, %v2851, 0
        %v2884 = vsel %vm936, %v2853, 0
        %v2886 = vsel %vm936, %v2855, 0
        %v2888 = vsel %vm936, %v2857, 0
        %v2890 = vsel %vm936, %v2859, 0
        %v2892 = vsel %vm936, %v2861, 0
        %2894 = vmatprep.subr.mxu0 0.0
        %2895 = vmatpush1.xpose.msra.mxu0 %v2878
        %2896 = vmatprep.subr.mxu0 0.0
        %2897 = vmatpush1.xpose.msra.mxu0 %v2880
        %2898 = vmatprep.subr.mxu0 0.0
        %2899 = vmatpush1.xpose.msra.mxu0 %v2882
        %2900 = vmatprep.subr.mxu0 0.0
        %2901 = vmatpush1.xpose.msra.mxu0 %v2884
        %2902 = vmatprep.subr.mxu0 0.0
        %2903 = vmatpush1.xpose.msra.mxu0 %v2886
        %2904 = vmatprep.subr.mxu0 0.0
        %2905 = vmatpush1.xpose.msra.mxu0 %v2888
        %2906 = vmatprep.subr.mxu0 0.0
        %2907 = vmatpush1.xpose.msra.mxu0 %v2890
        %2908 = vmatprep.subr.mxu0 0.0
        %2909 = vmatpush1.xpose.msra.mxu0 %v2892
        %2910 = vmatprep.subr.mxu0 0.0
        %2911 = vmatpush1.xpose.msra.mxu0 0.0
        %2912 = vmatprep.subr.mxu0 0.0
        %2913 = vmatpush1.xpose.msra.mxu0 0.0
        %2914 = vmatprep.subr.mxu0 0.0
        %2915 = vmatpush1.xpose.msra.mxu0 0.0
        %2916 = vmatprep.subr.mxu0 0.0
        %2917 = vmatpush1.xpose.msra.mxu0 0.0
        %2918 = vmatprep.subr.mxu0 0.0
        %2919 = vmatpush1.xpose.msra.mxu0 0.0
        %2920 = vmatprep.subr.mxu0 0.0
        %2921 = vmatpush1.xpose.msra.mxu0 0.0
        %2922 = vmatprep.subr.mxu0 0.0
        %2923 = vmatpush1.xpose.msra.mxu0 0.0
        %2924 = vmatprep.subr.mxu0 0.0
        %2925 = vmatpush1.xpose.msra.mxu0 0.0
        %2926 = vmatprep.subr.mxu0 0.0
        %2927 = vmatpush1.xpose.msra.mxu0 0.0
        %2928 = vmatprep.subr.mxu0 0.0
        %2929 = vmatpush1.xpose.msra.mxu0 0.0
        %2930 = vmatprep.subr.mxu0 0.0
        %2931 = vmatpush1.xpose.msra.mxu0 0.0
        %2932 = vmatprep.subr.mxu0 0.0
        %2933 = vmatpush1.xpose.msra.mxu0 0.0
        %2934 = vmatprep.subr.mxu0 0.0
        %2935 = vmatpush1.xpose.msra.mxu0 0.0
        %2936 = vmatprep.subr.mxu0 0.0
        %2937 = vmatpush1.xpose.msra.mxu0 0.0
        %2938 = vmatprep.subr.mxu0 0.0
        %2939 = vmatpush1.xpose.msra.mxu0 0.0
        %2940 = vmatprep.subr.mxu0 0.0
        %2941 = vmatpush1.xpose.msra.mxu0 0.0
        %2942 = vmatprep.subr.mxu0 0.0
        %2943 = vmatpush1.xpose.msra.mxu0 0.0
        %2944 = vmatprep.subr.mxu0 0.0
        %2945 = vmatpush1.xpose.msra.mxu0 0.0
        %2946 = vmatprep.subr.mxu0 0.0
        %2947 = vmatpush1.xpose.msra.mxu0 0.0
        %2948 = vmatprep.subr.mxu0 0.0
        %2949 = vmatpush1.xpose.msra.mxu0 0.0
        %2950 = vmatprep.subr.mxu0 0.0
        %2951 = vmatpush1.xpose.msra.mxu0 0.0
        %2952 = vmatprep.subr.mxu0 0.0
        %2953 = vmatpush1.xpose.msra.mxu0 0.0
        %2954 = vmatprep.subr.mxu0 0.0
        %2955 = vmatpush1.xpose.msra.mxu0 0.0
        %2956 = vmatprep.subr.mxu0 0.0
        %2957 = vmatpush1.xpose.msra.mxu0 0.0
        %2958 = vmatprep.mubr.f32.mxu0 0.0
        %2959 = vmatmul.mubr.f32.gmra.mrb[0].mxu0 %v2862
        %v2960 = vpop.f32.mrb[0].mxu0
        %v2961 = vadd.f32 %v2653, %v2960
        %v2962 = vpop.f32.mrb[0].mxu0
        %2963 = vmatprep.mubr.f32.mxu0 0.0
        %2964 = vmatmul.mubr.f32.gmra.mrb[0].mxu0 %v2864
        %v2965 = vpop.f32.mrb[0].mxu0
        %v2966 = vadd.f32 %v2654, %v2965
        %v2967 = vpop.f32.mrb[0].mxu0
        %2968 = vmatprep.mubr.f32.mxu0 0.0
        %2969 = vmatmul.mubr.f32.gmra.mrb[0].mxu0 %v2866
        %v2970 = vpop.f32.mrb[0].mxu0
        %v2971 = vadd.f32 %v2655, %v2970
        %v2972 = vpop.f32.mrb[0].mxu0
        %2973 = vmatprep.mubr.f32.mxu0 0.0
        %2974 = vmatmul.mubr.f32.gmra.mrb[0].mxu0 %v2868
        %v2975 = vpop.f32.mrb[0].mxu0
        %v2976 = vadd.f32 %v2656, %v2975
        %v2977 = vpop.f32.mrb[0].mxu0
        %2978 = vmatprep.mubr.f32.mxu0 0.0
        %2979 = vmatmul.mubr.f32.gmra.mrb[0].mxu0 %v2870
        %v2980 = vpop.f32.mrb[0].mxu0
        %v2981 = vadd.f32 %v2657, %v2980
        %v2982 = vpop.f32.mrb[0].mxu0
        %2983 = vmatprep.mubr.f32.mxu0 0.0
        %2984 = vmatmul.mubr.f32.gmra.mrb[0].mxu0 %v2872
        %v2985 = vpop.f32.mrb[0].mxu0
        %v2986 = vadd.f32 %v2658, %v2985
        %v2987 = vpop.f32.mrb[0].mxu0
        %2988 = vmatprep.mubr.f32.mxu0 0.0
        %2989 = vmatmul.mubr.f32.gmra.mrb[0].mxu0 %v2874
        %v2990 = vpop.f32.mrb[0].mxu0
        %v2991 = vadd.f32 %v2659, %v2990
        %v2992 = vpop.f32.mrb[0].mxu0
        %2993 = vmatprep.mubr.f32.mxu0 0.0
        %2994 = vmatmul.mubr.f32.gmra.mrb[0].mxu0 %v2876
        %v2995 = vpop.f32.mrb[0].mxu0
        %v2996 = vadd.f32 %v2660, %v2995
        %v2997 = vpop.f32.mrb[0].mxu0
        %2998 = vdwg.mxu0
        %v2999 = vadd.f32 %v2792, %v912
        %v3000 = vadd.f32 %v2797, %v913
        %v3001 = vadd.f32 %v2802, %v914
        %v3002 = vadd.f32 %v2807, %v915
        %v3003 = vadd.f32 %v2812, %v916
        %v3004 = vadd.f32 %v2817, %v917
        %v3005 = vadd.f32 %v2822, %v918
        %v3006 = vadd.f32 %v2827, %v919
        %v3007 = vadd.f32 %v2961, %v920
        %v3008 = vadd.f32 %v2966, %v921
        %v3009 = vadd.f32 %v2971, %v922
        %v3010 = vadd.f32 %v2976, %v923
        %v3011 = vadd.f32 %v2981, %v924
        %v3012 = vadd.f32 %v2986, %v925
        %v3013 = vadd.f32 %v2991, %v926
        %v3014 = vadd.f32 %v2996, %v927
        %v3015 = vsel %vm1259, %v2999, -inf
        %3016 = vmax.xlane.f32.xlu0 %v3015
        %v3017 = vpop.xlane.xlu0 %3016
        %v3018 = vsel %vm1259, %v3000, -inf
        %3019 = vmax.xlane.f32.xlu0 %v3018
        %v3020 = vpop.xlane.xlu0 %3019
        %v3021 = vsel %vm1259, %v3001, -inf
        %3022 = vmax.xlane.f32.xlu0 %v3021
        %v3023 = vpop.xlane.xlu0 %3022
        %v3024 = vsel %vm1259, %v3002, -inf
        %3025 = vmax.xlane.f32.xlu0 %v3024
        %v3026 = vpop.xlane.xlu0 %3025
        %v3027 = vsel %vm1259, %v3003, -inf
        %3028 = vmax.xlane.f32.xlu0 %v3027
        %v3029 = vpop.xlane.xlu0 %3028
        %v3030 = vsel %vm1259, %v3004, -inf
        %3031 = vmax.xlane.f32.xlu0 %v3030
        %v3032 = vpop.xlane.xlu0 %3031
        %v3033 = vsel %vm1259, %v3005, -inf
        %3034 = vmax.xlane.f32.xlu0 %v3033
        %v3035 = vpop.xlane.xlu0 %3034
        %v3036 = vsel %vm1259, %v3006, -inf
        %3037 = vmax.xlane.f32.xlu0 %v3036
        %v3038 = vpop.xlane.xlu0 %3037
        %v3039 = vsel %vm1259, %v3007, -inf
        %3040 = vmax.xlane.f32.xlu0 %v3039
        %v3041 = vpop.xlane.xlu0 %3040
        %v3042 = vsel %vm1259, %v3008, -inf
        %3043 = vmax.xlane.f32.xlu0 %v3042
        %v3044 = vpop.xlane.xlu0 %3043
        %v3045 = vsel %vm1259, %v3009, -inf
        %3046 = vmax.xlane.f32.xlu0 %v3045
        %v3047 = vpop.xlane.xlu0 %3046
        %v3048 = vsel %vm1259, %v3010, -inf
        %3049 = vmax.xlane.f32.xlu0 %v3048
        %v3050 = vpop.xlane.xlu0 %3049
        %v3051 = vsel %vm1259, %v3011, -inf
        %3052 = vmax.xlane.f32.xlu0 %v3051
        %v3053 = vpop.xlane.xlu0 %3052
        %v3054 = vsel %vm1259, %v3012, -inf
        %3055 = vmax.xlane.f32.xlu0 %v3054
        %v3056 = vpop.xlane.xlu0 %3055
        %v3057 = vsel %vm1259, %v3013, -inf
        %3058 = vmax.xlane.f32.xlu0 %v3057
        %v3059 = vpop.xlane.xlu0 %3058
        %v3060 = vsel %vm1259, %v3014, -inf
        %3061 = vmax.xlane.f32.xlu0 %v3060
        %v3062 = vpop.xlane.xlu0 %3061
        %v3063 = vsub.f32 %v2999, %v3017
        %v3064 = vsub.f32 %v3000, %v3020
        %v3065 = vsub.f32 %v3001, %v3023
        %v3066 = vsub.f32 %v3002, %v3026
        %v3067 = vsub.f32 %v3003, %v3029
        %v3068 = vsub.f32 %v3004, %v3032
        %v3069 = vsub.f32 %v3005, %v3035
        %v3070 = vsub.f32 %v3006, %v3038
        %v3071 = vsub.f32 %v3007, %v3041
        %v3072 = vsub.f32 %v3008, %v3044
        %v3073 = vsub.f32 %v3009, %v3047
        %v3074 = vsub.f32 %v3010, %v3050
        %v3075 = vsub.f32 %v3011, %v3053
        %v3076 = vsub.f32 %v3012, %v3056
        %v3077 = vsub.f32 %v3013, %v3059
        %v3078 = vsub.f32 %v3014, %v3062
        %v3079 = vmul.f32 %v3063, 1.442695
        %v3080 = vpow.pop %v3079
        %v3081 = vmul.f32 %v3064, 1.442695
        %v3082 = vpow.pop %v3081
        %v3083 = vmul.f32 %v3065, 1.442695
        %v3084 = vpow.pop %v3083
        %v3085 = vmul.f32 %v3066, 1.442695
        %v3086 = vpow.pop %v3085
        %v3087 = vmul.f32 %v3067, 1.442695
        %v3088 = vpow.pop %v3087
        %v3089 = vmul.f32 %v3068, 1.442695
        %v3090 = vpow.pop %v3089
        %v3091 = vmul.f32 %v3069, 1.442695
        %v3092 = vpow.pop %v3091
        %v3093 = vmul.f32 %v3070, 1.442695
        %v3094 = vpow.pop %v3093
        %v3095 = vmul.f32 %v3071, 1.442695
        %v3096 = vpow.pop %v3095
        %v3097 = vmul.f32 %v3072, 1.442695
        %v3098 = vpow.pop %v3097
        %v3099 = vmul.f32 %v3073, 1.442695
        %v3100 = vpow.pop %v3099
        %v3101 = vmul.f32 %v3074, 1.442695
        %v3102 = vpow.pop %v3101
        %v3103 = vmul.f32 %v3075, 1.442695
        %v3104 = vpow.pop %v3103
        %v3105 = vmul.f32 %v3076, 1.442695
        %v3106 = vpow.pop %v3105
        %v3107 = vmul.f32 %v3077, 1.442695
        %v3108 = vpow.pop %v3107
        %v3109 = vmul.f32 %v3078, 1.442695
        %v3110 = vpow.pop %v3109
        %v3111 = vsel %vm1259, %v3080, 0.0
        %3112 = vadd.xlane.f32.xlu0 %v3111
        %v3113 = vpop.xlane.xlu0 %3112
        %v3114 = vsel %vm1259, %v3082, 0.0
        %3115 = vadd.xlane.f32.xlu0 %v3114
        %v3116 = vpop.xlane.xlu0 %3115
        %v3117 = vsel %vm1259, %v3084, 0.0
        %3118 = vadd.xlane.f32.xlu0 %v3117
        %v3119 = vpop.xlane.xlu0 %3118
        %v3120 = vsel %vm1259, %v3086, 0.0
        %3121 = vadd.xlane.f32.xlu0 %v3120
        %v3122 = vpop.xlane.xlu0 %3121
        %v3123 = vsel %vm1259, %v3088, 0.0
        %3124 = vadd.xlane.f32.xlu0 %v3123
        %v3125 = vpop.xlane.xlu0 %3124
        %v3126 = vsel %vm1259, %v3090, 0.0
        %3127 = vadd.xlane.f32.xlu0 %v3126
        %v3128 = vpop.xlane.xlu0 %3127
        %v3129 = vsel %vm1259, %v3092, 0.0
        %3130 = vadd.xlane.f32.xlu0 %v3129
        %v3131 = vpop.xlane.xlu0 %3130
        %v3132 = vsel %vm1259, %v3094, 0.0
        %3133 = vadd.xlane.f32.xlu0 %v3132
        %v3134 = vpop.xlane.xlu0 %3133
        %v3135 = vsel %vm1259, %v3096, 0.0
        %3136 = vadd.xlane.f32.xlu0 %v3135
        %v3137 = vpop.xlane.xlu0 %3136
        %v3138 = vsel %vm1259, %v3098, 0.0
        %3139 = vadd.xlane.f32.xlu0 %v3138
        %v3140 = vpop.xlane.xlu0 %3139
        %v3141 = vsel %vm1259, %v3100, 0.0
        %3142 = vadd.xlane.f32.xlu0 %v3141
        %v3143 = vpop.xlane.xlu0 %3142
        %v3144 = vsel %vm1259, %v3102, 0.0
        %3145 = vadd.xlane.f32.xlu0 %v3144
        %v3146 = vpop.xlane.xlu0 %3145
        %v3147 = vsel %vm1259, %v3104, 0.0
        %3148 = vadd.xlane.f32.xlu0 %v3147
        %v3149 = vpop.xlane.xlu0 %3148
        %v3150 = vsel %vm1259, %v3106, 0.0
        %3151 = vadd.xlane.f32.xlu0 %v3150
        %v3152 = vpop.xlane.xlu0 %3151
        %v3153 = vsel %vm1259, %v3108, 0.0
        %3154 = vadd.xlane.f32.xlu0 %v3153
        %v3155 = vpop.xlane.xlu0 %3154
        %v3156 = vsel %vm1259, %v3110, 0.0
        %3157 = vadd.xlane.f32.xlu0 %v3156
        %v3158 = vpop.xlane.xlu0 %3157
        %v3159 = vrcp.pop %v3113
        %v3160 = vmul.f32 %v3080, %v3159
        %v3161 = vrcp.pop %v3116
        %v3162 = vmul.f32 %v3082, %v3161
        %v3163 = vrcp.pop %v3119
        %v3164 = vmul.f32 %v3084, %v3163
        %v3165 = vrcp.pop %v3122
        %v3166 = vmul.f32 %v3086, %v3165
        %v3167 = vrcp.pop %v3125
        %v3168 = vmul.f32 %v3088, %v3167
        %v3169 = vrcp.pop %v3128
        %v3170 = vmul.f32 %v3090, %v3169
        %v3171 = vrcp.pop %v3131
        %v3172 = vmul.f32 %v3092, %v3171
        %v3173 = vrcp.pop %v3134
        %v3174 = vmul.f32 %v3094, %v3173
        %v3175 = vrcp.pop %v3137
        %v3176 = vmul.f32 %v3096, %v3175
        %v3177 = vrcp.pop %v3140
        %v3178 = vmul.f32 %v3098, %v3177
        %v3179 = vrcp.pop %v3143
        %v3180 = vmul.f32 %v3100, %v3179
        %v3181 = vrcp.pop %v3146
        %v3182 = vmul.f32 %v3102, %v3181
        %v3183 = vrcp.pop %v3149
        %v3184 = vmul.f32 %v3104, %v3183
        %v3185 = vrcp.pop %v3152
        %v3186 = vmul.f32 %v3106, %v3185
        %v3187 = vrcp.pop %v3155
        %v3188 = vmul.f32 %v3108, %v3187
        %v3189 = vrcp.pop %v3158
        %v3190 = vmul.f32 %v3110, %v3189
        %3191 = vrot.lane.b32.xlu0 %v896, 64
        %v3192 = vpop.permute.xlu0 %3191
        %3193 = vrot.lane.b32.xlu0 %v897, 64
        %v3194 = vpop.permute.xlu0 %3193
        %3195 = vrot.lane.b32.xlu0 %v898, 64
        %v3196 = vpop.permute.xlu0 %3195
        %3197 = vrot.lane.b32.xlu0 %v899, 64
        %v3198 = vpop.permute.xlu0 %3197
        %3199 = vrot.lane.b32.xlu0 %v900, 64
        %v3200 = vpop.permute.xlu0 %3199
        %3201 = vrot.lane.b32.xlu0 %v901, 64
        %v3202 = vpop.permute.xlu0 %3201
        %3203 = vrot.lane.b32.xlu0 %v902, 64
        %v3204 = vpop.permute.xlu0 %3203
        %3205 = vrot.lane.b32.xlu0 %v903, 64
        %v3206 = vpop.permute.xlu0 %3205
        %v3216 = vsel %vm1259, %v3160, 0
        %v3219 = vsel %vm1259, %v3162, 0
        %v3222 = vsel %vm1259, %v3164, 0
        %v3225 = vsel %vm1259, %v3166, 0
        %v3228 = vsel %vm1259, %v3168, 0
        %v3231 = vsel %vm1259, %v3170, 0
        %v3234 = vsel %vm1259, %v3172, 0
        %v3237 = vsel %vm1259, %v3174, 0
        %3239 = vmatprep.subr.mxu0 0.0
        %3240 = vmatpush1.msra.mxu0 %v3192
        %3241 = vmatprep.subr.mxu0 0.0
        %3242 = vmatpush1.msra.mxu0 %v3194
        %3243 = vmatprep.subr.mxu0 0.0
        %3244 = vmatpush1.msra.mxu0 %v3196
        %3245 = vmatprep.subr.mxu0 0.0
        %3246 = vmatpush1.msra.mxu0 %v3198
        %3247 = vmatprep.subr.mxu0 0.0
        %3248 = vmatpush1.msra.mxu0 %v3200
        %3249 = vmatprep.subr.mxu0 0.0
        %3250 = vmatpush1.msra.mxu0 %v3202
        %3251 = vmatprep.subr.mxu0 0.0
        %3252 = vmatpush1.msra.mxu0 %v3204
        %3253 = vmatprep.subr.mxu0 0.0
        %3254 = vmatpush1.msra.mxu0 %v3206
        %3255 = vmatprep.subr.mxu0 0.0
        %3256 = vmatpush1.msra.mxu0 0.0
        %3257 = vmatprep.subr.mxu0 0.0
        %3258 = vmatpush1.msra.mxu0 0.0
        %3259 = vmatprep.subr.mxu0 0.0
        %3260 = vmatpush1.msra.mxu0 0.0
        %3261 = vmatprep.subr.mxu0 0.0
        %3262 = vmatpush1.msra.mxu0 0.0
        %3263 = vmatprep.subr.mxu0 0.0
        %3264 = vmatpush1.msra.mxu0 0.0
        %3265 = vmatprep.subr.mxu0 0.0
        %3266 = vmatpush1.msra.mxu0 0.0
        %3267 = vmatprep.subr.mxu0 0.0
        %3268 = vmatpush1.msra.mxu0 0.0
        %3269 = vmatprep.subr.mxu0 0.0
        %3270 = vmatpush1.msra.mxu0 0.0
        %3271 = vmatprep.subr.mxu0 0.0
        %3272 = vmatpush1.msra.mxu0 0.0
        %3273 = vmatprep.subr.mxu0 0.0
        %3274 = vmatpush1.msra.mxu0 0.0
        %3275 = vmatprep.subr.mxu0 0.0
        %3276 = vmatpush1.msra.mxu0 0.0
        %3277 = vmatprep.subr.mxu0 0.0
        %3278 = vmatpush1.msra.mxu0 0.0
        %3279 = vmatprep.subr.mxu0 0.0
        %3280 = vmatpush1.msra.mxu0 0.0
        %3281 = vmatprep.subr.mxu0 0.0
        %3282 = vmatpush1.msra.mxu0 0.0
        %3283 = vmatprep.subr.mxu0 0.0
        %3284 = vmatpush1.msra.mxu0 0.0
        %3285 = vmatprep.subr.mxu0 0.0
        %3286 = vmatpush1.msra.mxu0 0.0
        %3287 = vmatprep.subr.mxu0 0.0
        %3288 = vmatpush1.msra.mxu0 0.0
        %3289 = vmatprep.subr.mxu0 0.0
        %3290 = vmatpush1.msra.mxu0 0.0
        %3291 = vmatprep.subr.mxu0 0.0
        %3292 = vmatpush1.msra.mxu0 0.0
        %3293 = vmatprep.subr.mxu0 0.0
        %3294 = vmatpush1.msra.mxu0 0.0
        %3295 = vmatprep.subr.mxu0 0.0
        %3296 = vmatpush1.msra.mxu0 0.0
        %3297 = vmatprep.subr.mxu0 0.0
        %3298 = vmatpush1.msra.mxu0 0.0
        %3299 = vmatprep.subr.mxu0 0.0
        %3300 = vmatpush1.msra.mxu0 0.0
        %3301 = vmatprep.subr.mxu0 0.0
        %3302 = vmatpush1.msra.mxu0 0.0
        %3303 = vmatprep.mubr.f32.mxu0 0.0
        %3304 = vmatmul.mubr.f32.gmra.mrb[0].mxu0 %v3216
        %v3305 = vpop.f32.mrb[0].mxu0
        %v3306 = vadd.f32 0.0, %v3305
        %v3307 = vpop.f32.mrb[0].mxu0
        %3308 = vmatprep.mubr.f32.mxu0 0.0
        %3309 = vmatmul.mubr.f32.gmra.mrb[0].mxu0 %v3219
        %v3310 = vpop.f32.mrb[0].mxu0
        %v3311 = vadd.f32 0.0, %v3310
        %v3312 = vpop.f32.mrb[0].mxu0
        %3313 = vmatprep.mubr.f32.mxu0 0.0
        %3314 = vmatmul.mubr.f32.gmra.mrb[0].mxu0 %v3222
        %v3315 = vpop.f32.mrb[0].mxu0
        %v3316 = vadd.f32 0.0, %v3315
        %v3317 = vpop.f32.mrb[0].mxu0
        %3318 = vmatprep.mubr.f32.mxu0 0.0
        %3319 = vmatmul.mubr.f32.gmra.mrb[0].mxu0 %v3225
        %v3320 = vpop.f32.mrb[0].mxu0
        %v3321 = vadd.f32 0.0, %v3320
        %v3322 = vpop.f32.mrb[0].mxu0
        %3323 = vmatprep.mubr.f32.mxu0 0.0
        %3324 = vmatmul.mubr.f32.gmra.mrb[0].mxu0 %v3228
        %v3325 = vpop.f32.mrb[0].mxu0
        %v3326 = vadd.f32 0.0, %v3325
        %v3327 = vpop.f32.mrb[0].mxu0
        %3328 = vmatprep.mubr.f32.mxu0 0.0
        %3329 = vmatmul.mubr.f32.gmra.mrb[0].mxu0 %v3231
        %v3330 = vpop.f32.mrb[0].mxu0
        %v3331 = vadd.f32 0.0, %v3330
        %v3332 = vpop.f32.mrb[0].mxu0
        %3333 = vmatprep.mubr.f32.mxu0 0.0
        %3334 = vmatmul.mubr.f32.gmra.mrb[0].mxu0 %v3234
        %v3335 = vpop.f32.mrb[0].mxu0
        %v3336 = vadd.f32 0.0, %v3335
        %v3337 = vpop.f32.mrb[0].mxu0
        %3338 = vmatprep.mubr.f32.mxu0 0.0
        %3339 = vmatmul.mubr.f32.gmra.mrb[0].mxu0 %v3237
        %v3340 = vpop.f32.mrb[0].mxu0
        %v3341 = vadd.f32 0.0, %v3340
        %v3342 = vpop.f32.mrb[0].mxu0
        %3343 = vdwg.mxu0
        %3344 = vrot.lane.b32.xlu0 %v904, 64
        %v3345 = vpop.permute.xlu0 %3344
        %3346 = vrot.lane.b32.xlu0 %v905, 64
        %v3347 = vpop.permute.xlu0 %3346
        %3348 = vrot.lane.b32.xlu0 %v906, 64
        %v3349 = vpop.permute.xlu0 %3348
        %3350 = vrot.lane.b32.xlu0 %v907, 64
        %v3351 = vpop.permute.xlu0 %3350
        %3352 = vrot.lane.b32.xlu0 %v908, 64
        %v3353 = vpop.permute.xlu0 %3352
        %3354 = vrot.lane.b32.xlu0 %v909, 64
        %v3355 = vpop.permute.xlu0 %3354
        %3356 = vrot.lane.b32.xlu0 %v910, 64
        %v3357 = vpop.permute.xlu0 %3356
        %3358 = vrot.lane.b32.xlu0 %v911, 64
        %v3359 = vpop.permute.xlu0 %3358
        %v3369 = vsel %vm1259, %v3176, 0
        %v3372 = vsel %vm1259, %v3178, 0
        %v3375 = vsel %vm1259, %v3180, 0
        %v3378 = vsel %vm1259, %v3182, 0
        %v3381 = vsel %vm1259, %v3184, 0
        %v3384 = vsel %vm1259, %v3186, 0
        %v3387 = vsel %vm1259, %v3188, 0
        %v3390 = vsel %vm1259, %v3190, 0
        %3392 = vmatprep.subr.mxu0 0.0
        %3393 = vmatpush1.msra.mxu0 %v3345
        %3394 = vmatprep.subr.mxu0 0.0
        %3395 = vmatpush1.msra.mxu0 %v3347
        %3396 = vmatprep.subr.mxu0 0.0
        %3397 = vmatpush1.msra.mxu0 %v3349
        %3398 = vmatprep.subr.mxu0 0.0
        %3399 = vmatpush1.msra.mxu0 %v3351
        %3400 = vmatprep.subr.mxu0 0.0
        %3401 = vmatpush1.msra.mxu0 %v3353
        %3402 = vmatprep.subr.mxu0 0.0
        %3403 = vmatpush1.msra.mxu0 %v3355
        %3404 = vmatprep.subr.mxu0 0.0
        %3405 = vmatpush1.msra.mxu0 %v3357
        %3406 = vmatprep.subr.mxu0 0.0
        %3407 = vmatpush1.msra.mxu0 %v3359
        %3408 = vmatprep.subr.mxu0 0.0
        %3409 = vmatpush1.msra.mxu0 0.0
        %3410 = vmatprep.subr.mxu0 0.0
        %3411 = vmatpush1.msra.mxu0 0.0
        %3412 = vmatprep.subr.mxu0 0.0
        %3413 = vmatpush1.msra.mxu0 0.0
        %3414 = vmatprep.subr.mxu0 0.0
        %3415 = vmatpush1.msra.mxu0 0.0
        %3416 = vmatprep.subr.mxu0 0.0
        %3417 = vmatpush1.msra.mxu0 0.0
        %3418 = vmatprep.subr.mxu0 0.0
        %3419 = vmatpush1.msra.mxu0 0.0
        %3420 = vmatprep.subr.mxu0 0.0
        %3421 = vmatpush1.msra.mxu0 0.0
        %3422 = vmatprep.subr.mxu0 0.0
        %3423 = vmatpush1.msra.mxu0 0.0
        %3424 = vmatprep.subr.mxu0 0.0
        %3425 = vmatpush1.msra.mxu0 0.0
        %3426 = vmatprep.subr.mxu0 0.0
        %3427 = vmatpush1.msra.mxu0 0.0
        %3428 = vmatprep.subr.mxu0 0.0
        %3429 = vmatpush1.msra.mxu0 0.0
        %3430 = vmatprep.subr.mxu0 0.0
        %3431 = vmatpush1.msra.mxu0 0.0
        %3432 = vmatprep.subr.mxu0 0.0
        %3433 = vmatpush1.msra.mxu0 0.0
        %3434 = vmatprep.subr.mxu0 0.0
        %3435 = vmatpush1.msra.mxu0 0.0
        %3436 = vmatprep.subr.mxu0 0.0
        %3437 = vmatpush1.msra.mxu0 0.0
        %3438 = vmatprep.subr.mxu0 0.0
        %3439 = vmatpush1.msra.mxu0 0.0
        %3440 = vmatprep.subr.mxu0 0.0
        %3441 = vmatpush1.msra.mxu0 0.0
        %3442 = vmatprep.subr.mxu0 0.0
        %3443 = vmatpush1.msra.mxu0 0.0
        %3444 = vmatprep.subr.mxu0 0.0
        %3445 = vmatpush1.msra.mxu0 0.0
        %3446 = vmatprep.subr.mxu0 0.0
        %3447 = vmatpush1.msra.mxu0 0.0
        %3448 = vmatprep.subr.mxu0 0.0
        %3449 = vmatpush1.msra.mxu0 0.0
        %3450 = vmatprep.subr.mxu0 0.0
        %3451 = vmatpush1.msra.mxu0 0.0
        %3452 = vmatprep.subr.mxu0 0.0
        %3453 = vmatpush1.msra.mxu0 0.0
        %3454 = vmatprep.subr.mxu0 0.0
        %3455 = vmatpush1.msra.mxu0 0.0
        %3456 = vmatprep.mubr.f32.mxu0 0.0
        %3457 = vmatmul.mubr.f32.gmra.mrb[0].mxu0 %v3369
        %v3458 = vpop.f32.mrb[0].mxu0
        %v3459 = vadd.f32 0.0, %v3458
        %v3460 = vpop.f32.mrb[0].mxu0
        %3461 = vmatprep.mubr.f32.mxu0 0.0
        %3462 = vmatmul.mubr.f32.gmra.mrb[0].mxu0 %v3372
        %v3463 = vpop.f32.mrb[0].mxu0
        %v3464 = vadd.f32 0.0, %v3463
        %v3465 = vpop.f32.mrb[0].mxu0
        %3466 = vmatprep.mubr.f32.mxu0 0.0
        %3467 = vmatmul.mubr.f32.gmra.mrb[0].mxu0 %v3375
        %v3468 = vpop.f32.mrb[0].mxu0
        %v3469 = vadd.f32 0.0, %v3468
        %v3470 = vpop.f32.mrb[0].mxu0
        %3471 = vmatprep.mubr.f32.mxu0 0.0
        %3472 = vmatmul.mubr.f32.gmra.mrb[0].mxu0 %v3378
        %v3473 = vpop.f32.mrb[0].mxu0
        %v3474 = vadd.f32 0.0, %v3473
        %v3475 = vpop.f32.mrb[0].mxu0
        %3476 = vmatprep.mubr.f32.mxu0 0.0
        %3477 = vmatmul.mubr.f32.gmra.mrb[0].mxu0 %v3381
        %v3478 = vpop.f32.mrb[0].mxu0
        %v3479 = vadd.f32 0.0, %v3478
        %v3480 = vpop.f32.mrb[0].mxu0
        %3481 = vmatprep.mubr.f32.mxu0 0.0
        %3482 = vmatmul.mubr.f32.gmra.mrb[0].mxu0 %v3384
        %v3483 = vpop.f32.mrb[0].mxu0
        %v3484 = vadd.f32 0.0, %v3483
        %v3485 = vpop.f32.mrb[0].mxu0
        %3486 = vmatprep.mubr.f32.mxu0 0.0
        %3487 = vmatmul.mubr.f32.gmra.mrb[0].mxu0 %v3387
        %v3488 = vpop.f32.mrb[0].mxu0
        %v3489 = vadd.f32 0.0, %v3488
        %v3490 = vpop.f32.mrb[0].mxu0
        %3491 = vmatprep.mubr.f32.mxu0 0.0
        %3492 = vmatmul.mubr.f32.gmra.mrb[0].mxu0 %v3390
        %v3493 = vpop.f32.mrb[0].mxu0
        %v3494 = vadd.f32 0.0, %v3493
        %v3495 = vpop.f32.mrb[0].mxu0
        %3496 = vdwg.mxu0
        %3513 = vrot.lane.b32.xlu0 %v3306, 64
        %v3514 = vpop.permute.xlu0 %3513
        %3515 = vrot.lane.b32.xlu0 %v3311, 64
        %v3516 = vpop.permute.xlu0 %3515
        %3517 = vrot.lane.b32.xlu0 %v3316, 64
        %v3518 = vpop.permute.xlu0 %3517
        %3519 = vrot.lane.b32.xlu0 %v3321, 64
        %v3520 = vpop.permute.xlu0 %3519
        %3521 = vrot.lane.b32.xlu0 %v3326, 64
        %v3522 = vpop.permute.xlu0 %3521
        %3523 = vrot.lane.b32.xlu0 %v3331, 64
        %v3524 = vpop.permute.xlu0 %3523
        %3525 = vrot.lane.b32.xlu0 %v3336, 64
        %v3526 = vpop.permute.xlu0 %3525
        %3527 = vrot.lane.b32.xlu0 %v3341, 64
        %v3528 = vpop.permute.xlu0 %3527
        %3529 = vrot.lane.b32.xlu0 %v3459, 64
        %v3530 = vpop.permute.xlu0 %3529
        %3531 = vrot.lane.b32.xlu0 %v3464, 64
        %v3532 = vpop.permute.xlu0 %3531
        %3533 = vrot.lane.b32.xlu0 %v3469, 64
        %v3534 = vpop.permute.xlu0 %3533
        %3535 = vrot.lane.b32.xlu0 %v3474, 64
        %v3536 = vpop.permute.xlu0 %3535
        %3537 = vrot.lane.b32.xlu0 %v3479, 64
        %v3538 = vpop.permute.xlu0 %3537
        %3539 = vrot.lane.b32.xlu0 %v3484, 64
        %v3540 = vpop.permute.xlu0 %3539
        %3541 = vrot.lane.b32.xlu0 %v3489, 64
        %v3542 = vpop.permute.xlu0 %3541
        %3543 = vrot.lane.b32.xlu0 %v3494, 64
        %v3544 = vpop.permute.xlu0 %3543
        %vm3561 = vcmask 785920
        %3562 = vst.msk [vmem:[#allocation2] sm:$0xff] %vm3561, %v3514
        %3563 = vst.msk [vmem:[#allocation2 + $0x8] sm:$0xff] %vm3561, %v3516
        %3564 = vst.msk [vmem:[#allocation2 + $0x10] sm:$0xff] %vm3561, %v3518
        %3565 = vst.msk [vmem:[#allocation2 + $0x18] sm:$0xff] %vm3561, %v3520
        %3566 = vst.msk [vmem:[#allocation2 + $0x20] sm:$0xff] %vm3561, %v3522
        %3567 = vst.msk [vmem:[#allocation2 + $0x28] sm:$0xff] %vm3561, %v3524
        %3568 = vst.msk [vmem:[#allocation2 + $0x30] sm:$0xff] %vm3561, %v3526
        %3569 = vst.msk [vmem:[#allocation2 + $0x38] sm:$0xff] %vm3561, %v3528
        %3570 = vst.msk [vmem:[#allocation2 + $0x40] sm:$0xff] %vm3561, %v3530
        %3571 = vst.msk [vmem:[#allocation2 + $0x48] sm:$0xff] %vm3561, %v3532
        %3572 = vst.msk [vmem:[#allocation2 + $0x50] sm:$0xff] %vm3561, %v3534
        %3573 = vst.msk [vmem:[#allocation2 + $0x58] sm:$0xff] %vm3561, %v3536
        %3574 = vst.msk [vmem:[#allocation2 + $0x60] sm:$0xff] %vm3561, %v3538
        %3575 = vst.msk [vmem:[#allocation2 + $0x68] sm:$0xff] %vm3561, %v3540
        %3576 = vst.msk [vmem:[#allocation2 + $0x70] sm:$0xff] %vm3561, %v3542
        %3577 = vst.msk [vmem:[#allocation2 + $0x78] sm:$0xff] %vm3561, %v3544
        %s3578 = scalar_lea.vmem [#allocation9], 192
        %v3579 = vld [vmem:[%s3578] sm:$0xff]
        %v3580 = vld [vmem:[%s3578 + $0x8] sm:$0xff]
        %v3581 = vld [vmem:[%s3578 + $0x10] sm:$0xff]
        %v3582 = vld [vmem:[%s3578 + $0x18] sm:$0xff]
        %v3583 = vld [vmem:[%s3578 + $0x20] sm:$0xff]
        %v3584 = vld [vmem:[%s3578 + $0x28] sm:$0xff]
        %v3585 = vld [vmem:[%s3578 + $0x30] sm:$0xff]
        %v3586 = vld [vmem:[%s3578 + $0x38] sm:$0xff]
        %3587 = vrot.lane.b32.xlu0 %v864, 32
        %v3588 = vpop.permute.xlu0 %3587
        %3589 = vrot.lane.b32.xlu0 %v865, 32
        %v3590 = vpop.permute.xlu0 %3589
        %3591 = vrot.lane.b32.xlu0 %v866, 32
        %v3592 = vpop.permute.xlu0 %3591
        %3593 = vrot.lane.b32.xlu0 %v867, 32
        %v3594 = vpop.permute.xlu0 %3593
        %3595 = vrot.lane.b32.xlu0 %v868, 32
        %v3596 = vpop.permute.xlu0 %3595
        %3597 = vrot.lane.b32.xlu0 %v869, 32
        %v3598 = vpop.permute.xlu0 %3597
        %3599 = vrot.lane.b32.xlu0 %v870, 32
        %v3600 = vpop.permute.xlu0 %3599
        %3601 = vrot.lane.b32.xlu0 %v871, 32
        %v3602 = vpop.permute.xlu0 %3601
        %3603 = vrot.lane.b32.xlu0 %v627, 32
        %v3604 = vpop.permute.xlu0 %3603
        %3605 = vrot.lane.b32.xlu0 %v633, 32
        %v3606 = vpop.permute.xlu0 %3605
        %3607 = vrot.lane.b32.xlu0 %v639, 32
        %v3608 = vpop.permute.xlu0 %3607
        %3609 = vrot.lane.b32.xlu0 %v645, 32
        %v3610 = vpop.permute.xlu0 %3609
        %3611 = vrot.lane.b32.xlu0 %v651, 32
        %v3612 = vpop.permute.xlu0 %3611
        %3613 = vrot.lane.b32.xlu0 %v657, 32
        %v3614 = vpop.permute.xlu0 %3613
        %3615 = vrot.lane.b32.xlu0 %v663, 32
        %v3616 = vpop.permute.xlu0 %3615
        %3617 = vrot.lane.b32.xlu0 %v669, 32
        %v3618 = vpop.permute.xlu0 %3617
        %v3619 = vsel %vm936, %v3588, 0
        %v3621 = vsel %vm936, %v3590, 0
        %v3623 = vsel %vm936, %v3592, 0
        %v3625 = vsel %vm936, %v3594, 0
        %v3627 = vsel %vm936, %v3596, 0
        %v3629 = vsel %vm936, %v3598, 0
        %v3631 = vsel %vm936, %v3600, 0
        %v3633 = vsel %vm936, %v3602, 0
        %v3635 = vsel %vm936, %v3604, 0
        %v3637 = vsel %vm936, %v3606, 0
        %v3639 = vsel %vm936, %v3608, 0
        %v3641 = vsel %vm936, %v3610, 0
        %v3643 = vsel %vm936, %v3612, 0
        %v3645 = vsel %vm936, %v3614, 0
        %v3647 = vsel %vm936, %v3616, 0
        %v3649 = vsel %vm936, %v3618, 0
        %3651 = vmatprep.subr.mxu0 0.0
        %3652 = vmatpush1.xpose.msra.mxu0 %v3635
        %3653 = vmatprep.subr.mxu0 0.0
        %3654 = vmatpush1.xpose.msra.mxu0 %v3637
        %3655 = vmatprep.subr.mxu0 0.0
        %3656 = vmatpush1.xpose.msra.mxu0 %v3639
        %3657 = vmatprep.subr.mxu0 0.0
        %3658 = vmatpush1.xpose.msra.mxu0 %v3641
        %3659 = vmatprep.subr.mxu0 0.0
        %3660 = vmatpush1.xpose.msra.mxu0 %v3643
        %3661 = vmatprep.subr.mxu0 0.0
        %3662 = vmatpush1.xpose.msra.mxu0 %v3645
        %3663 = vmatprep.subr.mxu0 0.0
        %3664 = vmatpush1.xpose.msra.mxu0 %v3647
        %3665 = vmatprep.subr.mxu0 0.0
        %3666 = vmatpush1.xpose.msra.mxu0 %v3649
        %3667 = vmatprep.subr.mxu0 0.0
        %3668 = vmatpush1.xpose.msra.mxu0 0.0
        %3669 = vmatprep.subr.mxu0 0.0
        %3670 = vmatpush1.xpose.msra.mxu0 0.0
        %3671 = vmatprep.subr.mxu0 0.0
        %3672 = vmatpush1.xpose.msra.mxu0 0.0
        %3673 = vmatprep.subr.mxu0 0.0
        %3674 = vmatpush1.xpose.msra.mxu0 0.0
        %3675 = vmatprep.subr.mxu0 0.0
        %3676 = vmatpush1.xpose.msra.mxu0 0.0
        %3677 = vmatprep.subr.mxu0 0.0
        %3678 = vmatpush1.xpose.msra.mxu0 0.0
        %3679 = vmatprep.subr.mxu0 0.0
        %3680 = vmatpush1.xpose.msra.mxu0 0.0
        %3681 = vmatprep.subr.mxu0 0.0
        %3682 = vmatpush1.xpose.msra.mxu0 0.0
        %3683 = vmatprep.subr.mxu0 0.0
        %3684 = vmatpush1.xpose.msra.mxu0 0.0
        %3685 = vmatprep.subr.mxu0 0.0
        %3686 = vmatpush1.xpose.msra.mxu0 0.0
        %3687 = vmatprep.subr.mxu0 0.0
        %3688 = vmatpush1.xpose.msra.mxu0 0.0
        %3689 = vmatprep.subr.mxu0 0.0
        %3690 = vmatpush1.xpose.msra.mxu0 0.0
        %3691 = vmatprep.subr.mxu0 0.0
        %3692 = vmatpush1.xpose.msra.mxu0 0.0
        %3693 = vmatprep.subr.mxu0 0.0
        %3694 = vmatpush1.xpose.msra.mxu0 0.0
        %3695 = vmatprep.subr.mxu0 0.0
        %3696 = vmatpush1.xpose.msra.mxu0 0.0
        %3697 = vmatprep.subr.mxu0 0.0
        %3698 = vmatpush1.xpose.msra.mxu0 0.0
        %3699 = vmatprep.subr.mxu0 0.0
        %3700 = vmatpush1.xpose.msra.mxu0 0.0
        %3701 = vmatprep.subr.mxu0 0.0
        %3702 = vmatpush1.xpose.msra.mxu0 0.0
        %3703 = vmatprep.subr.mxu0 0.0
        %3704 = vmatpush1.xpose.msra.mxu0 0.0
        %3705 = vmatprep.subr.mxu0 0.0
        %3706 = vmatpush1.xpose.msra.mxu0 0.0
        %3707 = vmatprep.subr.mxu0 0.0
        %3708 = vmatpush1.xpose.msra.mxu0 0.0
        %3709 = vmatprep.subr.mxu0 0.0
        %3710 = vmatpush1.xpose.msra.mxu0 0.0
        %3711 = vmatprep.subr.mxu0 0.0
        %3712 = vmatpush1.xpose.msra.mxu0 0.0
        %3713 = vmatprep.subr.mxu0 0.0
        %3714 = vmatpush1.xpose.msra.mxu0 0.0
        %3715 = vmatprep.mubr.f32.mxu0 0.0
        %3716 = vmatmul.mubr.f32.gmra.mrb[0].mxu0 %v3619
        %v3717 = vpop.f32.mrb[0].mxu0
        %v3718 = vadd.f32 %v3579, %v3717
        %v3719 = vpop.f32.mrb[0].mxu0
        %3720 = vmatprep.mubr.f32.mxu0 0.0
        %3721 = vmatmul.mubr.f32.gmra.mrb[0].mxu0 %v3621
        %v3722 = vpop.f32.mrb[0].mxu0
        %v3723 = vadd.f32 %v3580, %v3722
        %v3724 = vpop.f32.mrb[0].mxu0
        %3725 = vmatprep.mubr.f32.mxu0 0.0
        %3726 = vmatmul.mubr.f32.gmra.mrb[0].mxu0 %v3623
        %v3727 = vpop.f32.mrb[0].mxu0
        %v3728 = vadd.f32 %v3581, %v3727
        %v3729 = vpop.f32.mrb[0].mxu0
        %3730 = vmatprep.mubr.f32.mxu0 0.0
        %3731 = vmatmul.mubr.f32.gmra.mrb[0].mxu0 %v3625
        %v3732 = vpop.f32.mrb[0].mxu0
        %v3733 = vadd.f32 %v3582, %v3732
        %v3734 = vpop.f32.mrb[0].mxu0
        %3735 = vmatprep.mubr.f32.mxu0 0.0
        %3736 = vmatmul.mubr.f32.gmra.mrb[0].mxu0 %v3627
        %v3737 = vpop.f32.mrb[0].mxu0
        %v3738 = vadd.f32 %v3583, %v3737
        %v3739 = vpop.f32.mrb[0].mxu0
        %3740 = vmatprep.mubr.f32.mxu0 0.0
        %3741 = vmatmul.mubr.f32.gmra.mrb[0].mxu0 %v3629
        %v3742 = vpop.f32.mrb[0].mxu0
        %v3743 = vadd.f32 %v3584, %v3742
        %v3744 = vpop.f32.mrb[0].mxu0
        %3745 = vmatprep.mubr.f32.mxu0 0.0
        %3746 = vmatmul.mubr.f32.gmra.mrb[0].mxu0 %v3631
        %v3747 = vpop.f32.mrb[0].mxu0
        %v3748 = vadd.f32 %v3585, %v3747
        %v3749 = vpop.f32.mrb[0].mxu0
        %3750 = vmatprep.mubr.f32.mxu0 0.0
        %3751 = vmatmul.mubr.f32.gmra.mrb[0].mxu0 %v3633
        %v3752 = vpop.f32.mrb[0].mxu0
        %v3753 = vadd.f32 %v3586, %v3752
        %v3754 = vpop.f32.mrb[0].mxu0
        %3755 = vdwg.mxu0
        %3756 = vrot.lane.b32.xlu0 %v872, 32
        %v3757 = vpop.permute.xlu0 %3756
        %3758 = vrot.lane.b32.xlu0 %v873, 32
        %v3759 = vpop.permute.xlu0 %3758
        %3760 = vrot.lane.b32.xlu0 %v874, 32
        %v3761 = vpop.permute.xlu0 %3760
        %3762 = vrot.lane.b32.xlu0 %v875, 32
        %v3763 = vpop.permute.xlu0 %3762
        %3764 = vrot.lane.b32.xlu0 %v876, 32
        %v3765 = vpop.permute.xlu0 %3764
        %3766 = vrot.lane.b32.xlu0 %v877, 32
        %v3767 = vpop.permute.xlu0 %3766
        %3768 = vrot.lane.b32.xlu0 %v878, 32
        %v3769 = vpop.permute.xlu0 %3768
        %3770 = vrot.lane.b32.xlu0 %v879, 32
        %v3771 = vpop.permute.xlu0 %3770
        %3772 = vrot.lane.b32.xlu0 %v675, 32
        %v3773 = vpop.permute.xlu0 %3772
        %3774 = vrot.lane.b32.xlu0 %v681, 32
        %v3775 = vpop.permute.xlu0 %3774
        %3776 = vrot.lane.b32.xlu0 %v687, 32
        %v3777 = vpop.permute.xlu0 %3776
        %3778 = vrot.lane.b32.xlu0 %v693, 32
        %v3779 = vpop.permute.xlu0 %3778
        %3780 = vrot.lane.b32.xlu0 %v699, 32
        %v3781 = vpop.permute.xlu0 %3780
        %3782 = vrot.lane.b32.xlu0 %v705, 32
        %v3783 = vpop.permute.xlu0 %3782
        %3784 = vrot.lane.b32.xlu0 %v711, 32
        %v3785 = vpop.permute.xlu0 %3784
        %3786 = vrot.lane.b32.xlu0 %v717, 32
        %v3787 = vpop.permute.xlu0 %3786
        %v3788 = vsel %vm936, %v3757, 0
        %v3790 = vsel %vm936, %v3759, 0
        %v3792 = vsel %vm936, %v3761, 0
        %v3794 = vsel %vm936, %v3763, 0
        %v3796 = vsel %vm936, %v3765, 0
        %v3798 = vsel %vm936, %v3767, 0
        %v3800 = vsel %vm936, %v3769, 0
        %v3802 = vsel %vm936, %v3771, 0
        %v3804 = vsel %vm936, %v3773, 0
        %v3806 = vsel %vm936, %v3775, 0
        %v3808 = vsel %vm936, %v3777, 0
        %v3810 = vsel %vm936, %v3779, 0
        %v3812 = vsel %vm936, %v3781, 0
        %v3814 = vsel %vm936, %v3783, 0
        %v3816 = vsel %vm936, %v3785, 0
        %v3818 = vsel %vm936, %v3787, 0
        %3820 = vmatprep.subr.mxu0 0.0
        %3821 = vmatpush1.xpose.msra.mxu0 %v3804
        %3822 = vmatprep.subr.mxu0 0.0
        %3823 = vmatpush1.xpose.msra.mxu0 %v3806
        %3824 = vmatprep.subr.mxu0 0.0
        %3825 = vmatpush1.xpose.msra.mxu0 %v3808
        %3826 = vmatprep.subr.mxu0 0.0
        %3827 = vmatpush1.xpose.msra.mxu0 %v3810
        %3828 = vmatprep.subr.mxu0 0.0
        %3829 = vmatpush1.xpose.msra.mxu0 %v3812
        %3830 = vmatprep.subr.mxu0 0.0
        %3831 = vmatpush1.xpose.msra.mxu0 %v3814
        %3832 = vmatprep.subr.mxu0 0.0
        %3833 = vmatpush1.xpose.msra.mxu0 %v3816
        %3834 = vmatprep.subr.mxu0 0.0
        %3835 = vmatpush1.xpose.msra.mxu0 %v3818
        %3836 = vmatprep.subr.mxu0 0.0
        %3837 = vmatpush1.xpose.msra.mxu0 0.0
        %3838 = vmatprep.subr.mxu0 0.0
        %3839 = vmatpush1.xpose.msra.mxu0 0.0
        %3840 = vmatprep.subr.mxu0 0.0
        %3841 = vmatpush1.xpose.msra.mxu0 0.0
        %3842 = vmatprep.subr.mxu0 0.0
        %3843 = vmatpush1.xpose.msra.mxu0 0.0
        %3844 = vmatprep.subr.mxu0 0.0
        %3845 = vmatpush1.xpose.msra.mxu0 0.0
        %3846 = vmatprep.subr.mxu0 0.0
        %3847 = vmatpush1.xpose.msra.mxu0 0.0
        %3848 = vmatprep.subr.mxu0 0.0
        %3849 = vmatpush1.xpose.msra.mxu0 0.0
        %3850 = vmatprep.subr.mxu0 0.0
        %3851 = vmatpush1.xpose.msra.mxu0 0.0
        %3852 = vmatprep.subr.mxu0 0.0
        %3853 = vmatpush1.xpose.msra.mxu0 0.0
        %3854 = vmatprep.subr.mxu0 0.0
        %3855 = vmatpush1.xpose.msra.mxu0 0.0
        %3856 = vmatprep.subr.mxu0 0.0
        %3857 = vmatpush1.xpose.msra.mxu0 0.0
        %3858 = vmatprep.subr.mxu0 0.0
        %3859 = vmatpush1.xpose.msra.mxu0 0.0
        %3860 = vmatprep.subr.mxu0 0.0
        %3861 = vmatpush1.xpose.msra.mxu0 0.0
        %3862 = vmatprep.subr.mxu0 0.0
        %3863 = vmatpush1.xpose.msra.mxu0 0.0
        %3864 = vmatprep.subr.mxu0 0.0
        %3865 = vmatpush1.xpose.msra.mxu0 0.0
        %3866 = vmatprep.subr.mxu0 0.0
        %3867 = vmatpush1.xpose.msra.mxu0 0.0
        %3868 = vmatprep.subr.mxu0 0.0
        %3869 = vmatpush1.xpose.msra.mxu0 0.0
        %3870 = vmatprep.subr.mxu0 0.0
        %3871 = vmatpush1.xpose.msra.mxu0 0.0
        %3872 = vmatprep.subr.mxu0 0.0
        %3873 = vmatpush1.xpose.msra.mxu0 0.0
        %3874 = vmatprep.subr.mxu0 0.0
        %3875 = vmatpush1.xpose.msra.mxu0 0.0
        %3876 = vmatprep.subr.mxu0 0.0
        %3877 = vmatpush1.xpose.msra.mxu0 0.0
        %3878 = vmatprep.subr.mxu0 0.0
        %3879 = vmatpush1.xpose.msra.mxu0 0.0
        %3880 = vmatprep.subr.mxu0 0.0
        %3881 = vmatpush1.xpose.msra.mxu0 0.0
        %3882 = vmatprep.subr.mxu0 0.0
        %3883 = vmatpush1.xpose.msra.mxu0 0.0
        %3884 = vmatprep.mubr.f32.mxu0 0.0
        %3885 = vmatmul.mubr.f32.gmra.mrb[0].mxu0 %v3788
        %v3886 = vpop.f32.mrb[0].mxu0
        %v3887 = vadd.f32 %v3579, %v3886
        %v3888 = vpop.f32.mrb[0].mxu0
        %3889 = vmatprep.mubr.f32.mxu0 0.0
        %3890 = vmatmul.mubr.f32.gmra.mrb[0].mxu0 %v3790
        %v3891 = vpop.f32.mrb[0].mxu0
        %v3892 = vadd.f32 %v3580, %v3891
        %v3893 = vpop.f32.mrb[0].mxu0
        %3894 = vmatprep.mubr.f32.mxu0 0.0
        %3895 = vmatmul.mubr.f32.gmra.mrb[0].mxu0 %v3792
        %v3896 = vpop.f32.mrb[0].mxu0
        %v3897 = vadd.f32 %v3581, %v3896
        %v3898 = vpop.f32.mrb[0].mxu0
        %3899 = vmatprep.mubr.f32.mxu0 0.0
        %3900 = vmatmul.mubr.f32.gmra.mrb[0].mxu0 %v3794
        %v3901 = vpop.f32.mrb[0].mxu0
        %v3902 = vadd.f32 %v3582, %v3901
        %v3903 = vpop.f32.mrb[0].mxu0
        %3904 = vmatprep.mubr.f32.mxu0 0.0
        %3905 = vmatmul.mubr.f32.gmra.mrb[0].mxu0 %v3796
        %v3906 = vpop.f32.mrb[0].mxu0
        %v3907 = vadd.f32 %v3583, %v3906
        %v3908 = vpop.f32.mrb[0].mxu0
        %3909 = vmatprep.mubr.f32.mxu0 0.0
        %3910 = vmatmul.mubr.f32.gmra.mrb[0].mxu0 %v3798
        %v3911 = vpop.f32.mrb[0].mxu0
        %v3912 = vadd.f32 %v3584, %v3911
        %v3913 = vpop.f32.mrb[0].mxu0
        %3914 = vmatprep.mubr.f32.mxu0 0.0
        %3915 = vmatmul.mubr.f32.gmra.mrb[0].mxu0 %v3800
        %v3916 = vpop.f32.mrb[0].mxu0
        %v3917 = vadd.f32 %v3585, %v3916
        %v3918 = vpop.f32.mrb[0].mxu0
        %3919 = vmatprep.mubr.f32.mxu0 0.0
        %3920 = vmatmul.mubr.f32.gmra.mrb[0].mxu0 %v3802
        %v3921 = vpop.f32.mrb[0].mxu0
        %v3922 = vadd.f32 %v3586, %v3921
        %v3923 = vpop.f32.mrb[0].mxu0
        %3924 = vdwg.mxu0
        %v3925 = vadd.f32 %v3718, %v912
        %v3926 = vadd.f32 %v3723, %v913
        %v3927 = vadd.f32 %v3728, %v914
        %v3928 = vadd.f32 %v3733, %v915
        %v3929 = vadd.f32 %v3738, %v916
        %v3930 = vadd.f32 %v3743, %v917
        %v3931 = vadd.f32 %v3748, %v918
        %v3932 = vadd.f32 %v3753, %v919
        %v3933 = vadd.f32 %v3887, %v920
        %v3934 = vadd.f32 %v3892, %v921
        %v3935 = vadd.f32 %v3897, %v922
        %v3936 = vadd.f32 %v3902, %v923
        %v3937 = vadd.f32 %v3907, %v924
        %v3938 = vadd.f32 %v3912, %v925
        %v3939 = vadd.f32 %v3917, %v926
        %v3940 = vadd.f32 %v3922, %v927
        %v3941 = vsel %vm1259, %v3925, -inf
        %3942 = vmax.xlane.f32.xlu0 %v3941
        %v3943 = vpop.xlane.xlu0 %3942
        %v3944 = vsel %vm1259, %v3926, -inf
        %3945 = vmax.xlane.f32.xlu0 %v3944
        %v3946 = vpop.xlane.xlu0 %3945
        %v3947 = vsel %vm1259, %v3927, -inf
        %3948 = vmax.xlane.f32.xlu0 %v3947
        %v3949 = vpop.xlane.xlu0 %3948
        %v3950 = vsel %vm1259, %v3928, -inf
        %3951 = vmax.xlane.f32.xlu0 %v3950
        %v3952 = vpop.xlane.xlu0 %3951
        %v3953 = vsel %vm1259, %v3929, -inf
        %3954 = vmax.xlane.f32.xlu0 %v3953
        %v3955 = vpop.xlane.xlu0 %3954
        %v3956 = vsel %vm1259, %v3930, -inf
        %3957 = vmax.xlane.f32.xlu0 %v3956
        %v3958 = vpop.xlane.xlu0 %3957
        %v3959 = vsel %vm1259, %v3931, -inf
        %3960 = vmax.xlane.f32.xlu0 %v3959
        %v3961 = vpop.xlane.xlu0 %3960
        %v3962 = vsel %vm1259, %v3932, -inf
        %3963 = vmax.xlane.f32.xlu0 %v3962
        %v3964 = vpop.xlane.xlu0 %3963
        %v3965 = vsel %vm1259, %v3933, -inf
        %3966 = vmax.xlane.f32.xlu0 %v3965
        %v3967 = vpop.xlane.xlu0 %3966
        %v3968 = vsel %vm1259, %v3934, -inf
        %3969 = vmax.xlane.f32.xlu0 %v3968
        %v3970 = vpop.xlane.xlu0 %3969
        %v3971 = vsel %vm1259, %v3935, -inf
        %3972 = vmax.xlane.f32.xlu0 %v3971
        %v3973 = vpop.xlane.xlu0 %3972
        %v3974 = vsel %vm1259, %v3936, -inf
        %3975 = vmax.xlane.f32.xlu0 %v3974
        %v3976 = vpop.xlane.xlu0 %3975
        %v3977 = vsel %vm1259, %v3937, -inf
        %3978 = vmax.xlane.f32.xlu0 %v3977
        %v3979 = vpop.xlane.xlu0 %3978
        %v3980 = vsel %vm1259, %v3938, -inf
        %3981 = vmax.xlane.f32.xlu0 %v3980
        %v3982 = vpop.xlane.xlu0 %3981
        %v3983 = vsel %vm1259, %v3939, -inf
        %3984 = vmax.xlane.f32.xlu0 %v3983
        %v3985 = vpop.xlane.xlu0 %3984
        %v3986 = vsel %vm1259, %v3940, -inf
        %3987 = vmax.xlane.f32.xlu0 %v3986
        %v3988 = vpop.xlane.xlu0 %3987
        %v3989 = vsub.f32 %v3925, %v3943
        %v3990 = vsub.f32 %v3926, %v3946
        %v3991 = vsub.f32 %v3927, %v3949
        %v3992 = vsub.f32 %v3928, %v3952
        %v3993 = vsub.f32 %v3929, %v3955
        %v3994 = vsub.f32 %v3930, %v3958
        %v3995 = vsub.f32 %v3931, %v3961
        %v3996 = vsub.f32 %v3932, %v3964
        %v3997 = vsub.f32 %v3933, %v3967
        %v3998 = vsub.f32 %v3934, %v3970
        %v3999 = vsub.f32 %v3935, %v3973
        %v4000 = vsub.f32 %v3936, %v3976
        %v4001 = vsub.f32 %v3937, %v3979
        %v4002 = vsub.f32 %v3938, %v3982
        %v4003 = vsub.f32 %v3939, %v3985
        %v4004 = vsub.f32 %v3940, %v3988
        %v4005 = vmul.f32 %v3989, 1.442695
        %v4006 = vpow.pop %v4005
        %v4007 = vmul.f32 %v3990, 1.442695
        %v4008 = vpow.pop %v4007
        %v4009 = vmul.f32 %v3991, 1.442695
        %v4010 = vpow.pop %v4009
        %v4011 = vmul.f32 %v3992, 1.442695
        %v4012 = vpow.pop %v4011
        %v4013 = vmul.f32 %v3993, 1.442695
        %v4014 = vpow.pop %v4013
        %v4015 = vmul.f32 %v3994, 1.442695
        %v4016 = vpow.pop %v4015
        %v4017 = vmul.f32 %v3995, 1.442695
        %v4018 = vpow.pop %v4017
        %v4019 = vmul.f32 %v3996, 1.442695
        %v4020 = vpow.pop %v4019
        %v4021 = vmul.f32 %v3997, 1.442695
        %v4022 = vpow.pop %v4021
        %v4023 = vmul.f32 %v3998, 1.442695
        %v4024 = vpow.pop %v4023
        %v4025 = vmul.f32 %v3999, 1.442695
        %v4026 = vpow.pop %v4025
        %v4027 = vmul.f32 %v4000, 1.442695
        %v4028 = vpow.pop %v4027
        %v4029 = vmul.f32 %v4001, 1.442695
        %v4030 = vpow.pop %v4029
        %v4031 = vmul.f32 %v4002, 1.442695
        %v4032 = vpow.pop %v4031
        %v4033 = vmul.f32 %v4003, 1.442695
        %v4034 = vpow.pop %v4033
        %v4035 = vmul.f32 %v4004, 1.442695
        %v4036 = vpow.pop %v4035
        %v4037 = vsel %vm1259, %v4006, 0.0
        %4038 = vadd.xlane.f32.xlu0 %v4037
        %v4039 = vpop.xlane.xlu0 %4038
        %v4040 = vsel %vm1259, %v4008, 0.0
        %4041 = vadd.xlane.f32.xlu0 %v4040
        %v4042 = vpop.xlane.xlu0 %4041
        %v4043 = vsel %vm1259, %v4010, 0.0
        %4044 = vadd.xlane.f32.xlu0 %v4043
        %v4045 = vpop.xlane.xlu0 %4044
        %v4046 = vsel %vm1259, %v4012, 0.0
        %4047 = vadd.xlane.f32.xlu0 %v4046
        %v4048 = vpop.xlane.xlu0 %4047
        %v4049 = vsel %vm1259, %v4014, 0.0
        %4050 = vadd.xlane.f32.xlu0 %v4049
        %v4051 = vpop.xlane.xlu0 %4050
        %v4052 = vsel %vm1259, %v4016, 0.0
        %4053 = vadd.xlane.f32.xlu0 %v4052
        %v4054 = vpop.xlane.xlu0 %4053
        %v4055 = vsel %vm1259, %v4018, 0.0
        %4056 = vadd.xlane.f32.xlu0 %v4055
        %v4057 = vpop.xlane.xlu0 %4056
        %v4058 = vsel %vm1259, %v4020, 0.0
        %4059 = vadd.xlane.f32.xlu0 %v4058
        %v4060 = vpop.xlane.xlu0 %4059
        %v4061 = vsel %vm1259, %v4022, 0.0
        %4062 = vadd.xlane.f32.xlu0 %v4061
        %v4063 = vpop.xlane.xlu0 %4062
        %v4064 = vsel %vm1259, %v4024, 0.0
        %4065 = vadd.xlane.f32.xlu0 %v4064
        %v4066 = vpop.xlane.xlu0 %4065
        %v4067 = vsel %vm1259, %v4026, 0.0
        %4068 = vadd.xlane.f32.xlu0 %v4067
        %v4069 = vpop.xlane.xlu0 %4068
        %v4070 = vsel %vm1259, %v4028, 0.0
        %4071 = vadd.xlane.f32.xlu0 %v4070
        %v4072 = vpop.xlane.xlu0 %4071
        %v4073 = vsel %vm1259, %v4030, 0.0
        %4074 = vadd.xlane.f32.xlu0 %v4073
        %v4075 = vpop.xlane.xlu0 %4074
        %v4076 = vsel %vm1259, %v4032, 0.0
        %4077 = vadd.xlane.f32.xlu0 %v4076
        %v4078 = vpop.xlane.xlu0 %4077
        %v4079 = vsel %vm1259, %v4034, 0.0
        %4080 = vadd.xlane.f32.xlu0 %v4079
        %v4081 = vpop.xlane.xlu0 %4080
        %v4082 = vsel %vm1259, %v4036, 0.0
        %4083 = vadd.xlane.f32.xlu0 %v4082
        %v4084 = vpop.xlane.xlu0 %4083
        %v4085 = vrcp.pop %v4039
        %v4086 = vmul.f32 %v4006, %v4085
        %v4087 = vrcp.pop %v4042
        %v4088 = vmul.f32 %v4008, %v4087
        %v4089 = vrcp.pop %v4045
        %v4090 = vmul.f32 %v4010, %v4089
        %v4091 = vrcp.pop %v4048
        %v4092 = vmul.f32 %v4012, %v4091
        %v4093 = vrcp.pop %v4051
        %v4094 = vmul.f32 %v4014, %v4093
        %v4095 = vrcp.pop %v4054
        %v4096 = vmul.f32 %v4016, %v4095
        %v4097 = vrcp.pop %v4057
        %v4098 = vmul.f32 %v4018, %v4097
        %v4099 = vrcp.pop %v4060
        %v4100 = vmul.f32 %v4020, %v4099
        %v4101 = vrcp.pop %v4063
        %v4102 = vmul.f32 %v4022, %v4101
        %v4103 = vrcp.pop %v4066
        %v4104 = vmul.f32 %v4024, %v4103
        %v4105 = vrcp.pop %v4069
        %v4106 = vmul.f32 %v4026, %v4105
        %v4107 = vrcp.pop %v4072
        %v4108 = vmul.f32 %v4028, %v4107
        %v4109 = vrcp.pop %v4075
        %v4110 = vmul.f32 %v4030, %v4109
        %v4111 = vrcp.pop %v4078
        %v4112 = vmul.f32 %v4032, %v4111
        %v4113 = vrcp.pop %v4081
        %v4114 = vmul.f32 %v4034, %v4113
        %v4115 = vrcp.pop %v4084
        %v4116 = vmul.f32 %v4036, %v4115
        %4117 = vrot.lane.b32.xlu0 %v896, 32
        %v4118 = vpop.permute.xlu0 %4117
        %4119 = vrot.lane.b32.xlu0 %v897, 32
        %v4120 = vpop.permute.xlu0 %4119
        %4121 = vrot.lane.b32.xlu0 %v898, 32
        %v4122 = vpop.permute.xlu0 %4121
        %4123 = vrot.lane.b32.xlu0 %v899, 32
        %v4124 = vpop.permute.xlu0 %4123
        %4125 = vrot.lane.b32.xlu0 %v900, 32
        %v4126 = vpop.permute.xlu0 %4125
        %4127 = vrot.lane.b32.xlu0 %v901, 32
        %v4128 = vpop.permute.xlu0 %4127
        %4129 = vrot.lane.b32.xlu0 %v902, 32
        %v4130 = vpop.permute.xlu0 %4129
        %4131 = vrot.lane.b32.xlu0 %v903, 32
        %v4132 = vpop.permute.xlu0 %4131
        %v4142 = vsel %vm1259, %v4086, 0
        %v4145 = vsel %vm1259, %v4088, 0
        %v4148 = vsel %vm1259, %v4090, 0
        %v4151 = vsel %vm1259, %v4092, 0
        %v4154 = vsel %vm1259, %v4094, 0
        %v4157 = vsel %vm1259, %v4096, 0
        %v4160 = vsel %vm1259, %v4098, 0
        %v4163 = vsel %vm1259, %v4100, 0
        %4165 = vmatprep.subr.mxu0 0.0
        %4166 = vmatpush1.msra.mxu0 %v4118
        %4167 = vmatprep.subr.mxu0 0.0
        %4168 = vmatpush1.msra.mxu0 %v4120
        %4169 = vmatprep.subr.mxu0 0.0
        %4170 = vmatpush1.msra.mxu0 %v4122
        %4171 = vmatprep.subr.mxu0 0.0
        %4172 = vmatpush1.msra.mxu0 %v4124
        %4173 = vmatprep.subr.mxu0 0.0
        %4174 = vmatpush1.msra.mxu0 %v4126
        %4175 = vmatprep.subr.mxu0 0.0
        %4176 = vmatpush1.msra.mxu0 %v4128
        %4177 = vmatprep.subr.mxu0 0.0
        %4178 = vmatpush1.msra.mxu0 %v4130
        %4179 = vmatprep.subr.mxu0 0.0
        %4180 = vmatpush1.msra.mxu0 %v4132
        %4181 = vmatprep.subr.mxu0 0.0
        %4182 = vmatpush1.msra.mxu0 0.0
        %4183 = vmatprep.subr.mxu0 0.0
        %4184 = vmatpush1.msra.mxu0 0.0
        %4185 = vmatprep.subr.mxu0 0.0
        %4186 = vmatpush1.msra.mxu0 0.0
        %4187 = vmatprep.subr.mxu0 0.0
        %4188 = vmatpush1.msra.mxu0 0.0
        %4189 = vmatprep.subr.mxu0 0.0
        %4190 = vmatpush1.msra.mxu0 0.0
        %4191 = vmatprep.subr.mxu0 0.0
        %4192 = vmatpush1.msra.mxu0 0.0
        %4193 = vmatprep.subr.mxu0 0.0
        %4194 = vmatpush1.msra.mxu0 0.0
        %4195 = vmatprep.subr.mxu0 0.0
        %4196 = vmatpush1.msra.mxu0 0.0
        %4197 = vmatprep.subr.mxu0 0.0
        %4198 = vmatpush1.msra.mxu0 0.0
        %4199 = vmatprep.subr.mxu0 0.0
        %4200 = vmatpush1.msra.mxu0 0.0
        %4201 = vmatprep.subr.mxu0 0.0
        %4202 = vmatpush1.msra.mxu0 0.0
        %4203 = vmatprep.subr.mxu0 0.0
        %4204 = vmatpush1.msra.mxu0 0.0
        %4205 = vmatprep.subr.mxu0 0.0
        %4206 = vmatpush1.msra.mxu0 0.0
        %4207 = vmatprep.subr.mxu0 0.0
        %4208 = vmatpush1.msra.mxu0 0.0
        %4209 = vmatprep.subr.mxu0 0.0
        %4210 = vmatpush1.msra.mxu0 0.0
        %4211 = vmatprep.subr.mxu0 0.0
        %4212 = vmatpush1.msra.mxu0 0.0
        %4213 = vmatprep.subr.mxu0 0.0
        %4214 = vmatpush1.msra.mxu0 0.0
        %4215 = vmatprep.subr.mxu0 0.0
        %4216 = vmatpush1.msra.mxu0 0.0
        %4217 = vmatprep.subr.mxu0 0.0
        %4218 = vmatpush1.msra.mxu0 0.0
        %4219 = vmatprep.subr.mxu0 0.0
        %4220 = vmatpush1.msra.mxu0 0.0
        %4221 = vmatprep.subr.mxu0 0.0
        %4222 = vmatpush1.msra.mxu0 0.0
        %4223 = vmatprep.subr.mxu0 0.0
        %4224 = vmatpush1.msra.mxu0 0.0
        %4225 = vmatprep.subr.mxu0 0.0
        %4226 = vmatpush1.msra.mxu0 0.0
        %4227 = vmatprep.subr.mxu0 0.0
        %4228 = vmatpush1.msra.mxu0 0.0
        %4229 = vmatprep.mubr.f32.mxu0 0.0
        %4230 = vmatmul.mubr.f32.gmra.mrb[0].mxu0 %v4142
        %v4231 = vpop.f32.mrb[0].mxu0
        %v4232 = vadd.f32 0.0, %v4231
        %v4233 = vpop.f32.mrb[0].mxu0
        %4234 = vmatprep.mubr.f32.mxu0 0.0
        %4235 = vmatmul.mubr.f32.gmra.mrb[0].mxu0 %v4145
        %v4236 = vpop.f32.mrb[0].mxu0
        %v4237 = vadd.f32 0.0, %v4236
        %v4238 = vpop.f32.mrb[0].mxu0
        %4239 = vmatprep.mubr.f32.mxu0 0.0
        %4240 = vmatmul.mubr.f32.gmra.mrb[0].mxu0 %v4148
        %v4241 = vpop.f32.mrb[0].mxu0
        %v4242 = vadd.f32 0.0, %v4241
        %v4243 = vpop.f32.mrb[0].mxu0
        %4244 = vmatprep.mubr.f32.mxu0 0.0
        %4245 = vmatmul.mubr.f32.gmra.mrb[0].mxu0 %v4151
        %v4246 = vpop.f32.mrb[0].mxu0
        %v4247 = vadd.f32 0.0, %v4246
        %v4248 = vpop.f32.mrb[0].mxu0
        %4249 = vmatprep.mubr.f32.mxu0 0.0
        %4250 = vmatmul.mubr.f32.gmra.mrb[0].mxu0 %v4154
        %v4251 = vpop.f32.mrb[0].mxu0
        %v4252 = vadd.f32 0.0, %v4251
        %v4253 = vpop.f32.mrb[0].mxu0
        %4254 = vmatprep.mubr.f32.mxu0 0.0
        %4255 = vmatmul.mubr.f32.gmra.mrb[0].mxu0 %v4157
        %v4256 = vpop.f32.mrb[0].mxu0
        %v4257 = vadd.f32 0.0, %v4256
        %v4258 = vpop.f32.mrb[0].mxu0
        %4259 = vmatprep.mubr.f32.mxu0 0.0
        %4260 = vmatmul.mubr.f32.gmra.mrb[0].mxu0 %v4160
        %v4261 = vpop.f32.mrb[0].mxu0
        %v4262 = vadd.f32 0.0, %v4261
        %v4263 = vpop.f32.mrb[0].mxu0
        %4264 = vmatprep.mubr.f32.mxu0 0.0
        %4265 = vmatmul.mubr.f32.gmra.mrb[0].mxu0 %v4163
        %v4266 = vpop.f32.mrb[0].mxu0
        %v4267 = vadd.f32 0.0, %v4266
        %v4268 = vpop.f32.mrb[0].mxu0
        %4269 = vdwg.mxu0
        %4270 = vrot.lane.b32.xlu0 %v904, 32
        %v4271 = vpop.permute.xlu0 %4270
        %4272 = vrot.lane.b32.xlu0 %v905, 32
        %v4273 = vpop.permute.xlu0 %4272
        %4274 = vrot.lane.b32.xlu0 %v906, 32
        %v4275 = vpop.permute.xlu0 %4274
        %4276 = vrot.lane.b32.xlu0 %v907, 32
        %v4277 = vpop.permute.xlu0 %4276
        %4278 = vrot.lane.b32.xlu0 %v908, 32
        %v4279 = vpop.permute.xlu0 %4278
        %4280 = vrot.lane.b32.xlu0 %v909, 32
        %v4281 = vpop.permute.xlu0 %4280
        %4282 = vrot.lane.b32.xlu0 %v910, 32
        %v4283 = vpop.permute.xlu0 %4282
        %4284 = vrot.lane.b32.xlu0 %v911, 32
        %v4285 = vpop.permute.xlu0 %4284
        %v4295 = vsel %vm1259, %v4102, 0
        %v4298 = vsel %vm1259, %v4104, 0
        %v4301 = vsel %vm1259, %v4106, 0
        %v4304 = vsel %vm1259, %v4108, 0
        %v4307 = vsel %vm1259, %v4110, 0
        %v4310 = vsel %vm1259, %v4112, 0
        %v4313 = vsel %vm1259, %v4114, 0
        %v4316 = vsel %vm1259, %v4116, 0
        %4318 = vmatprep.subr.mxu0 0.0
        %4319 = vmatpush1.msra.mxu0 %v4271
        %4320 = vmatprep.subr.mxu0 0.0
        %4321 = vmatpush1.msra.mxu0 %v4273
        %4322 = vmatprep.subr.mxu0 0.0
        %4323 = vmatpush1.msra.mxu0 %v4275
        %4324 = vmatprep.subr.mxu0 0.0
        %4325 = vmatpush1.msra.mxu0 %v4277
        %4326 = vmatprep.subr.mxu0 0.0
        %4327 = vmatpush1.msra.mxu0 %v4279
        %4328 = vmatprep.subr.mxu0 0.0
        %4329 = vmatpush1.msra.mxu0 %v4281
        %4330 = vmatprep.subr.mxu0 0.0
        %4331 = vmatpush1.msra.mxu0 %v4283
        %4332 = vmatprep.subr.mxu0 0.0
        %4333 = vmatpush1.msra.mxu0 %v4285
        %4334 = vmatprep.subr.mxu0 0.0
        %4335 = vmatpush1.msra.mxu0 0.0
        %4336 = vmatprep.subr.mxu0 0.0
        %4337 = vmatpush1.msra.mxu0 0.0
        %4338 = vmatprep.subr.mxu0 0.0
        %4339 = vmatpush1.msra.mxu0 0.0
        %4340 = vmatprep.subr.mxu0 0.0
        %4341 = vmatpush1.msra.mxu0 0.0
        %4342 = vmatprep.subr.mxu0 0.0
        %4343 = vmatpush1.msra.mxu0 0.0
        %4344 = vmatprep.subr.mxu0 0.0
        %4345 = vmatpush1.msra.mxu0 0.0
        %4346 = vmatprep.subr.mxu0 0.0
        %4347 = vmatpush1.msra.mxu0 0.0
        %4348 = vmatprep.subr.mxu0 0.0
        %4349 = vmatpush1.msra.mxu0 0.0
        %4350 = vmatprep.subr.mxu0 0.0
        %4351 = vmatpush1.msra.mxu0 0.0
        %4352 = vmatprep.subr.mxu0 0.0
        %4353 = vmatpush1.msra.mxu0 0.0
        %4354 = vmatprep.subr.mxu0 0.0
        %4355 = vmatpush1.msra.mxu0 0.0
        %4356 = vmatprep.subr.mxu0 0.0
        %4357 = vmatpush1.msra.mxu0 0.0
        %4358 = vmatprep.subr.mxu0 0.0
        %4359 = vmatpush1.msra.mxu0 0.0
        %4360 = vmatprep.subr.mxu0 0.0
        %4361 = vmatpush1.msra.mxu0 0.0
        %4362 = vmatprep.subr.mxu0 0.0
        %4363 = vmatpush1.msra.mxu0 0.0
        %4364 = vmatprep.subr.mxu0 0.0
        %4365 = vmatpush1.msra.mxu0 0.0
        %4366 = vmatprep.subr.mxu0 0.0
        %4367 = vmatpush1.msra.mxu0 0.0
        %4368 = vmatprep.subr.mxu0 0.0
        %4369 = vmatpush1.msra.mxu0 0.0
        %4370 = vmatprep.subr.mxu0 0.0
        %4371 = vmatpush1.msra.mxu0 0.0
        %4372 = vmatprep.subr.mxu0 0.0
        %4373 = vmatpush1.msra.mxu0 0.0
        %4374 = vmatprep.subr.mxu0 0.0
        %4375 = vmatpush1.msra.mxu0 0.0
        %4376 = vmatprep.subr.mxu0 0.0
        %4377 = vmatpush1.msra.mxu0 0.0
        %4378 = vmatprep.subr.mxu0 0.0
        %4379 = vmatpush1.msra.mxu0 0.0
        %4380 = vmatprep.subr.mxu0 0.0
        %4381 = vmatpush1.msra.mxu0 0.0
        %4382 = vmatprep.mubr.f32.mxu0 0.0
        %4383 = vmatmul.mubr.f32.gmra.mrb[0].mxu0 %v4295
        %v4384 = vpop.f32.mrb[0].mxu0
        %v4385 = vadd.f32 0.0, %v4384
        %v4386 = vpop.f32.mrb[0].mxu0
        %4387 = vmatprep.mubr.f32.mxu0 0.0
        %4388 = vmatmul.mubr.f32.gmra.mrb[0].mxu0 %v4298
        %v4389 = vpop.f32.mrb[0].mxu0
        %v4390 = vadd.f32 0.0, %v4389
        %v4391 = vpop.f32.mrb[0].mxu0
        %4392 = vmatprep.mubr.f32.mxu0 0.0
        %4393 = vmatmul.mubr.f32.gmra.mrb[0].mxu0 %v4301
        %v4394 = vpop.f32.mrb[0].mxu0
        %v4395 = vadd.f32 0.0, %v4394
        %v4396 = vpop.f32.mrb[0].mxu0
        %4397 = vmatprep.mubr.f32.mxu0 0.0
        %4398 = vmatmul.mubr.f32.gmra.mrb[0].mxu0 %v4304
        %v4399 = vpop.f32.mrb[0].mxu0
        %v4400 = vadd.f32 0.0, %v4399
        %v4401 = vpop.f32.mrb[0].mxu0
        %4402 = vmatprep.mubr.f32.mxu0 0.0
        %4403 = vmatmul.mubr.f32.gmra.mrb[0].mxu0 %v4307
        %v4404 = vpop.f32.mrb[0].mxu0
        %v4405 = vadd.f32 0.0, %v4404
        %v4406 = vpop.f32.mrb[0].mxu0
        %4407 = vmatprep.mubr.f32.mxu0 0.0
        %4408 = vmatmul.mubr.f32.gmra.mrb[0].mxu0 %v4310
        %v4409 = vpop.f32.mrb[0].mxu0
        %v4410 = vadd.f32 0.0, %v4409
        %v4411 = vpop.f32.mrb[0].mxu0
        %4412 = vmatprep.mubr.f32.mxu0 0.0
        %4413 = vmatmul.mubr.f32.gmra.mrb[0].mxu0 %v4313
        %v4414 = vpop.f32.mrb[0].mxu0
        %v4415 = vadd.f32 0.0, %v4414
        %v4416 = vpop.f32.mrb[0].mxu0
        %4417 = vmatprep.mubr.f32.mxu0 0.0
        %4418 = vmatmul.mubr.f32.gmra.mrb[0].mxu0 %v4316
        %v4419 = vpop.f32.mrb[0].mxu0
        %v4420 = vadd.f32 0.0, %v4419
        %v4421 = vpop.f32.mrb[0].mxu0
        %4422 = vdwg.mxu0
        %4439 = vrot.lane.b32.xlu0 %v4232, 96
        %v4440 = vpop.permute.xlu0 %4439
        %4441 = vrot.lane.b32.xlu0 %v4237, 96
        %v4442 = vpop.permute.xlu0 %4441
        %4443 = vrot.lane.b32.xlu0 %v4242, 96
        %v4444 = vpop.permute.xlu0 %4443
        %4445 = vrot.lane.b32.xlu0 %v4247, 96
        %v4446 = vpop.permute.xlu0 %4445
        %4447 = vrot.lane.b32.xlu0 %v4252, 96
        %v4448 = vpop.permute.xlu0 %4447
        %4449 = vrot.lane.b32.xlu0 %v4257, 96
        %v4450 = vpop.permute.xlu0 %4449
        %4451 = vrot.lane.b32.xlu0 %v4262, 96
        %v4452 = vpop.permute.xlu0 %4451
        %4453 = vrot.lane.b32.xlu0 %v4267, 96
        %v4454 = vpop.permute.xlu0 %4453
        %4455 = vrot.lane.b32.xlu0 %v4385, 96
        %v4456 = vpop.permute.xlu0 %4455
        %4457 = vrot.lane.b32.xlu0 %v4390, 96
        %v4458 = vpop.permute.xlu0 %4457
        %4459 = vrot.lane.b32.xlu0 %v4395, 96
        %v4460 = vpop.permute.xlu0 %4459
        %4461 = vrot.lane.b32.xlu0 %v4400, 96
        %v4462 = vpop.permute.xlu0 %4461
        %4463 = vrot.lane.b32.xlu0 %v4405, 96
        %v4464 = vpop.permute.xlu0 %4463
        %4465 = vrot.lane.b32.xlu0 %v4410, 96
        %v4466 = vpop.permute.xlu0 %4465
        %4467 = vrot.lane.b32.xlu0 %v4415, 96
        %v4468 = vpop.permute.xlu0 %4467
        %4469 = vrot.lane.b32.xlu0 %v4420, 96
        %v4470 = vpop.permute.xlu0 %4469
        %vm4487 = vcmask 1048320
        %4488 = vst.msk [vmem:[#allocation2] sm:$0xff] %vm4487, %v4440
        %4489 = vst.msk [vmem:[#allocation2 + $0x8] sm:$0xff] %vm4487, %v4442
        %4490 = vst.msk [vmem:[#allocation2 + $0x10] sm:$0xff] %vm4487, %v4444
        %4491 = vst.msk [vmem:[#allocation2 + $0x18] sm:$0xff] %vm4487, %v4446
        %4492 = vst.msk [vmem:[#allocation2 + $0x20] sm:$0xff] %vm4487, %v4448
        %4493 = vst.msk [vmem:[#allocation2 + $0x28] sm:$0xff] %vm4487, %v4450
        %4494 = vst.msk [vmem:[#allocation2 + $0x30] sm:$0xff] %vm4487, %v4452
        %4495 = vst.msk [vmem:[#allocation2 + $0x38] sm:$0xff] %vm4487, %v4454
        %4496 = vst.msk [vmem:[#allocation2 + $0x40] sm:$0xff] %vm4487, %v4456
        %4497 = vst.msk [vmem:[#allocation2 + $0x48] sm:$0xff] %vm4487, %v4458
        %4498 = vst.msk [vmem:[#allocation2 + $0x50] sm:$0xff] %vm4487, %v4460
        %4499 = vst.msk [vmem:[#allocation2 + $0x58] sm:$0xff] %vm4487, %v4462
        %4500 = vst.msk [vmem:[#allocation2 + $0x60] sm:$0xff] %vm4487, %v4464
        %4501 = vst.msk [vmem:[#allocation2 + $0x68] sm:$0xff] %vm4487, %v4466
        %4502 = vst.msk [vmem:[#allocation2 + $0x70] sm:$0xff] %vm4487, %v4468
        %4503 = vst.msk [vmem:[#allocation2 + $0x78] sm:$0xff] %vm4487, %v4470
        %v4504 = vld [vmem:[#allocation2] sm:$0xff]
        %v4505 = vld [vmem:[#allocation2 + $0x8] sm:$0xff]
        %v4506 = vld [vmem:[#allocation2 + $0x10] sm:$0xff]
        %v4507 = vld [vmem:[#allocation2 + $0x18] sm:$0xff]
        %v4508 = vld [vmem:[#allocation2 + $0x20] sm:$0xff]
        %v4509 = vld [vmem:[#allocation2 + $0x28] sm:$0xff]
        %v4510 = vld [vmem:[#allocation2 + $0x30] sm:$0xff]
        %v4511 = vld [vmem:[#allocation2 + $0x38] sm:$0xff]
        %v4512 = vld [vmem:[#allocation2 + $0x40] sm:$0xff]
        %v4513 = vld [vmem:[#allocation2 + $0x48] sm:$0xff]
        %v4514 = vld [vmem:[#allocation2 + $0x50] sm:$0xff]
        %v4515 = vld [vmem:[#allocation2 + $0x58] sm:$0xff]
        %v4516 = vld [vmem:[#allocation2 + $0x60] sm:$0xff]
        %v4517 = vld [vmem:[#allocation2 + $0x68] sm:$0xff]
        %v4518 = vld [vmem:[#allocation2 + $0x70] sm:$0xff]
        %v4519 = vld [vmem:[#allocation2 + $0x78] sm:$0xff]
        %v4520 = vld [vmem:[#allocation14] sm:$0xff]
        %v4521 = vld [vmem:[#allocation14 + $0x8] sm:$0xff]
        %v4522 = vld [vmem:[#allocation14 + $0x10] sm:$0xff]
        %v4523 = vld [vmem:[#allocation14 + $0x18] sm:$0xff]
        %v4524 = vld [vmem:[#allocation14 + $0x20] sm:$0xff]
        %v4525 = vld [vmem:[#allocation14 + $0x28] sm:$0xff]
        %v4526 = vld [vmem:[#allocation14 + $0x30] sm:$0xff]
        %v4527 = vld [vmem:[#allocation14 + $0x38] sm:$0xff]
        %v4528 = vld [vmem:[#allocation14 + $0x40] sm:$0xff]
        %v4529 = vld [vmem:[#allocation14 + $0x48] sm:$0xff]
        %v4530 = vld [vmem:[#allocation14 + $0x50] sm:$0xff]
        %v4531 = vld [vmem:[#allocation14 + $0x58] sm:$0xff]
        %v4532 = vld [vmem:[#allocation14 + $0x60] sm:$0xff]
        %v4533 = vld [vmem:[#allocation14 + $0x68] sm:$0xff]
        %v4534 = vld [vmem:[#allocation14 + $0x70] sm:$0xff]
        %v4535 = vld [vmem:[#allocation14 + $0x78] sm:$0xff]
        %v4536 = vld [vmem:[#allocation15] sm:$0x1]
        %v4538 = vlaneseq
        %v4539 = vshrl.u32 %v4538, 7
        %v4540 = vsub.s32 0, %v4539
        %v4541 = vrot.slane %v4536, %v4540
        %4543 = vmatprep.subr.mxu0 0.0
        %4544 = vmatpush1.msra.mxu0 %v4520
        %4545 = vmatprep.subr.mxu0 0.0
        %4546 = vmatpush1.msra.mxu0 %v4521
        %4547 = vmatprep.subr.mxu0 0.0
        %4548 = vmatpush1.msra.mxu0 %v4522
        %4549 = vmatprep.subr.mxu0 0.0
        %4550 = vmatpush1.msra.mxu0 %v4523
        %4551 = vmatprep.subr.mxu0 0.0
        %4552 = vmatpush1.msra.mxu0 %v4524
        %4553 = vmatprep.subr.mxu0 0.0
        %4554 = vmatpush1.msra.mxu0 %v4525
        %4555 = vmatprep.subr.mxu0 0.0
        %4556 = vmatpush1.msra.mxu0 %v4526
        %4557 = vmatprep.subr.mxu0 0.0
        %4558 = vmatpush1.msra.mxu0 %v4527
        %4559 = vmatprep.subr.mxu0 0.0
        %4560 = vmatpush1.msra.mxu0 %v4528
        %4561 = vmatprep.subr.mxu0 0.0
        %4562 = vmatpush1.msra.mxu0 %v4529
        %4563 = vmatprep.subr.mxu0 0.0
        %4564 = vmatpush1.msra.mxu0 %v4530
        %4565 = vmatprep.subr.mxu0 0.0
        %4566 = vmatpush1.msra.mxu0 %v4531
        %4567 = vmatprep.subr.mxu0 0.0
        %4568 = vmatpush1.msra.mxu0 %v4532
        %4569 = vmatprep.subr.mxu0 0.0
        %4570 = vmatpush1.msra.mxu0 %v4533
        %4571 = vmatprep.subr.mxu0 0.0
        %4572 = vmatpush1.msra.mxu0 %v4534
        %4573 = vmatprep.subr.mxu0 0.0
        %4574 = vmatpush1.msra.mxu0 %v4535
        %4575 = vmatprep.subr.mxu0 0.0
        %4576 = vmatpush1.msra.mxu0 0.0
        %4577 = vmatprep.subr.mxu0 0.0
        %4578 = vmatpush1.msra.mxu0 0.0
        %4579 = vmatprep.subr.mxu0 0.0
        %4580 = vmatpush1.msra.mxu0 0.0
        %4581 = vmatprep.subr.mxu0 0.0
        %4582 = vmatpush1.msra.mxu0 0.0
        %4583 = vmatprep.subr.mxu0 0.0
        %4584 = vmatpush1.msra.mxu0 0.0
        %4585 = vmatprep.subr.mxu0 0.0
        %4586 = vmatpush1.msra.mxu0 0.0
        %4587 = vmatprep.subr.mxu0 0.0
        %4588 = vmatpush1.msra.mxu0 0.0
        %4589 = vmatprep.subr.mxu0 0.0
        %4590 = vmatpush1.msra.mxu0 0.0
        %4591 = vmatprep.subr.mxu0 0.0
        %4592 = vmatpush1.msra.mxu0 0.0
        %4593 = vmatprep.subr.mxu0 0.0
        %4594 = vmatpush1.msra.mxu0 0.0
        %4595 = vmatprep.subr.mxu0 0.0
        %4596 = vmatpush1.msra.mxu0 0.0
        %4597 = vmatprep.subr.mxu0 0.0
        %4598 = vmatpush1.msra.mxu0 0.0
        %4599 = vmatprep.subr.mxu0 0.0
        %4600 = vmatpush1.msra.mxu0 0.0
        %4601 = vmatprep.subr.mxu0 0.0
        %4602 = vmatpush1.msra.mxu0 0.0
        %4603 = vmatprep.subr.mxu0 0.0
        %4604 = vmatpush1.msra.mxu0 0.0
        %4605 = vmatprep.subr.mxu0 0.0
        %4606 = vmatpush1.msra.mxu0 0.0
        %4607 = vmatprep.mubr.f32.mxu0 0.0
        %4608 = vmatmul.mubr.f32.gmra.mrb[0].mxu0 %v4504
        %v4609 = vpop.f32.mrb[0].mxu0
        %v4610 = vadd.f32 %v4541, %v4609
        %v4611 = vpop.f32.mrb[0].mxu0
        %4612 = vmatprep.mubr.f32.mxu0 0.0
        %4613 = vmatmul.mubr.f32.gmra.mrb[0].mxu0 %v4505
        %v4614 = vpop.f32.mrb[0].mxu0
        %v4615 = vadd.f32 %v4541, %v4614
        %v4616 = vpop.f32.mrb[0].mxu0
        %4617 = vmatprep.mubr.f32.mxu0 0.0
        %4618 = vmatmul.mubr.f32.gmra.mrb[0].mxu0 %v4506
        %v4619 = vpop.f32.mrb[0].mxu0
        %v4620 = vadd.f32 %v4541, %v4619
        %v4621 = vpop.f32.mrb[0].mxu0
        %4622 = vmatprep.mubr.f32.mxu0 0.0
        %4623 = vmatmul.mubr.f32.gmra.mrb[0].mxu0 %v4507
        %v4624 = vpop.f32.mrb[0].mxu0
        %v4625 = vadd.f32 %v4541, %v4624
        %v4626 = vpop.f32.mrb[0].mxu0
        %4627 = vmatprep.mubr.f32.mxu0 0.0
        %4628 = vmatmul.mubr.f32.gmra.mrb[0].mxu0 %v4508
        %v4629 = vpop.f32.mrb[0].mxu0
        %v4630 = vadd.f32 %v4541, %v4629
        %v4631 = vpop.f32.mrb[0].mxu0
        %4632 = vmatprep.mubr.f32.mxu0 0.0
        %4633 = vmatmul.mubr.f32.gmra.mrb[0].mxu0 %v4509
        %v4634 = vpop.f32.mrb[0].mxu0
        %v4635 = vadd.f32 %v4541, %v4634
        %v4636 = vpop.f32.mrb[0].mxu0
        %4637 = vmatprep.mubr.f32.mxu0 0.0
        %4638 = vmatmul.mubr.f32.gmra.mrb[0].mxu0 %v4510
        %v4639 = vpop.f32.mrb[0].mxu0
        %v4640 = vadd.f32 %v4541, %v4639
        %v4641 = vpop.f32.mrb[0].mxu0
        %4642 = vmatprep.mubr.f32.mxu0 0.0
        %4643 = vmatmul.mubr.f32.gmra.mrb[0].mxu0 %v4511
        %v4644 = vpop.f32.mrb[0].mxu0
        %v4645 = vadd.f32 %v4541, %v4644
        %v4646 = vpop.f32.mrb[0].mxu0
        %4647 = vmatprep.mubr.f32.mxu0 0.0
        %4648 = vmatmul.mubr.f32.gmra.mrb[0].mxu0 %v4512
        %v4649 = vpop.f32.mrb[0].mxu0
        %v4650 = vadd.f32 %v4541, %v4649
        %v4651 = vpop.f32.mrb[0].mxu0
        %4652 = vmatprep.mubr.f32.mxu0 0.0
        %4653 = vmatmul.mubr.f32.gmra.mrb[0].mxu0 %v4513
        %v4654 = vpop.f32.mrb[0].mxu0
        %v4655 = vadd.f32 %v4541, %v4654
        %v4656 = vpop.f32.mrb[0].mxu0
        %4657 = vmatprep.mubr.f32.mxu0 0.0
        %4658 = vmatmul.mubr.f32.gmra.mrb[0].mxu0 %v4514
        %v4659 = vpop.f32.mrb[0].mxu0
        %v4660 = vadd.f32 %v4541, %v4659
        %v4661 = vpop.f32.mrb[0].mxu0
        %4662 = vmatprep.mubr.f32.mxu0 0.0
        %4663 = vmatmul.mubr.f32.gmra.mrb[0].mxu0 %v4515
        %v4664 = vpop.f32.mrb[0].mxu0
        %v4665 = vadd.f32 %v4541, %v4664
        %v4666 = vpop.f32.mrb[0].mxu0
        %4667 = vmatprep.mubr.f32.mxu0 0.0
        %4668 = vmatmul.mubr.f32.gmra.mrb[0].mxu0 %v4516
        %v4669 = vpop.f32.mrb[0].mxu0
        %v4670 = vadd.f32 %v4541, %v4669
        %v4671 = vpop.f32.mrb[0].mxu0
        %4672 = vmatprep.mubr.f32.mxu0 0.0
        %4673 = vmatmul.mubr.f32.gmra.mrb[0].mxu0 %v4517
        %v4674 = vpop.f32.mrb[0].mxu0
        %v4675 = vadd.f32 %v4541, %v4674
        %v4676 = vpop.f32.mrb[0].mxu0
        %4677 = vmatprep.mubr.f32.mxu0 0.0
        %4678 = vmatmul.mubr.f32.gmra.mrb[0].mxu0 %v4518
        %v4679 = vpop.f32.mrb[0].mxu0
        %v4680 = vadd.f32 %v4541, %v4679
        %v4681 = vpop.f32.mrb[0].mxu0
        %4682 = vmatprep.mubr.f32.mxu0 0.0
        %4683 = vmatmul.mubr.f32.gmra.mrb[0].mxu0 %v4519
        %v4684 = vpop.f32.mrb[0].mxu0
        %v4685 = vadd.f32 %v4541, %v4684
        %v4686 = vpop.f32.mrb[0].mxu0
        %4687 = vdwg.mxu0
        %4688 = vst [vmem:[%s472] sm:$0xff] %v4610
        %4689 = vst [vmem:[%s472 + $0x8] sm:$0xff] %v4615
        %4690 = vst [vmem:[%s472 + $0x10] sm:$0xff] %v4620
        %4691 = vst [vmem:[%s472 + $0x18] sm:$0xff] %v4625
        %4692 = vst [vmem:[%s472 + $0x20] sm:$0xff] %v4630
        %4693 = vst [vmem:[%s472 + $0x28] sm:$0xff] %v4635
        %4694 = vst [vmem:[%s472 + $0x30] sm:$0xff] %v4640
        %4695 = vst [vmem:[%s472 + $0x38] sm:$0xff] %v4645
        %4696 = vst [vmem:[%s472 + $0x40] sm:$0xff] %v4650
        %4697 = vst [vmem:[%s472 + $0x48] sm:$0xff] %v4655
        %4698 = vst [vmem:[%s472 + $0x50] sm:$0xff] %v4660
        %4699 = vst [vmem:[%s472 + $0x58] sm:$0xff] %v4665
        %4700 = vst [vmem:[%s472 + $0x60] sm:$0xff] %v4670
        %4701 = vst [vmem:[%s472 + $0x68] sm:$0xff] %v4675
        %4702 = vst [vmem:[%s472 + $0x70] sm:$0xff] %v4680
        %4703 = vst [vmem:[%s472 + $0x78] sm:$0xff] %v4685
        %s4704 = sand.u32 %s222, 1
        %s4705 = scalar_lea.sflag [#allocation5], %s4704
        %s4706 = sand.u32 %s222, 1
        %s4707 = smul.addr %s4706, 128
        %s4708 = scalar_lea.vmem [#allocation17], %s4707
        // Predicated region
        $region85: #{window_attention_pallas.1} parent=51 // pred_check
          %p4709 = pneg %p232
        $region86: #{window_attention_pallas.1} parent=51 // pred_check_branch
          %4711 = sbr.rel (%p4709) target = $region88
        $region87: #{window_attention_pallas.1} parent=51 // pred_region
          %s4712 = smul.u32 2, %s31
          %s4714 = ssub.s32 2048, 2048
          %4715 = vsyncadd %s4705, %s4714
          %s4716 = smul.addr %s4712, 8
          %s4717 = smul.addr %s4716, 128
          %s4718 = scalar_lea.hbm %s8, %s4717
          %s4719 = sshll.u32 %s4708, 4
          %s4720 = int_to_ptr.vmem [resolvable:$true] %s4719
          %4725 = dma.vmem_to_hbm [thread:$0]  %s4720, 2048, %s4718, %s4705, 128, 128, 8
        $region88: #{window_attention_pallas.1} parent=51 // pred_fallthru
          _
      $region52: #{window_attention_pallas.1} parent=5 // pred_fallthru
        _
      %p4726 = scmp.le.s32.totalorder 2, %s26
      // Predicated region
      $region89: #{window_attention_pallas.1} parent=5 // pred_check
        %p4727 = pneg %p4726
      $region90: #{window_attention_pallas.1} parent=5 // pred_check_branch
        %4729 = sbr.rel (%p4727) target = $region92
      $region91: #{window_attention_pallas.1} parent=5 // pred_region
        %s4730 = ssub.s32 %s26, 2
        // Predicated region
        $region93: #{window_attention_pallas.1} parent=91 // pred_check
          %p4731 = pneg %p238
        $region94: #{window_attention_pallas.1} parent=91 // pred_check_branch
          %4733 = sbr.rel (%p4731) target = $region96
        $region95: #{window_attention_pallas.1} parent=91 // pred_region
          %s4734 = sand.u32 %s223, 1
          %s4735 = scalar_lea.sflag [#allocation5], %s4734
          %s4736 = sand.u32 %s223, 1
          %s4737 = smul.addr %s4736, 128
          %s4738 = scalar_lea.vmem [#allocation17], %s4737
          %4739 = dma.done %s4735, 2048
        $region96: #{window_attention_pallas.1} parent=91 // pred_fallthru
          _
      $region92: #{window_attention_pallas.1} parent=5 // pred_fallthru
        _
    $region6: #{window_attention_pallas.1} parent=1 // loop_footer
      %s30 = sadd.s32 1, %s26
    $region7: #{window_attention_pallas.1} parent=1 // loop_footer_branch
      %25 = sbr.rel target = $region3
    $region8: #{window_attention_pallas.1} parent=1 // loop_exit
      _
    %4740 = vsyncpa [#allocation4], 1
    %s4741 = scalar_lea.sflag [#allocation4], 1
    %4742 = vsyncpa %s4741, 1
    %4743 = vsyncpa [#allocation7], 1
    %s4744 = scalar_lea.sflag [#allocation7], 1
    %4745 = vsyncpa %s4744, 1
    %4746 = vsyncpa [#allocation10], 1
    %4747 = vsyncpa [#allocation13], 1
    %4748 = vsyncpa [#allocation16], 1
    %4749 = vsyncpa [#allocation5], 1
    %s4750 = scalar_lea.sflag [#allocation5], 1
    %4751 = vsyncpa %s4750, 1

</llo_original>
